<compile_context>
chip_gen: v7x
topology: tpu7x:2x2x1
jax: 0.10.0
libtpu: 0.0.40
codegen_flags: <defaults>
</compile_context>

<pallas_src>
import functools

import numpy as np
import jax
import jax.numpy as jnp
from jax.experimental import pallas as pl
from jax.experimental.pallas import tpu as pltpu


# -----------------------------------------------------------------------------
# Shared math helpers
# -----------------------------------------------------------------------------
def _layer_norm(y, gamma, beta, eps=1e-5):
    mean = jnp.mean(y, axis=-1, keepdims=True)
    var = jnp.mean((y - mean) ** 2, axis=-1, keepdims=True)  # biased, like torch LN
    return (y - mean) * jax.lax.rsqrt(var + eps) * gamma + beta


def _attn_structure(seq, dph):
    """Constant 0/1 matrices encoding the module's per-head view as 2-D matmuls.

    t enumerates (i, j, d) = (query pos, kv pos, head dim); u enumerates (i, j).
    Valid when seq * dph == model_dim (i.e. seq == num_heads), where the torch
    .view(num_heads, -1, dim_per_head) is a pure per-row regrouping.
    """
    t = np.arange(seq * seq * dph)
    ti = t // (seq * dph)
    tj = (t // dph) % seq
    td = t % dph
    c = np.arange(seq * dph)[:, None]
    u = np.arange(seq * seq)
    xq = (c == (ti * dph + td)[None, :]).astype(np.float32)               # (M, S*S*D)
    xk = (c == (tj * dph + td)[None, :]).astype(np.float32)               # (M, S*S*D)
    rs = ((ti * seq + tj)[:, None] == u[None, :]).astype(np.float32)      # (S*S*D, S*S)
    gb = ((u[:, None] // seq) == (u[None, :] // seq)).astype(np.float32)  # (S*S, S*S)
    return xq, xk, rs, gb


# -----------------------------------------------------------------------------
# Fused whole-encoder kernel: grid = (num_layers,)
# -----------------------------------------------------------------------------
def _encoder_kernel(x_ref, emb_w_ref, emb_b_ref,
                    xq_ref, xk_ref, xp_ref, rs_ref, rc_ref, gb_ref,
                    wqkv_ref, wo_ref, w1_ref, w2_ref, vec_ref,
                    out_ref, attn_ref, act_ref,
                    *, model_dim, ffn_dim, scale):
    M, F = model_dim, ffn_dim
    layer = pl.program_id(0)

    # Layer 0: fused input embedding (seq_embedding Linear) into the carry scratch.
    @pl.when(layer == 0)
    def _():
        emb = jnp.dot(x_ref[...], emb_w_ref[...],
                      preferred_element_type=jnp.float32) + emb_b_ref[...]
        act_ref[...] = emb

    act = act_ref[...]                               # (S, M) layer input (f32)
    residual = act

    # ---- fused QKV projection: one (M, 3M) matmul, 192-wide lane-dense ------
    qkv = jnp.dot(act, wqkv_ref[...], preferred_element_type=jnp.float32)
    qkv = qkv + vec_ref[0:1, 0:3 * M]
    q2 = qkv[:, 0:M]
    k2 = qkv[:, M:2 * M]
    v2 = qkv[:, 2 * M:3 * M]

    # ---- scaled dot-product attention in the flat (head == row) layout ------
    # q_big[h, (i,j,d)] = q[h,i,d]   k_big[h, (i,j,d)] = k[h,j,d]
    q_big = jnp.dot(q2, xq_ref[...], preferred_element_type=jnp.float32)
    k_big = jnp.dot(k2, xk_ref[...], preferred_element_type=jnp.float32)
    scores = jnp.dot(q_big * k_big, rs_ref[...],
                     preferred_element_type=jnp.float32)          # (H, S*S)
    if scale:                                                     # mirrors `if scale:` in torch
        scores = scores * scale
    m = jnp.max(scores, axis=-1, keepdims=True)                   # row max: constant per softmax group
    e = jnp.exp(scores - m)
    denom = jnp.dot(e, gb_ref[...], preferred_element_type=jnp.float32)   # per-(h,i) sums, broadcast
    p = e / denom                                                 # exact softmax (torch parity)
    attn_ref[...] = p.astype(attn_ref.dtype)                      # (H, S*S) lane-dense store

    # context.view(-1, H*D):  ctx2[h, i*D+d] = sum_j p[h,i,j] * v[h,j,d]
    p_big = jnp.dot(p, xp_ref[...], preferred_element_type=jnp.float32)
    v_big = jnp.dot(v2, xk_ref[...], preferred_element_type=jnp.float32)
    ctx2 = jnp.dot(p_big * v_big, rc_ref[...],
                   preferred_element_type=jnp.float32)            # (S, M)

    # ---- output projection + residual + LayerNorm (dropout = identity) ------
    out = jnp.dot(ctx2, wo_ref[...], preferred_element_type=jnp.float32) + vec_ref[1:2, 0:M]
    y1 = _layer_norm(residual + out, vec_ref[2:3, 0:M], vec_ref[3:4, 0:M])

    # ---- position-wise FFN + residual + LayerNorm (dropout = identity) ------
    hid = jnp.maximum(
        jnp.dot(y1, w1_ref[...], preferred_element_type=jnp.float32) + vec_ref[4:5, 0:F],
        0.0)                                                      # (S, F) hidden stays in VMEM
    o2 = jnp.dot(hid, w2_ref[...], preferred_element_type=jnp.float32) + vec_ref[5:6, 0:M]
    y2 = _layer_norm(y1 + o2, vec_ref[6:7, 0:M], vec_ref[7:8, 0:M])

    act_ref[...] = y2                                             # carry to next layer (grid step)
    out_ref[...] = y2.astype(out_ref.dtype)                       # resident output block


def encoder_forward(x, params, *, num_heads, dim_per_head):
    S, num_size = x.shape
    M = num_heads * dim_per_head
    L = params["wqkv_t"].shape[0]
    F = params["w1_t"].shape[2]
    W = params["vec"].shape[2]
    SS, SSD = S * S, S * S * dim_per_head
    # The fused kernel requires seq_len * dim_per_head == model_dim
    # (equivalently seq_len == num_heads) so the torch head-view is per-row.
    assert S * dim_per_head == M, "fused encoder kernel requires seq_len == num_heads"

    xq, xk, rs, gb = _attn_structure(S, dim_per_head)
    scale = (dim_per_head // num_heads) ** (-0.5)     # same expression as the torch module

    kernel = functools.partial(_encoder_kernel, model_dim=M, ffn_dim=F, scale=scale)

    grid_spec = pltpu.PrefetchScalarGridSpec(
        num_scalar_prefetch=0,
        grid=(L,),
        in_specs=[
            pl.BlockSpec((S, num_size), lambda l: (0, 0)),        # x (used at layer 0)
            pl.BlockSpec((num_size, M), lambda l: (0, 0)),        # emb_w_t
            pl.BlockSpec((1, M), lambda l: (0, 0)),               # emb_b
            pl.BlockSpec((M, SSD), lambda l: (0, 0)),             # xq
            pl.BlockSpec((M, SSD), lambda l: (0, 0)),             # xk
            pl.BlockSpec((SS, SSD), lambda l: (0, 0)),            # xp = rs.T
            pl.BlockSpec((SSD, SS), lambda l: (0, 0)),            # rs
            pl.BlockSpec((SSD, M), lambda l: (0, 0)),             # rc = xq.T
            pl.BlockSpec((SS, SS), lambda l: (0, 0)),             # gb
            pl.BlockSpec((None, M, 3 * M), lambda l: (l, 0, 0)),  # wqkv_t (per layer)
            pl.BlockSpec((None, M, M), lambda l: (l, 0, 0)),      # wo_t
            pl.BlockSpec((None, M, F), lambda l: (l, 0, 0)),      # w1_t
            pl.BlockSpec((None, F, M), lambda l: (l, 0, 0)),      # w2_t
            pl.BlockSpec((None, 8, W), lambda l: (l, 0, 0)),      # packed biases / LN params
        ],
        out_specs=(
            pl.BlockSpec((S, M), lambda l: (0, 0)),               # final output (resident)
            pl.BlockSpec((None, S, SS), lambda l: (l, 0, 0)),     # per-layer attention
        ),
        scratch_shapes=[pltpu.VMEM((S, M), jnp.float32)],         # activation carried across layers
    )

    out, attn = pl.pallas_call(
        kernel,
        grid_spec=grid_spec,
        out_shape=(
            jax.ShapeDtypeStruct((S, M), x.dtype),
            jax.ShapeDtypeStruct((L, S, SS), x.dtype),
        ),
        compiler_params=pltpu.CompilerParams(dimension_semantics=("arbitrary",)),
    )(
        x, params["emb_w_t"], params["emb_b"],
        jnp.asarray(xq), jnp.asarray(xk), jnp.asarray(rs.T), jnp.asarray(rs),
        jnp.asarray(xq.T), jnp.asarray(gb),
        params["wqkv_t"], params["wo_t"], params["w1_t"], params["w2_t"], params["vec"],
    )

    # contiguous reshape at the XLA level (free) back to the torch (H, S, S) layout
    attentions = [attn[i].reshape(num_heads, S, S) for i in range(L)]
    return out, attentions


# -----------------------------------------------------------------------------
# Pure-JAX reference (mirrors the torch module line by line, eval-mode dropout)
# -----------------------------------------------------------------------------
def encoder_reference(x, params, num_heads, dim_per_head):
    M = num_heads * dim_per_head
    L = params["wqkv_t"].shape[0]
    F = params["w1_t"].shape[2]
    hp = "highest"
    act = jnp.dot(x, params["emb_w_t"], precision=hp) + params["emb_b"]
    attentions = []
    for l in range(L):
        vec = params["vec"][l]
        qkv = jnp.dot(act, params["wqkv_t"][l], precision=hp) + vec[0, :3 * M]
        q = qkv[:, 0:M].reshape(num_heads, -1, dim_per_head)
        k = qkv[:, M:2 * M].reshape(num_heads, -1, dim_per_head)
        v = qkv[:, 2 * M:3 * M].reshape(num_heads, -1, dim_per_head)
        scale = (dim_per_head // num_heads) ** (-0.5)
        attn = jnp.einsum("hqd,hkd->hqk", q, k, precision=hp)
        if scale:
            attn = attn * scale
        attn = jax.nn.softmax(attn, axis=2)
        context = jnp.einsum("hqk,hkd->hqd", attn, v, precision=hp).reshape(-1, M)
        out = jnp.dot(context, params["wo_t"][l], precision=hp) + vec[1, :M]
        y1 = _layer_norm(act + out, vec[2, :M], vec[3, :M])
        hid = jnp.maximum(jnp.dot(y1, params["w1_t"][l], precision=hp) + vec[4, :F], 0.0)
        o2 = jnp.dot(hid, params["w2_t"][l], precision=hp) + vec[5, :M]
        y2 = _layer_norm(y1 + o2, vec[6, :M], vec[7, :M])
        act = y2
        attentions.append(attn)
    return act, attentions


# -----------------------------------------------------------------------------
# Deterministic parameter construction (weights pre-transposed (in, out), stacked per layer)
# -----------------------------------------------------------------------------
def make_params(key, num_size, num_layers, model_dim, num_heads, ffn_dim):
    M, F = model_dim, ffn_dim
    W = max(F, 3 * M)                     # width of the packed bias/LN block

    def lin_t(k, out_dim, in_dim, std=0.01):
        # nn.Linear weight is (out, in); store its transpose (in, out).
        return (std * jax.random.normal(k, (out_dim, in_dim), dtype=jnp.float32)).T

    def pad_to(v, width):
        return jnp.pad(v, (0, width - v.shape[0]))

    keys = iter(jax.random.split(key, 2 + 6 * num_layers))
    emb_w_t = lin_t(next(keys), M, num_size)
    emb_b = jnp.zeros((1, M), jnp.float32)

    wqkv_l, wo_l, w1_l, w2_l, vec_l = [], [], [], [], []
    for _ in range(num_layers):
        wq = lin_t(next(keys), M, M)
        wk = lin_t(next(keys), M, M)
        wv = lin_t(next(keys), M, M)
        wqkv_l.append(jnp.concatenate([wq, wk, wv], axis=1))      # (M, 3M)
        wo_l.append(lin_t(next(keys), M, M))
        w1_l.append(lin_t(next(keys), F, M))
        w2_l.append(lin_t(next(keys), M, F))
        vec_rows = [
            jnp.zeros((3 * M,), jnp.float32),   # row 0: qkv bias
            jnp.zeros((M,), jnp.float32),       # row 1: output-proj bias
            jnp.ones((M,), jnp.float32),        # row 2: LN1 gamma
            jnp.zeros((M,), jnp.float32),       # row 3: LN1 beta
            jnp.zeros((F,), jnp.float32),       # row 4: FFN w1 bias
            jnp.zeros((M,), jnp.float32),       # row 5: FFN w2 bias
            jnp.ones((M,), jnp.float32),        # row 6: LN2 gamma
            jnp.zeros((M,), jnp.float32),       # row 7: LN2 beta
        ]
        vec_l.append(jnp.stack([pad_to(v, W) for v in vec_rows], axis=0))   # (8, W)

    return {
        "emb_w_t": emb_w_t, "emb_b": emb_b,
        "wqkv_t": jnp.stack(wqkv_l), "wo_t": jnp.stack(wo_l),
        "w1_t": jnp.stack(w1_l), "w2_t": jnp.stack(w2_l),
        "vec": jnp.stack(vec_l),
    }


# -----------------------------------------------------------------------------
if __name__ == "__main__":
    SEQ = 8            # sequence length (== num_heads for this module config)
    NUM_SIZE = 16      # input feature size
    MODEL_DIM = 64
    NUM_HEADS = 8
    FFN_DIM = 512
    NUM_LAYERS = 2
    DIM_PER_HEAD = MODEL_DIM // NUM_HEADS

    root = jax.random.PRNGKey(0)
    k_in, k_p = jax.random.split(root)
    x = jax.random.normal(k_in, (SEQ, NUM_SIZE), dtype=jnp.float32)
    params = make_params(k_p, NUM_SIZE, NUM_LAYERS, MODEL_DIM, NUM_HEADS, FFN_DIM)

    fwd = jax.jit(functools.partial(
        encoder_forward, num_heads=NUM_HEADS, dim_per_head=DIM_PER_HEAD))
    output, attentions = fwd(x, params)
    output = jax.block_until_ready(output)
    attentions = [jax.block_until_ready(a) for a in attentions]

    assert output.shape == (SEQ, MODEL_DIM)
    assert len(attentions) == NUM_LAYERS
    assert all(a.shape == (NUM_HEADS, SEQ, SEQ) for a in attentions)
    assert bool(jnp.all(jnp.isfinite(output)))
    assert all(bool(jnp.all(jnp.isfinite(a))) for a in attentions)
    # exact softmax: rows sum to 1
    assert bool(jnp.allclose(jnp.sum(attentions[0], axis=-1), 1.0, atol=5e-4))

    # pure-JAX reference check (same params, eval-mode dropout)
    ref_out, ref_attn = encoder_reference(x, params, NUM_HEADS, DIM_PER_HEAD)
    assert bool(jnp.allclose(output, ref_out, rtol=2e-3, atol=2e-3))
    assert all(bool(jnp.allclose(a, r, rtol=2e-3, atol=2e-3))
               for a, r in zip(attentions, ref_attn))

    print("KERNEL_OK")
</pallas_src>

<mosaic_0001>
module attributes {stable_mosaic.version = 11 : i64} {
  func.func @_encoder_kernel(%arg0: i32, %arg1: memref<8x16xf32, #tpu.memory_space<vmem>>, %arg2: memref<16x64xf32, #tpu.memory_space<vmem>>, %arg3: memref<1x64xf32, #tpu.memory_space<vmem>>, %arg4: memref<64x512xf32, #tpu.memory_space<vmem>>, %arg5: memref<64x512xf32, #tpu.memory_space<vmem>>, %arg6: memref<64x512xf32, #tpu.memory_space<vmem>>, %arg7: memref<512x64xf32, #tpu.memory_space<vmem>>, %arg8: memref<512x64xf32, #tpu.memory_space<vmem>>, %arg9: memref<64x64xf32, #tpu.memory_space<vmem>>, %arg10: memref<1x64x192xf32, #tpu.memory_space<vmem>>, %arg11: memref<1x64x64xf32, #tpu.memory_space<vmem>>, %arg12: memref<1x64x512xf32, #tpu.memory_space<vmem>>, %arg13: memref<1x512x64xf32, #tpu.memory_space<vmem>>, %arg14: memref<1x8x512xf32, #tpu.memory_space<vmem>>, %arg15: memref<8x64xf32, #tpu.memory_space<vmem>>, %arg16: memref<1x8x64xf32, #tpu.memory_space<vmem>>, %arg17: memref<8x64xf32, #tpu.memory_space<vmem>>) attributes {dimension_semantics = [#tpu.dimension_semantics<arbitrary>], iteration_bounds = array<i64: 2>, scalar_prefetch = 0 : i64, scratch_operands = 1 : i64, tpu.core_type = #tpu.core_type<tc>, window_params = [{pipeline_mode = #tpu.pipeline_mode<synchronous>, transform_indices = @transform_0, window_bounds = array<i64: 8, 16>}, {pipeline_mode = #tpu.pipeline_mode<synchronous>, transform_indices = @transform_1, window_bounds = array<i64: 16, 64>}, {pipeline_mode = #tpu.pipeline_mode<synchronous>, transform_indices = @transform_2, window_bounds = array<i64: 1, 64>}, {pipeline_mode = #tpu.pipeline_mode<synchronous>, transform_indices = @transform_3, window_bounds = array<i64: 64, 512>}, {pipeline_mode = #tpu.pipeline_mode<synchronous>, transform_indices = @transform_4, window_bounds = array<i64: 64, 512>}, {pipeline_mode = #tpu.pipeline_mode<synchronous>, transform_indices = @transform_5, window_bounds = array<i64: 64, 512>}, {pipeline_mode = #tpu.pipeline_mode<synchronous>, transform_indices = @transform_6, window_bounds = array<i64: 512, 64>}, {pipeline_mode = #tpu.pipeline_mode<synchronous>, transform_indices = @transform_7, window_bounds = array<i64: 512, 64>}, {pipeline_mode = #tpu.pipeline_mode<synchronous>, transform_indices = @transform_8, window_bounds = array<i64: 64, 64>}, {transform_indices = @transform_9, window_bounds = array<i64: 1, 64, 192>}, {transform_indices = @transform_10, window_bounds = array<i64: 1, 64, 64>}, {transform_indices = @transform_11, window_bounds = array<i64: 1, 64, 512>}, {transform_indices = @transform_12, window_bounds = array<i64: 1, 512, 64>}, {transform_indices = @transform_13, window_bounds = array<i64: 1, 8, 512>}, {pipeline_mode = #tpu.pipeline_mode<synchronous>, transform_indices = @transform_14, window_bounds = array<i64: 8, 64>}, {transform_indices = @transform_15, window_bounds = array<i64: 1, 8, 64>}]} {
    %c0_i32 = arith.constant 0 : i32
    %0 = arith.cmpi eq, %arg0, %c0_i32 : i32
    %1 = arith.extui %0 : i1 to i32
    %c0_i32_0 = arith.constant 0 : i32
    %2 = arith.cmpi ne, %1, %c0_i32_0 : i32
    scf.if %2 {
      %c0_75 = arith.constant 0 : index
      %c0_76 = arith.constant 0 : index
      %120 = vector.load %arg1[%c0_75, %c0_76] : memref<8x16xf32, #tpu.memory_space<vmem>>, vector<8x16xf32>
      %c0_77 = arith.constant 0 : index
      %c0_78 = arith.constant 0 : index
      %121 = vector.load %arg2[%c0_77, %c0_78] : memref<16x64xf32, #tpu.memory_space<vmem>>, vector<16x64xf32>
      %cst_79 = arith.constant dense<0.000000e+00> : vector<8x64xf32>
      %122 = tpu.matmul %120, %121, %cst_79 {dimension_numbers = #tpu.dot_dimension_numbers<[1], [0], [0], [1], [0, 0, 1, 1], [], []>} : vector<8x16xf32>, vector<16x64xf32>, vector<8x64xf32> -> vector<8x64xf32>
      %c0_80 = arith.constant 0 : index
      %c0_81 = arith.constant 0 : index
      %123 = vector.load %arg3[%c0_80, %c0_81] : memref<1x64xf32, #tpu.memory_space<vmem>>, vector<1x64xf32>
      %124 = vector.broadcast %123 : vector<1x64xf32> to vector<8x64xf32>
      %125 = arith.addf %122, %124 : vector<8x64xf32>
      %c0_82 = arith.constant 0 : index
      %c0_83 = arith.constant 0 : index
      %126 = vector.load %arg17[%c0_82, %c0_83] : memref<8x64xf32, #tpu.memory_space<vmem>>, vector<8x64xf32>
      tpu.vector_store %arg17[%c0_82, %c0_83], %125 {strides = array<i32>} : memref<8x64xf32, #tpu.memory_space<vmem>>, vector<8x64xf32>,
    } else {
    }
    %c0 = arith.constant 0 : index
    %c0_1 = arith.constant 0 : index
    %3 = vector.load %arg17[%c0, %c0_1] : memref<8x64xf32, #tpu.memory_space<vmem>>, vector<8x64xf32>
    %c0_2 = arith.constant 0 : index
    %c0_3 = arith.constant 0 : index
    %c0_4 = arith.constant 0 : index
    %4 = vector.load %arg10[%c0_2, %c0_3, %c0_4] : memref<1x64x192xf32, #tpu.memory_space<vmem>>, vector<1x64x192xf32>
    %5 = vector.shape_cast %4 : vector<1x64x192xf32> to vector<64x192xf32>
    %cst = arith.constant dense<0.000000e+00> : vector<8x192xf32>
    %6 = tpu.matmul %3, %5, %cst {dimension_numbers = #tpu.dot_dimension_numbers<[1], [0], [0], [1], [0, 0, 1, 1], [], []>} : vector<8x64xf32>, vector<64x192xf32>, vector<8x192xf32> -> vector<8x192xf32>
    %c0_5 = arith.constant 0 : index
    %c0_6 = arith.constant 0 : index
    %c0_7 = arith.constant 0 : index
    %7 = vector.load %arg14[%c0_5, %c0_6, %c0_7] : memref<1x8x512xf32, #tpu.memory_space<vmem>>, vector<1x1x192xf32>
    %8 = vector.shape_cast %7 : vector<1x1x192xf32> to vector<1x192xf32>
    %9 = vector.broadcast %8 : vector<1x192xf32> to vector<8x192xf32>
    %10 = arith.addf %6, %9 : vector<8x192xf32>
    %11 = vector.extract_strided_slice %10 {offsets = [0, 0], sizes = [8, 64], strides = [1, 1]} : vector<8x192xf32> to vector<8x64xf32>
    %12 = vector.extract_strided_slice %10 {offsets = [0, 64], sizes = [8, 64], strides = [1, 1]} : vector<8x192xf32> to vector<8x64xf32>
    %13 = vector.extract_strided_slice %10 {offsets = [0, 128], sizes = [8, 64], strides = [1, 1]} : vector<8x192xf32> to vector<8x64xf32>
    %c0_8 = arith.constant 0 : index
    %c0_9 = arith.constant 0 : index
    %14 = vector.load %arg4[%c0_8, %c0_9] : memref<64x512xf32, #tpu.memory_space<vmem>>, vector<64x512xf32>
    %cst_10 = arith.constant dense<0.000000e+00> : vector<8x512xf32>
    %15 = tpu.matmul %11, %14, %cst_10 {dimension_numbers = #tpu.dot_dimension_numbers<[1], [0], [0], [1], [0, 0, 1, 1], [], []>} : vector<8x64xf32>, vector<64x512xf32>, vector<8x512xf32> -> vector<8x512xf32>
    %c0_11 = arith.constant 0 : index
    %c0_12 = arith.constant 0 : index
    %16 = vector.load %arg5[%c0_11, %c0_12] : memref<64x512xf32, #tpu.memory_space<vmem>>, vector<64x512xf32>
    %cst_13 = arith.constant dense<0.000000e+00> : vector<8x512xf32>
    %17 = tpu.matmul %12, %16, %cst_13 {dimension_numbers = #tpu.dot_dimension_numbers<[1], [0], [0], [1], [0, 0, 1, 1], [], []>} : vector<8x64xf32>, vector<64x512xf32>, vector<8x512xf32> -> vector<8x512xf32>
    %18 = arith.mulf %15, %17 : vector<8x512xf32>
    %c0_14 = arith.constant 0 : index
    %c0_15 = arith.constant 0 : index
    %19 = vector.load %arg7[%c0_14, %c0_15] : memref<512x64xf32, #tpu.memory_space<vmem>>, vector<512x64xf32>
    %cst_16 = arith.constant dense<0.000000e+00> : vector<8x64xf32>
    %20 = tpu.matmul %18, %19, %cst_16 {dimension_numbers = #tpu.dot_dimension_numbers<[1], [0], [0], [1], [0, 0, 1, 1], [], []>} : vector<8x512xf32>, vector<512x64xf32>, vector<8x64xf32> -> vector<8x64xf32>
    %cst_17 = arith.constant 1.000000e+00 : f32
    %21 = vector.broadcast %cst_17 : f32 to vector<8x64xf32>
    %22 = arith.mulf %20, %21 : vector<8x64xf32>
    %cst_18 = arith.constant dense<0xFF800000> : vector<8xf32>
    %23 = vector.multi_reduction <maximumf>, %22, %cst_18 [1] : vector<8x64xf32> to vector<8xf32>
    %24 = vector.shape_cast %23 : vector<8xf32> to vector<8x1xf32>
    %25 = vector.broadcast %24 : vector<8x1xf32> to vector<8x64xf32>
    %26 = arith.subf %22, %25 : vector<8x64xf32>
    %27 = math.exp %26 : vector<8x64xf32>
    %c0_19 = arith.constant 0 : index
    %c0_20 = arith.constant 0 : index
    %28 = vector.load %arg9[%c0_19, %c0_20] : memref<64x64xf32, #tpu.memory_space<vmem>>, vector<64x64xf32>
    %cst_21 = arith.constant dense<0.000000e+00> : vector<8x64xf32>
    %29 = tpu.matmul %27, %28, %cst_21 {dimension_numbers = #tpu.dot_dimension_numbers<[1], [0], [0], [1], [0, 0, 1, 1], [], []>} : vector<8x64xf32>, vector<64x64xf32>, vector<8x64xf32> -> vector<8x64xf32>
    %30 = arith.divf %27, %29 : vector<8x64xf32>
    %c0_22 = arith.constant 0 : index
    %c0_23 = arith.constant 0 : index
    %c0_24 = arith.constant 0 : index
    %31 = vector.load %arg16[%c0_22, %c0_23, %c0_24] : memref<1x8x64xf32, #tpu.memory_space<vmem>>, vector<1x8x64xf32>
    %32 = vector.shape_cast %31 : vector<1x8x64xf32> to vector<8x64xf32>
    %33 = vector.shape_cast %30 : vector<8x64xf32> to vector<1x8x64xf32>
    tpu.vector_store %arg16[%c0_22, %c0_23, %c0_24], %33 {strides = array<i32>} : memref<1x8x64xf32, #tpu.memory_space<vmem>>, vector<1x8x64xf32>,
    %c0_25 = arith.constant 0 : index
    %c0_26 = arith.constant 0 : index
    %34 = vector.load %arg6[%c0_25, %c0_26] : memref<64x512xf32, #tpu.memory_space<vmem>>, vector<64x512xf32>
    %cst_27 = arith.constant dense<0.000000e+00> : vector<8x512xf32>
    %35 = tpu.matmul %30, %34, %cst_27 {dimension_numbers = #tpu.dot_dimension_numbers<[1], [0], [0], [1], [0, 0, 1, 1], [], []>} : vector<8x64xf32>, vector<64x512xf32>, vector<8x512xf32> -> vector<8x512xf32>
    %c0_28 = arith.constant 0 : index
    %c0_29 = arith.constant 0 : index
    %36 = vector.load %arg5[%c0_28, %c0_29] : memref<64x512xf32, #tpu.memory_space<vmem>>, vector<64x512xf32>
    %cst_30 = arith.constant dense<0.000000e+00> : vector<8x512xf32>
    %37 = tpu.matmul %13, %36, %cst_30 {dimension_numbers = #tpu.dot_dimension_numbers<[1], [0], [0], [1], [0, 0, 1, 1], [], []>} : vector<8x64xf32>, vector<64x512xf32>, vector<8x512xf32> -> vector<8x512xf32>
    %38 = arith.mulf %35, %37 : vector<8x512xf32>
    %c0_31 = arith.constant 0 : index
    %c0_32 = arith.constant 0 : index
    %39 = vector.load %arg8[%c0_31, %c0_32] : memref<512x64xf32, #tpu.memory_space<vmem>>, vector<512x64xf32>
    %cst_33 = arith.constant dense<0.000000e+00> : vector<8x64xf32>
    %40 = tpu.matmul %38, %39, %cst_33 {dimension_numbers = #tpu.dot_dimension_numbers<[1], [0], [0], [1], [0, 0, 1, 1], [], []>} : vector<8x512xf32>, vector<512x64xf32>, vector<8x64xf32> -> vector<8x64xf32>
    %c0_34 = arith.constant 0 : index
    %c0_35 = arith.constant 0 : index
    %c0_36 = arith.constant 0 : index
    %41 = vector.load %arg11[%c0_34, %c0_35, %c0_36] : memref<1x64x64xf32, #tpu.memory_space<vmem>>, vector<1x64x64xf32>
    %42 = vector.shape_cast %41 : vector<1x64x64xf32> to vector<64x64xf32>
    %cst_37 = arith.constant dense<0.000000e+00> : vector<8x64xf32>
    %43 = tpu.matmul %40, %42, %cst_37 {dimension_numbers = #tpu.dot_dimension_numbers<[1], [0], [0], [1], [0, 0, 1, 1], [], []>} : vector<8x64xf32>, vector<64x64xf32>, vector<8x64xf32> -> vector<8x64xf32>
    %c0_38 = arith.constant 0 : index
    %c1 = arith.constant 1 : index
    %c0_39 = arith.constant 0 : index
    %44 = vector.load %arg14[%c0_38, %c1, %c0_39] : memref<1x8x512xf32, #tpu.memory_space<vmem>>, vector<1x1x64xf32>
    %45 = vector.shape_cast %44 : vector<1x1x64xf32> to vector<1x64xf32>
    %46 = vector.broadcast %45 : vector<1x64xf32> to vector<8x64xf32>
    %47 = arith.addf %43, %46 : vector<8x64xf32>
    %48 = arith.addf %3, %47 : vector<8x64xf32>
    %c0_40 = arith.constant 0 : index
    %c2 = arith.constant 2 : index
    %c0_41 = arith.constant 0 : index
    %49 = vector.load %arg14[%c0_40, %c2, %c0_41] : memref<1x8x512xf32, #tpu.memory_space<vmem>>, vector<1x1x64xf32>
    %50 = vector.shape_cast %49 : vector<1x1x64xf32> to vector<1x64xf32>
    %c0_42 = arith.constant 0 : index
    %c3 = arith.constant 3 : index
    %c0_43 = arith.constant 0 : index
    %51 = vector.load %arg14[%c0_42, %c3, %c0_43] : memref<1x8x512xf32, #tpu.memory_space<vmem>>, vector<1x1x64xf32>
    %52 = vector.shape_cast %51 : vector<1x1x64xf32> to vector<1x64xf32>
    %cst_44 = arith.constant dense<0.000000e+00> : vector<8xf32>
    %53 = vector.multi_reduction <add>, %48, %cst_44 [1] : vector<8x64xf32> to vector<8xf32>
    %54 = vector.shape_cast %53 : vector<8xf32> to vector<8x1xf32>
    %cst_45 = arith.constant 6.400000e+01 : f32
    %55 = vector.broadcast %cst_45 : f32 to vector<8x1xf32>
    %56 = arith.divf %54, %55 : vector<8x1xf32>
    %57 = vector.broadcast %56 : vector<8x1xf32> to vector<8x64xf32>
    %58 = arith.subf %48, %57 : vector<8x64xf32>
    %59 = arith.mulf %58, %58 : vector<8x64xf32>
    %cst_46 = arith.constant dense<0.000000e+00> : vector<8xf32>
    %60 = vector.multi_reduction <add>, %59, %cst_46 [1] : vector<8x64xf32> to vector<8xf32>
    %61 = vector.shape_cast %60 : vector<8xf32> to vector<8x1xf32>
    %cst_47 = arith.constant 6.400000e+01 : f32
    %62 = vector.broadcast %cst_47 : f32 to vector<8x1xf32>
    %63 = arith.divf %61, %62 : vector<8x1xf32>
    %64 = vector.broadcast %56 : vector<8x1xf32> to vector<8x64xf32>
    %65 = arith.subf %48, %64 : vector<8x64xf32>
    %cst_48 = arith.constant 9.99999974E-6 : f32
    %66 = vector.broadcast %cst_48 : f32 to vector<8x1xf32>
    %67 = arith.addf %63, %66 : vector<8x1xf32>
    %68 = math.rsqrt %67 : vector<8x1xf32>
    %69 = vector.broadcast %68 : vector<8x1xf32> to vector<8x64xf32>
    %70 = arith.mulf %65, %69 : vector<8x64xf32>
    %71 = vector.broadcast %50 : vector<1x64xf32> to vector<8x64xf32>
    %72 = arith.mulf %70, %71 : vector<8x64xf32>
    %73 = vector.broadcast %52 : vector<1x64xf32> to vector<8x64xf32>
    %74 = arith.addf %72, %73 : vector<8x64xf32>
    %c0_49 = arith.constant 0 : index
    %c0_50 = arith.constant 0 : index
    %c0_51 = arith.constant 0 : index
    %75 = vector.load %arg12[%c0_49, %c0_50, %c0_51] : memref<1x64x512xf32, #tpu.memory_space<vmem>>, vector<1x64x512xf32>
    %76 = vector.shape_cast %75 : vector<1x64x512xf32> to vector<64x512xf32>
    %cst_52 = arith.constant dense<0.000000e+00> : vector<8x512xf32>
    %77 = tpu.matmul %74, %76, %cst_52 {dimension_numbers = #tpu.dot_dimension_numbers<[1], [0], [0], [1], [0, 0, 1, 1], [], []>} : vector<8x64xf32>, vector<64x512xf32>, vector<8x512xf32> -> vector<8x512xf32>
    %c0_53 = arith.constant 0 : index
    %c4 = arith.constant 4 : index
    %c0_54 = arith.constant 0 : index
    %78 = vector.load %arg14[%c0_53, %c4, %c0_54] : memref<1x8x512xf32, #tpu.memory_space<vmem>>, vector<1x1x512xf32>
    %79 = vector.shape_cast %78 : vector<1x1x512xf32> to vector<1x512xf32>
    %80 = vector.broadcast %79 : vector<1x512xf32> to vector<8x512xf32>
    %81 = arith.addf %77, %80 : vector<8x512xf32>
    %cst_55 = arith.constant 0.000000e+00 : f32
    %82 = vector.broadcast %cst_55 : f32 to vector<8x512xf32>
    %83 = arith.maximumf %81, %82 : vector<8x512xf32>
    %c0_56 = arith.constant 0 : index
    %c0_57 = arith.constant 0 : index
    %c0_58 = arith.constant 0 : index
    %84 = vector.load %arg13[%c0_56, %c0_57, %c0_58] : memref<1x512x64xf32, #tpu.memory_space<vmem>>, vector<1x512x64xf32>
    %85 = vector.shape_cast %84 : vector<1x512x64xf32> to vector<512x64xf32>
    %cst_59 = arith.constant dense<0.000000e+00> : vector<8x64xf32>
    %86 = tpu.matmul %83, %85, %cst_59 {dimension_numbers = #tpu.dot_dimension_numbers<[1], [0], [0], [1], [0, 0, 1, 1], [], []>} : vector<8x512xf32>, vector<512x64xf32>, vector<8x64xf32> -> vector<8x64xf32>
    %c0_60 = arith.constant 0 : index
    %c5 = arith.constant 5 : index
    %c0_61 = arith.constant 0 : index
    %87 = vector.load %arg14[%c0_60, %c5, %c0_61] : memref<1x8x512xf32, #tpu.memory_space<vmem>>, vector<1x1x64xf32>
    %88 = vector.shape_cast %87 : vector<1x1x64xf32> to vector<1x64xf32>
    %89 = vector.broadcast %88 : vector<1x64xf32> to vector<8x64xf32>
    %90 = arith.addf %86, %89 : vector<8x64xf32>
    %91 = arith.addf %74, %90 : vector<8x64xf32>
    %c0_62 = arith.constant 0 : index
    %c6 = arith.constant 6 : index
    %c0_63 = arith.constant 0 : index
    %92 = vector.load %arg14[%c0_62, %c6, %c0_63] : memref<1x8x512xf32, #tpu.memory_space<vmem>>, vector<1x1x64xf32>
    %93 = vector.shape_cast %92 : vector<1x1x64xf32> to vector<1x64xf32>
    %c0_64 = arith.constant 0 : index
    %c7 = arith.constant 7 : index
    %c0_65 = arith.constant 0 : index
    %94 = vector.load %arg14[%c0_64, %c7, %c0_65] : memref<1x8x512xf32, #tpu.memory_space<vmem>>, vector<1x1x64xf32>
    %95 = vector.shape_cast %94 : vector<1x1x64xf32> to vector<1x64xf32>
    %cst_66 = arith.constant dense<0.000000e+00> : vector<8xf32>
    %96 = vector.multi_reduction <add>, %91, %cst_66 [1] : vector<8x64xf32> to vector<8xf32>
    %97 = vector.shape_cast %96 : vector<8xf32> to vector<8x1xf32>
    %cst_67 = arith.constant 6.400000e+01 : f32
    %98 = vector.broadcast %cst_67 : f32 to vector<8x1xf32>
    %99 = arith.divf %97, %98 : vector<8x1xf32>
    %100 = vector.broadcast %99 : vector<8x1xf32> to vector<8x64xf32>
    %101 = arith.subf %91, %100 : vector<8x64xf32>
    %102 = arith.mulf %101, %101 : vector<8x64xf32>
    %cst_68 = arith.constant dense<0.000000e+00> : vector<8xf32>
    %103 = vector.multi_reduction <add>, %102, %cst_68 [1] : vector<8x64xf32> to vector<8xf32>
    %104 = vector.shape_cast %103 : vector<8xf32> to vector<8x1xf32>
    %cst_69 = arith.constant 6.400000e+01 : f32
    %105 = vector.broadcast %cst_69 : f32 to vector<8x1xf32>
    %106 = arith.divf %104, %105 : vector<8x1xf32>
    %107 = vector.broadcast %99 : vector<8x1xf32> to vector<8x64xf32>
    %108 = arith.subf %91, %107 : vector<8x64xf32>
    %cst_70 = arith.constant 9.99999974E-6 : f32
    %109 = vector.broadcast %cst_70 : f32 to vector<8x1xf32>
    %110 = arith.addf %106, %109 : vector<8x1xf32>
    %111 = math.rsqrt %110 : vector<8x1xf32>
    %112 = vector.broadcast %111 : vector<8x1xf32> to vector<8x64xf32>
    %113 = arith.mulf %108, %112 : vector<8x64xf32>
    %114 = vector.broadcast %93 : vector<1x64xf32> to vector<8x64xf32>
    %115 = arith.mulf %113, %114 : vector<8x64xf32>
    %116 = vector.broadcast %95 : vector<1x64xf32> to vector<8x64xf32>
    %117 = arith.addf %115, %116 : vector<8x64xf32>
    %c0_71 = arith.constant 0 : index
    %c0_72 = arith.constant 0 : index
    %118 = vector.load %arg17[%c0_71, %c0_72] : memref<8x64xf32, #tpu.memory_space<vmem>>, vector<8x64xf32>
    tpu.vector_store %arg17[%c0_71, %c0_72], %117 {strides = array<i32>} : memref<8x64xf32, #tpu.memory_space<vmem>>, vector<8x64xf32>,
    %c0_73 = arith.constant 0 : index
    %c0_74 = arith.constant 0 : index
    %119 = vector.load %arg15[%c0_73, %c0_74] : memref<8x64xf32, #tpu.memory_space<vmem>>, vector<8x64xf32>
    tpu.vector_store %arg15[%c0_73, %c0_74], %117 {strides = array<i32>} : memref<8x64xf32, #tpu.memory_space<vmem>>, vector<8x64xf32>,
    return
  }
  func.func @transform_0(%arg0: i32) -> (i32, i32) {
    %c0_i32 = arith.constant 0 : i32
    %c0_i32_0 = arith.constant 0 : i32
    %c0_i32_1 = arith.constant 0 : i32
    return %c0_i32, %c0_i32_0 : i32, i32
  }
  func.func @transform_1(%arg0: i32) -> (i32, i32) {
    %c0_i32 = arith.constant 0 : i32
    %c0_i32_0 = arith.constant 0 : i32
    %c0_i32_1 = arith.constant 0 : i32
    return %c0_i32, %c0_i32_0 : i32, i32
  }
  func.func @transform_2(%arg0: i32) -> (i32, i32) {
    %c0_i32 = arith.constant 0 : i32
    %c0_i32_0 = arith.constant 0 : i32
    %c0_i32_1 = arith.constant 0 : i32
    return %c0_i32, %c0_i32_0 : i32, i32
  }
  func.func @transform_3(%arg0: i32) -> (i32, i32) {
    %c0_i32 = arith.constant 0 : i32
    %c0_i32_0 = arith.constant 0 : i32
    %c0_i32_1 = arith.constant 0 : i32
    return %c0_i32, %c0_i32_0 : i32, i32
  }
  func.func @transform_4(%arg0: i32) -> (i32, i32) {
    %c0_i32 = arith.constant 0 : i32
    %c0_i32_0 = arith.constant 0 : i32
    %c0_i32_1 = arith.constant 0 : i32
    return %c0_i32, %c0_i32_0 : i32, i32
  }
  func.func @transform_5(%arg0: i32) -> (i32, i32) {
    %c0_i32 = arith.constant 0 : i32
    %c0_i32_0 = arith.constant 0 : i32
    %c0_i32_1 = arith.constant 0 : i32
    return %c0_i32, %c0_i32_0 : i32, i32
  }
  func.func @transform_6(%arg0: i32) -> (i32, i32) {
    %c0_i32 = arith.constant 0 : i32
    %c0_i32_0 = arith.constant 0 : i32
    %c0_i32_1 = arith.constant 0 : i32
    return %c0_i32, %c0_i32_0 : i32, i32
  }
  func.func @transform_7(%arg0: i32) -> (i32, i32) {
    %c0_i32 = arith.constant 0 : i32
    %c0_i32_0 = arith.constant 0 : i32
    %c0_i32_1 = arith.constant 0 : i32
    return %c0_i32, %c0_i32_0 : i32, i32
  }
  func.func @transform_8(%arg0: i32) -> (i32, i32) {
    %c0_i32 = arith.constant 0 : i32
    %c0_i32_0 = arith.constant 0 : i32
    %c0_i32_1 = arith.constant 0 : i32
    return %c0_i32, %c0_i32_0 : i32, i32
  }
  func.func @transform_9(%arg0: i32) -> (i32, i32, i32) {
    %c0_i32 = arith.constant 0 : i32
    %c0_i32_0 = arith.constant 0 : i32
    %c0_i32_1 = arith.constant 0 : i32
    return %arg0, %c0_i32, %c0_i32_0 : i32, i32, i32
  }
  func.func @transform_10(%arg0: i32) -> (i32, i32, i32) {
    %c0_i32 = arith.constant 0 : i32
    %c0_i32_0 = arith.constant 0 : i32
    %c0_i32_1 = arith.constant 0 : i32
    return %arg0, %c0_i32, %c0_i32_0 : i32, i32, i32
  }
  func.func @transform_11(%arg0: i32) -> (i32, i32, i32) {
    %c0_i32 = arith.constant 0 : i32
    %c0_i32_0 = arith.constant 0 : i32
    %c0_i32_1 = arith.constant 0 : i32
    return %arg0, %c0_i32, %c0_i32_0 : i32, i32, i32
  }
  func.func @transform_12(%arg0: i32) -> (i32, i32, i32) {
    %c0_i32 = arith.constant 0 : i32
    %c0_i32_0 = arith.constant 0 : i32
    %c0_i32_1 = arith.constant 0 : i32
    return %arg0, %c0_i32, %c0_i32_0 : i32, i32, i32
  }
  func.func @transform_13(%arg0: i32) -> (i32, i32, i32) {
    %c0_i32 = arith.constant 0 : i32
    %c0_i32_0 = arith.constant 0 : i32
    %c0_i32_1 = arith.constant 0 : i32
    return %arg0, %c0_i32, %c0_i32_0 : i32, i32, i32
  }
  func.func @transform_14(%arg0: i32) -> (i32, i32) {
    %c0_i32 = arith.constant 0 : i32
    %c0_i32_0 = arith.constant 0 : i32
    %c0_i32_1 = arith.constant 0 : i32
    return %c0_i32, %c0_i32_0 : i32, i32
  }
  func.func @transform_15(%arg0: i32) -> (i32, i32, i32) {
    %c0_i32 = arith.constant 0 : i32
    %c0_i32_0 = arith.constant 0 : i32
    %c0_i32_1 = arith.constant 0 : i32
    return %arg0, %c0_i32, %c0_i32_0 : i32, i32, i32
  }
}

</mosaic_0001>

<llo_original>
// kernel: squeeze.3
$region0: #{squeeze.3}
  %s0 = inlined_call_operand.vmem [shape: f32[1,8,64], index: 0, kind: input, shape index: {}]
  %s1 = inlined_call_operand.hbm [shape: f32[8,8,8], index: 1, kind: output, shape index: {}]
  $region1: #{squeeze.3} parent=0
    #allocation0 [shape = 'u8[32768]{0}', space=vmem, size = 0x8000, scoped, tag = 'operand span for operand 1']
    #allocation1 [shape = 's32[1]{0}', space=sflag, size = 0x4, scoped, tag = 'scoped memory for squeeze.3']
    %2 = vsyncpa [#allocation1], 0
    %v3 = vld [vmem:[%s0] sm:$0xff]
    %vm4 = vcmask 64512
    %5 = vst.msk [vmem:[#allocation0] ss:$8 sm:$0xf] %vm4, %v3
    %6 = vst.msk [vmem:[#allocation0] ss:$8 sm:$0xf0] %vm4, %v3
    %v7 = vld [vmem:[%s0] sm:$0xff]
    %8 = vrot.lane.b32.xlu0 %v7, 120
    %v9 = vpop.permute.xlu0 %8
    %vm10 = vcmask 64512
    %s11 = scalar_lea.vmem [#allocation0], 1
    %12 = vst.msk [vmem:[%s11] ss:$8 sm:$0xf] %vm10, %v9
    %s13 = scalar_lea.vmem [#allocation0], 1
    %14 = vst.msk [vmem:[%s13] ss:$8 sm:$0xf0] %vm10, %v9
    %v15 = vld [vmem:[%s0] sm:$0xff]
    %16 = vrot.lane.b32.xlu0 %v15, 112
    %v17 = vpop.permute.xlu0 %16
    %vm18 = vcmask 64512
    %s19 = scalar_lea.vmem [#allocation0], 2
    %20 = vst.msk [vmem:[%s19] ss:$8 sm:$0xf] %vm18, %v17
    %s21 = scalar_lea.vmem [#allocation0], 2
    %22 = vst.msk [vmem:[%s21] ss:$8 sm:$0xf0] %vm18, %v17
    %v23 = vld [vmem:[%s0] sm:$0xff]
    %24 = vrot.lane.b32.xlu0 %v23, 104
    %v25 = vpop.permute.xlu0 %24
    %vm26 = vcmask 64512
    %s27 = scalar_lea.vmem [#allocation0], 3
    %28 = vst.msk [vmem:[%s27] ss:$8 sm:$0xf] %vm26, %v25
    %s29 = scalar_lea.vmem [#allocation0], 3
    %30 = vst.msk [vmem:[%s29] ss:$8 sm:$0xf0] %vm26, %v25
    %v31 = vld [vmem:[%s0] sm:$0xff]
    %32 = vrot.lane.b32.xlu0 %v31, 96
    %v33 = vpop.permute.xlu0 %32
    %vm34 = vcmask 64512
    %s35 = scalar_lea.vmem [#allocation0], 4
    %36 = vst.msk [vmem:[%s35] ss:$8 sm:$0xf] %vm34, %v33
    %s37 = scalar_lea.vmem [#allocation0], 4
    %38 = vst.msk [vmem:[%s37] ss:$8 sm:$0xf0] %vm34, %v33
    %v39 = vld [vmem:[%s0] sm:$0xff]
    %40 = vrot.lane.b32.xlu0 %v39, 88
    %v41 = vpop.permute.xlu0 %40
    %vm42 = vcmask 64512
    %s43 = scalar_lea.vmem [#allocation0], 5
    %44 = vst.msk [vmem:[%s43] ss:$8 sm:$0xf] %vm42, %v41
    %s45 = scalar_lea.vmem [#allocation0], 5
    %46 = vst.msk [vmem:[%s45] ss:$8 sm:$0xf0] %vm42, %v41
    %v47 = vld [vmem:[%s0] sm:$0xff]
    %48 = vrot.lane.b32.xlu0 %v47, 80
    %v49 = vpop.permute.xlu0 %48
    %vm50 = vcmask 64512
    %s51 = scalar_lea.vmem [#allocation0], 6
    %52 = vst.msk [vmem:[%s51] ss:$8 sm:$0xf] %vm50, %v49
    %s53 = scalar_lea.vmem [#allocation0], 6
    %54 = vst.msk [vmem:[%s53] ss:$8 sm:$0xf0] %vm50, %v49
    %v55 = vld [vmem:[%s0] sm:$0xff]
    %56 = vrot.lane.b32.xlu0 %v55, 72
    %v57 = vpop.permute.xlu0 %56
    %vm58 = vcmask 64512
    %s59 = scalar_lea.vmem [#allocation0], 7
    %60 = vst.msk [vmem:[%s59] ss:$8 sm:$0xf] %vm58, %v57
    %s61 = scalar_lea.vmem [#allocation0], 7
    %62 = vst.msk [vmem:[%s61] ss:$8 sm:$0xf0] %vm58, %v57
    %s64 = ssub.s32 1024, 1024
    %65 = vsyncadd [#allocation1], %s64
    %s67 = sshll.u32 [#allocation0], 4
    %s68 = int_to_ptr.vmem [resolvable:$true] %s67
    %70 = dma.vmem_to_hbm [thread:$0]  %s68, 1024, %s1, [#allocation1]
    %71 = dma.done [#allocation1], 1024
    %72 = vsyncpa [#allocation1], 1

// kernel: encoder_forward.1
$region0: #{encoder_forward.1}
  #allocation0 [shape = 'u32[]', space=smem, size = 0x4, offset = 0x4, fixed_abs, tag = 'smem constant byte address 0x4 - core index']
  #allocation1 [shape = 'u32[144,128]{1,0:T(1,128)}', space=vmem, size = 0x12000, scoped, tag = 'internal scratch']
  #allocation2 [shape = 'f32[8,64]{1,0:T(8,128)}', space=vmem, size = 0x1000, scoped, tag = 'scratch operand']
  %s0 = inlined_call_operand.hbm [shape: f32[8,16], index: 0, kind: input, shape index: {}]
  %s1 = inlined_call_operand.hbm [shape: f32[16,64], index: 1, kind: input, shape index: {}]
  %s2 = inlined_call_operand.hbm [shape: f32[1,64], index: 2, kind: input, shape index: {}]
  %s3 = inlined_call_operand.hbm [shape: f32[64,512], index: 3, kind: input, shape index: {}]
  %s4 = inlined_call_operand.hbm [shape: f32[64,512], index: 4, kind: input, shape index: {}]
  %s5 = inlined_call_operand.hbm [shape: f32[64,512], index: 5, kind: input, shape index: {}]
  %s6 = inlined_call_operand.vmem [shape: f32[512,64], index: 6, kind: input, shape index: {}]
  %s7 = inlined_call_operand.vmem [shape: f32[512,64], index: 7, kind: input, shape index: {}]
  %s8 = inlined_call_operand.hbm [shape: f32[64,64], index: 8, kind: input, shape index: {}]
  %s9 = inlined_call_operand.hbm [shape: f32[2,64,192], index: 9, kind: input, shape index: {}]
  %s10 = inlined_call_operand.hbm [shape: f32[2,64,64], index: 10, kind: input, shape index: {}]
  %s11 = inlined_call_operand.vmem [shape: f32[2,64,512], index: 11, kind: input, shape index: {}]
  %s12 = inlined_call_operand.vmem [shape: f32[2,512,64], index: 12, kind: input, shape index: {}]
  %s13 = inlined_call_operand.hbm [shape: f32[2,8,512], index: 13, kind: input, shape index: {}]
  %s14 = inlined_call_operand.hbm [shape: f32[8,64], index: 14, kind: output, shape index: {0}]
  %s15 = inlined_call_operand.vmem [shape: f32[2,8,64], index: 15, kind: output, shape index: {1}]
  %16 = xla_tuple %s14, %s15
  %s17 = sld [smem:[#allocation0]]
  $region141: #{encoder_forward.1} parent=0
    _
  %s19 = ssub.s32 1, %s17
  %s20 = scalar_select 0, %s19, %s17
  $region1: #{encoder_forward.1} parent=0
    #allocation3 [shape = 'u8[4096]{0}', space=vmem, size = 0x1000, scoped, tag = 'input window, operand 0, single buffered']
    #allocation4 [shape = 's32[2]{0}', space=sflag, size = 0x8, scoped, tag = 'scoped memory for encoder_forward.1']
    #allocation5 [shape = 's32[2]{0}', space=sflag, size = 0x8, scoped, tag = 'scoped memory for encoder_forward.1']
    #allocation6 [shape = 'u8[8192]{0}', space=vmem, size = 0x2000, scoped, tag = 'input window, operand 1, single buffered']
    #allocation7 [shape = 's32[1]{0}', space=sflag, size = 0x4, scoped, tag = 'scoped memory for encoder_forward.1']
    #allocation8 [shape = 'u8[512]{0}', space=vmem, size = 0x400, scoped, tag = 'input window, operand 2, single buffered']
    #allocation9 [shape = 'u8[131072]{0}', space=vmem, size = 0x20000, scoped, tag = 'input window, operand 3, single buffered']
    #allocation10 [shape = 's32[1]{0}', space=sflag, size = 0x4, scoped, tag = 'scoped memory for encoder_forward.1']
    #allocation11 [shape = 'u8[131072]{0}', space=vmem, size = 0x20000, scoped, tag = 'input window, operand 4, single buffered']
    #allocation12 [shape = 'u8[131072]{0}', space=vmem, size = 0x20000, scoped, tag = 'input window, operand 5, single buffered']
    #allocation13 [shape = 's32[1]{0}', space=sflag, size = 0x4, scoped, tag = 'scoped memory for encoder_forward.1']
    #allocation14 [shape = 'u8[32768]{0}', space=vmem, size = 0x8000, scoped, tag = 'input window, operand 8, single buffered']
    #allocation15 [shape = 'u8[131072]{0}', space=vmem, size = 0x20000, scoped, tag = 'input window, operand 9']
    #allocation16 [shape = 's32[2]{0}', space=sflag, size = 0x8, scoped, tag = 'scoped memory for encoder_forward.1']
    #allocation17 [shape = 'u8[65536]{0}', space=vmem, size = 0x10000, scoped, tag = 'input window, operand 10']
    #allocation18 [shape = 'u8[32768]{0}', space=vmem, size = 0x8000, scoped, tag = 'input window, operand 13']
    #allocation19 [shape = 's32[2]{0}', space=sflag, size = 0x8, scoped, tag = 'scoped memory for encoder_forward.1']
    #allocation20 [shape = 'u8[4096]{0}', space=vmem, size = 0x1000, scoped, tag = 'output window, operand 0, single buffered']
    %21 = vsyncpa [#allocation4], 0
    %22 = vsyncpa [#allocation7], 0
    %23 = vsyncpa [#allocation10], 0
    %24 = vsyncpa [#allocation13], 0
    %25 = vsyncpa [#allocation16], 0
    %s26 = scalar_lea.sflag [#allocation16], 1
    %27 = vsyncpa %s26, 0
    %28 = vsyncpa [#allocation19], 0
    %s29 = scalar_lea.sflag [#allocation19], 1
    %30 = vsyncpa %s29, 0
    %31 = vsyncpa [#allocation5], 0
    loop: start=0, step=1, limit=4
    $region2: #{encoder_forward.1} parent=1 // loop_pre_header
      _
    $region3: #{encoder_forward.1} parent=1 // loop_header
      %s33 = sphi 0, %s37
      %p34 = scmp.ge.s32.totalorder %s33, 4
      %s41 = sphi 0, %s41
      %s43 = sphi 0, %s41
      %s44 = sphi 0, %s43
      %s58 = sphi 0, %s44
      %s62 = sphi 0, %s62
      %s64 = sphi 0, %s62
      %s65 = sphi 0, %s64
      %s79 = sphi 0, %s65
      %s83 = sphi 0, %s83
      %s85 = sphi 0, %s83
      %s86 = sphi 0, %s85
      %s100 = sphi 0, %s86
      %s104 = sphi 0, %s104
      %s106 = sphi 0, %s104
      %s107 = sphi 0, %s106
      %s121 = sphi 0, %s107
      %s125 = sphi 0, %s125
      %s127 = sphi 0, %s125
      %s128 = sphi 0, %s127
      %s142 = sphi 0, %s128
      %s146 = sphi 0, %s146
      %s148 = sphi 0, %s146
      %s149 = sphi 0, %s148
      %s163 = sphi 0, %s149
      %s167 = sphi 0, %s167
      %s169 = sphi 0, %s167
      %s170 = sphi 0, %s169
      %s184 = sphi 0, %s170
      %s188 = sphi 0, %s188
      %s190 = sphi 0, %s188
      %s191 = sphi 0, %s190
      %s205 = sphi 0, %s191
      %s209 = sphi 0, %s209
      %s211 = sphi 0, %s209
      %s212 = sphi 0, %s211
      %s226 = sphi 0, %s212
      %s232 = sphi 0, %s234
      %s235 = sphi 0, %s232
      %s236 = sphi 0, %s235
      %s252 = sphi 0, %s236
      %s258 = sphi 0, %s260
      %s261 = sphi 0, %s258
      %s262 = sphi 0, %s261
      %s278 = sphi 0, %s262
      %s284 = sphi 0, %s286
      %s287 = sphi 0, %s284
      %s288 = sphi 0, %s287
      %s304 = sphi 0, %s288
      %s310 = sphi 0, %s312
      %s313 = sphi 0, %s310
      %s314 = sphi 0, %s313
      %s330 = sphi 0, %s314
      %s336 = sphi 0, %s338
      %s339 = sphi 0, %s336
      %s340 = sphi 0, %s339
      %s356 = sphi 0, %s340
      %s360 = sphi 0, %s360
      %s362 = sphi 0, %s360
      %s363 = sphi 0, %s362
      %s377 = sphi 0, %s363
      %s383 = sphi 0, %s385
      %s386 = sphi 0, %s383
      %s387 = sphi 0, %s386
      %s403 = sphi 0, %s387
    $region4: #{encoder_forward.1} parent=1 // loop_header_branch
      %36 = sbr.rel (%p34) target = $region8
    $region5: #{encoder_forward.1} parent=1 // loop_body
      %s38 = ssub.s32 %s33, 1
      %s39 = ssub.s32 %s33, 2
      %s40 = sadd.s32 %s33, 1
      %s42 = sadd.s32 %s41, 1
      %p45 = scmp.eq.s32.totalorder %s33, 1
      %p46 = scmp.ne.s32.totalorder %s41, %s43
      %p47 = scmp.eq.s32.totalorder %s33, 0
      %p48 = por %p46, %p47
      %p49 = scmp.ne.s32.totalorder %s41, %s43
      %p50 = scmp.eq.s32.totalorder %s38, 1
      %p51 = por %p49, %p50
      %p52 = scmp.ne.s32.totalorder %s43, %s44
      %p53 = scmp.eq.s32.totalorder %s38, 0
      %p54 = por %p52, %p53
      %p55 = scmp.ne.s32.totalorder %s43, %s44
      %p56 = scmp.eq.s32.totalorder %s39, 1
      %p57 = por %p55, %p56
      %p59 = scmp.ne.s32.totalorder %s44, %s58
      %p60 = scmp.eq.s32.totalorder %s39, 0
      %p61 = por %p59, %p60
      %s63 = sadd.s32 %s62, 1
      %p66 = scmp.eq.s32.totalorder %s33, 1
      %p67 = scmp.ne.s32.totalorder %s62, %s64
      %p68 = scmp.eq.s32.totalorder %s33, 0
      %p69 = por %p67, %p68
      %p70 = scmp.ne.s32.totalorder %s62, %s64
      %p71 = scmp.eq.s32.totalorder %s38, 1
      %p72 = por %p70, %p71
      %p73 = scmp.ne.s32.totalorder %s64, %s65
      %p74 = scmp.eq.s32.totalorder %s38, 0
      %p75 = por %p73, %p74
      %p76 = scmp.ne.s32.totalorder %s64, %s65
      %p77 = scmp.eq.s32.totalorder %s39, 1
      %p78 = por %p76, %p77
      %p80 = scmp.ne.s32.totalorder %s65, %s79
      %p81 = scmp.eq.s32.totalorder %s39, 0
      %p82 = por %p80, %p81
      %s84 = sadd.s32 %s83, 1
      %p87 = scmp.eq.s32.totalorder %s33, 1
      %p88 = scmp.ne.s32.totalorder %s83, %s85
      %p89 = scmp.eq.s32.totalorder %s33, 0
      %p90 = por %p88, %p89
      %p91 = scmp.ne.s32.totalorder %s83, %s85
      %p92 = scmp.eq.s32.totalorder %s38, 1
      %p93 = por %p91, %p92
      %p94 = scmp.ne.s32.totalorder %s85, %s86
      %p95 = scmp.eq.s32.totalorder %s38, 0
      %p96 = por %p94, %p95
      %p97 = scmp.ne.s32.totalorder %s85, %s86
      %p98 = scmp.eq.s32.totalorder %s39, 1
      %p99 = por %p97, %p98
      %p101 = scmp.ne.s32.totalorder %s86, %s100
      %p102 = scmp.eq.s32.totalorder %s39, 0
      %p103 = por %p101, %p102
      %s105 = sadd.s32 %s104, 1
      %p108 = scmp.eq.s32.totalorder %s33, 1
      %p109 = scmp.ne.s32.totalorder %s104, %s106
      %p110 = scmp.eq.s32.totalorder %s33, 0
      %p111 = por %p109, %p110
      %p112 = scmp.ne.s32.totalorder %s104, %s106
      %p113 = scmp.eq.s32.totalorder %s38, 1
      %p114 = por %p112, %p113
      %p115 = scmp.ne.s32.totalorder %s106, %s107
      %p116 = scmp.eq.s32.totalorder %s38, 0
      %p117 = por %p115, %p116
      %p118 = scmp.ne.s32.totalorder %s106, %s107
      %p119 = scmp.eq.s32.totalorder %s39, 1
      %p120 = por %p118, %p119
      %p122 = scmp.ne.s32.totalorder %s107, %s121
      %p123 = scmp.eq.s32.totalorder %s39, 0
      %p124 = por %p122, %p123
      %s126 = sadd.s32 %s125, 1
      %p129 = scmp.eq.s32.totalorder %s33, 1
      %p130 = scmp.ne.s32.totalorder %s125, %s127
      %p131 = scmp.eq.s32.totalorder %s33, 0
      %p132 = por %p130, %p131
      %p133 = scmp.ne.s32.totalorder %s125, %s127
      %p134 = scmp.eq.s32.totalorder %s38, 1
      %p135 = por %p133, %p134
      %p136 = scmp.ne.s32.totalorder %s127, %s128
      %p137 = scmp.eq.s32.totalorder %s38, 0
      %p138 = por %p136, %p137
      %p139 = scmp.ne.s32.totalorder %s127, %s128
      %p140 = scmp.eq.s32.totalorder %s39, 1
      %p141 = por %p139, %p140
      %p143 = scmp.ne.s32.totalorder %s128, %s142
      %p144 = scmp.eq.s32.totalorder %s39, 0
      %p145 = por %p143, %p144
      %s147 = sadd.s32 %s146, 1
      %p150 = scmp.eq.s32.totalorder %s33, 1
      %p151 = scmp.ne.s32.totalorder %s146, %s148
      %p152 = scmp.eq.s32.totalorder %s33, 0
      %p153 = por %p151, %p152
      %p154 = scmp.ne.s32.totalorder %s146, %s148
      %p155 = scmp.eq.s32.totalorder %s38, 1
      %p156 = por %p154, %p155
      %p157 = scmp.ne.s32.totalorder %s148, %s149
      %p158 = scmp.eq.s32.totalorder %s38, 0
      %p159 = por %p157, %p158
      %p160 = scmp.ne.s32.totalorder %s148, %s149
      %p161 = scmp.eq.s32.totalorder %s39, 1
      %p162 = por %p160, %p161
      %p164 = scmp.ne.s32.totalorder %s149, %s163
      %p165 = scmp.eq.s32.totalorder %s39, 0
      %p166 = por %p164, %p165
      %s168 = sadd.s32 %s167, 1
      %p171 = scmp.eq.s32.totalorder %s33, 1
      %p172 = scmp.ne.s32.totalorder %s167, %s169
      %p173 = scmp.eq.s32.totalorder %s33, 0
      %p174 = por %p172, %p173
      %p175 = scmp.ne.s32.totalorder %s167, %s169
      %p176 = scmp.eq.s32.totalorder %s38, 1
      %p177 = por %p175, %p176
      %p178 = scmp.ne.s32.totalorder %s169, %s170
      %p179 = scmp.eq.s32.totalorder %s38, 0
      %p180 = por %p178, %p179
      %p181 = scmp.ne.s32.totalorder %s169, %s170
      %p182 = scmp.eq.s32.totalorder %s39, 1
      %p183 = por %p181, %p182
      %p185 = scmp.ne.s32.totalorder %s170, %s184
      %p186 = scmp.eq.s32.totalorder %s39, 0
      %p187 = por %p185, %p186
      %s189 = sadd.s32 %s188, 1
      %p192 = scmp.eq.s32.totalorder %s33, 1
      %p193 = scmp.ne.s32.totalorder %s188, %s190
      %p194 = scmp.eq.s32.totalorder %s33, 0
      %p195 = por %p193, %p194
      %p196 = scmp.ne.s32.totalorder %s188, %s190
      %p197 = scmp.eq.s32.totalorder %s38, 1
      %p198 = por %p196, %p197
      %p199 = scmp.ne.s32.totalorder %s190, %s191
      %p200 = scmp.eq.s32.totalorder %s38, 0
      %p201 = por %p199, %p200
      %p202 = scmp.ne.s32.totalorder %s190, %s191
      %p203 = scmp.eq.s32.totalorder %s39, 1
      %p204 = por %p202, %p203
      %p206 = scmp.ne.s32.totalorder %s191, %s205
      %p207 = scmp.eq.s32.totalorder %s39, 0
      %p208 = por %p206, %p207
      %s210 = sadd.s32 %s209, 1
      %p213 = scmp.eq.s32.totalorder %s33, 1
      %p214 = scmp.ne.s32.totalorder %s209, %s211
      %p215 = scmp.eq.s32.totalorder %s33, 0
      %p216 = por %p214, %p215
      %p217 = scmp.ne.s32.totalorder %s209, %s211
      %p218 = scmp.eq.s32.totalorder %s38, 1
      %p219 = por %p217, %p218
      %p220 = scmp.ne.s32.totalorder %s211, %s212
      %p221 = scmp.eq.s32.totalorder %s38, 0
      %p222 = por %p220, %p221
      %p223 = scmp.ne.s32.totalorder %s211, %s212
      %p224 = scmp.eq.s32.totalorder %s39, 1
      %p225 = por %p223, %p224
      %p227 = scmp.ne.s32.totalorder %s212, %s226
      %p228 = scmp.eq.s32.totalorder %s39, 0
      %p229 = por %p227, %p228
      %s230 = ssub.s32 %s33, %s40
      %p231 = scmp.eq.s32.totalorder %s230, 0
      %s233 = sadd.s32 %s232, 1
      %s234 = scalar_select %p231, %s232, %s233
      %p237 = pneg %p231
      %p238 = scmp.eq.s32.totalorder %s33, 1
      %p239 = por %p237, %p238
      %p240 = scmp.ne.s32.totalorder %s232, %s235
      %p241 = scmp.eq.s32.totalorder %s33, 0
      %p242 = por %p240, %p241
      %p243 = scmp.ne.s32.totalorder %s232, %s235
      %p244 = scmp.eq.s32.totalorder %s38, 1
      %p245 = por %p243, %p244
      %p246 = scmp.ne.s32.totalorder %s235, %s236
      %p247 = scmp.eq.s32.totalorder %s38, 0
      %p248 = por %p246, %p247
      %p249 = scmp.ne.s32.totalorder %s235, %s236
      %p250 = scmp.eq.s32.totalorder %s39, 1
      %p251 = por %p249, %p250
      %p253 = scmp.ne.s32.totalorder %s236, %s252
      %p254 = scmp.eq.s32.totalorder %s39, 0
      %p255 = por %p253, %p254
      %s256 = ssub.s32 %s33, %s40
      %p257 = scmp.eq.s32.totalorder %s256, 0
      %s259 = sadd.s32 %s258, 1
      %s260 = scalar_select %p257, %s258, %s259
      %p263 = pneg %p257
      %p264 = scmp.eq.s32.totalorder %s33, 1
      %p265 = por %p263, %p264
      %p266 = scmp.ne.s32.totalorder %s258, %s261
      %p267 = scmp.eq.s32.totalorder %s33, 0
      %p268 = por %p266, %p267
      %p269 = scmp.ne.s32.totalorder %s258, %s261
      %p270 = scmp.eq.s32.totalorder %s38, 1
      %p271 = por %p269, %p270
      %p272 = scmp.ne.s32.totalorder %s261, %s262
      %p273 = scmp.eq.s32.totalorder %s38, 0
      %p274 = por %p272, %p273
      %p275 = scmp.ne.s32.totalorder %s261, %s262
      %p276 = scmp.eq.s32.totalorder %s39, 1
      %p277 = por %p275, %p276
      %p279 = scmp.ne.s32.totalorder %s262, %s278
      %p280 = scmp.eq.s32.totalorder %s39, 0
      %p281 = por %p279, %p280
      %s282 = ssub.s32 %s33, %s40
      %p283 = scmp.eq.s32.totalorder %s282, 0
      %s285 = sadd.s32 %s284, 1
      %s286 = scalar_select %p283, %s284, %s285
      %p289 = pneg %p283
      %p290 = scmp.eq.s32.totalorder %s33, 1
      %p291 = por %p289, %p290
      %p292 = scmp.ne.s32.totalorder %s284, %s287
      %p293 = scmp.eq.s32.totalorder %s33, 0
      %p294 = por %p292, %p293
      %p295 = scmp.ne.s32.totalorder %s284, %s287
      %p296 = scmp.eq.s32.totalorder %s38, 1
      %p297 = por %p295, %p296
      %p298 = scmp.ne.s32.totalorder %s287, %s288
      %p299 = scmp.eq.s32.totalorder %s38, 0
      %p300 = por %p298, %p299
      %p301 = scmp.ne.s32.totalorder %s287, %s288
      %p302 = scmp.eq.s32.totalorder %s39, 1
      %p303 = por %p301, %p302
      %p305 = scmp.ne.s32.totalorder %s288, %s304
      %p306 = scmp.eq.s32.totalorder %s39, 0
      %p307 = por %p305, %p306
      %s308 = ssub.s32 %s33, %s40
      %p309 = scmp.eq.s32.totalorder %s308, 0
      %s311 = sadd.s32 %s310, 1
      %s312 = scalar_select %p309, %s310, %s311
      %p315 = pneg %p309
      %p316 = scmp.eq.s32.totalorder %s33, 1
      %p317 = por %p315, %p316
      %p318 = scmp.ne.s32.totalorder %s310, %s313
      %p319 = scmp.eq.s32.totalorder %s33, 0
      %p320 = por %p318, %p319
      %p321 = scmp.ne.s32.totalorder %s310, %s313
      %p322 = scmp.eq.s32.totalorder %s38, 1
      %p323 = por %p321, %p322
      %p324 = scmp.ne.s32.totalorder %s313, %s314
      %p325 = scmp.eq.s32.totalorder %s38, 0
      %p326 = por %p324, %p325
      %p327 = scmp.ne.s32.totalorder %s313, %s314
      %p328 = scmp.eq.s32.totalorder %s39, 1
      %p329 = por %p327, %p328
      %p331 = scmp.ne.s32.totalorder %s314, %s330
      %p332 = scmp.eq.s32.totalorder %s39, 0
      %p333 = por %p331, %p332
      %s334 = ssub.s32 %s33, %s40
      %p335 = scmp.eq.s32.totalorder %s334, 0
      %s337 = sadd.s32 %s336, 1
      %s338 = scalar_select %p335, %s336, %s337
      %p341 = pneg %p335
      %p342 = scmp.eq.s32.totalorder %s33, 1
      %p343 = por %p341, %p342
      %p344 = scmp.ne.s32.totalorder %s336, %s339
      %p345 = scmp.eq.s32.totalorder %s33, 0
      %p346 = por %p344, %p345
      %p347 = scmp.ne.s32.totalorder %s336, %s339
      %p348 = scmp.eq.s32.totalorder %s38, 1
      %p349 = por %p347, %p348
      %p350 = scmp.ne.s32.totalorder %s339, %s340
      %p351 = scmp.eq.s32.totalorder %s38, 0
      %p352 = por %p350, %p351
      %p353 = scmp.ne.s32.totalorder %s339, %s340
      %p354 = scmp.eq.s32.totalorder %s39, 1
      %p355 = por %p353, %p354
      %p357 = scmp.ne.s32.totalorder %s340, %s356
      %p358 = scmp.eq.s32.totalorder %s39, 0
      %p359 = por %p357, %p358
      %s361 = sadd.s32 %s360, 1
      %p364 = scmp.eq.s32.totalorder %s33, 1
      %p365 = scmp.ne.s32.totalorder %s360, %s362
      %p366 = scmp.eq.s32.totalorder %s33, 0
      %p367 = por %p365, %p366
      %p368 = scmp.ne.s32.totalorder %s360, %s362
      %p369 = scmp.eq.s32.totalorder %s38, 1
      %p370 = por %p368, %p369
      %p371 = scmp.ne.s32.totalorder %s362, %s363
      %p372 = scmp.eq.s32.totalorder %s38, 0
      %p373 = por %p371, %p372
      %p374 = scmp.ne.s32.totalorder %s362, %s363
      %p375 = scmp.eq.s32.totalorder %s39, 1
      %p376 = por %p374, %p375
      %p378 = scmp.ne.s32.totalorder %s363, %s377
      %p379 = scmp.eq.s32.totalorder %s39, 0
      %p380 = por %p378, %p379
      %s381 = ssub.s32 %s33, %s40
      %p382 = scmp.eq.s32.totalorder %s381, 0
      %s384 = sadd.s32 %s383, 1
      %s385 = scalar_select %p382, %s383, %s384
      %p388 = pneg %p382
      %p389 = scmp.eq.s32.totalorder %s33, 1
      %p390 = por %p388, %p389
      %p391 = scmp.ne.s32.totalorder %s383, %s386
      %p392 = scmp.eq.s32.totalorder %s33, 0
      %p393 = por %p391, %p392
      %p394 = scmp.ne.s32.totalorder %s383, %s386
      %p395 = scmp.eq.s32.totalorder %s38, 1
      %p396 = por %p394, %p395
      %p397 = scmp.ne.s32.totalorder %s386, %s387
      %p398 = scmp.eq.s32.totalorder %s38, 0
      %p399 = por %p397, %p398
      %p400 = scmp.ne.s32.totalorder %s386, %s387
      %p401 = scmp.eq.s32.totalorder %s39, 1
      %p402 = por %p400, %p401
      %p404 = scmp.ne.s32.totalorder %s387, %s403
      %p405 = scmp.eq.s32.totalorder %s39, 0
      %p406 = por %p404, %p405
      %p407 = scmp.le.s32.totalorder 1, %s33
      %p408 = scmp.lt.s32.totalorder %s33, 3
      %p409 = pnand %p407, %p408
      %p410 = pneg %p409
      // Predicated region
      $region9: #{encoder_forward.1} parent=5 // pred_check
        _
      $region10: #{encoder_forward.1} parent=5 // pred_check_branch
        %412 = sbr.rel (%p409) target = $region12
      $region11: #{encoder_forward.1} parent=5 // pred_region
        %s413 = ssub.s32 %s33, 1
        // Predicated region
        $region13: #{encoder_forward.1} parent=11 // pred_check
          %p414 = pneg %p54
        $region14: #{encoder_forward.1} parent=11 // pred_check_branch
          %416 = sbr.rel (%p414) target = $region16
        $region15: #{encoder_forward.1} parent=11 // pred_region
          %s418 = ssub.s32 128, 128
          %419 = vsyncadd [#allocation4], %s418
          %s421 = sshll.u32 [#allocation3], 4
          %s422 = int_to_ptr.vmem [resolvable:$true] %s421
          %424 = dma.hbm_to_vmem [thread:$0]  %s0, 128, %s422, [#allocation4]
        $region16: #{encoder_forward.1} parent=11 // pred_fallthru
          _
        // Predicated region
        $region17: #{encoder_forward.1} parent=11 // pred_check
          %p425 = pneg %p75
        $region18: #{encoder_forward.1} parent=11 // pred_check_branch
          %427 = sbr.rel (%p425) target = $region20
        $region19: #{encoder_forward.1} parent=11 // pred_region
          %s429 = ssub.s32 256, 256
          %430 = vsyncadd [#allocation7], %s429
          %s431 = sshll.u32 [#allocation6], 4
          %s432 = int_to_ptr.vmem [resolvable:$true] %s431
          %437 = dma.hbm_to_vmem [thread:$0]  %s1, 256, %s432, [#allocation7], 128, 128, 8
        $region20: #{encoder_forward.1} parent=11 // pred_fallthru
          _
        // Predicated region
        $region21: #{encoder_forward.1} parent=11 // pred_check
          %p438 = pneg %p96
        $region22: #{encoder_forward.1} parent=11 // pred_check_branch
          %440 = sbr.rel (%p438) target = $region24
        $region23: #{encoder_forward.1} parent=11 // pred_region
          %s442 = ssub.s32 16, 16
          %443 = vsyncadd [#allocation7], %s442
          %s445 = sshll.u32 [#allocation8], 4
          %s446 = int_to_ptr.vmem [resolvable:$true] %s445
          %448 = dma.hbm_to_vmem [thread:$0]  %s2, 16, %s446, [#allocation7]
        $region24: #{encoder_forward.1} parent=11 // pred_fallthru
          _
        // Predicated region
        $region25: #{encoder_forward.1} parent=11 // pred_check
          %p449 = pneg %p117
        $region26: #{encoder_forward.1} parent=11 // pred_check_branch
          %451 = sbr.rel (%p449) target = $region28
        $region27: #{encoder_forward.1} parent=11 // pred_region
          %s453 = ssub.s32 4096, 4096
          %454 = vsyncadd [#allocation10], %s453
          %s455 = sshll.u32 [#allocation9], 4
          %s456 = int_to_ptr.vmem [resolvable:$true] %s455
          %461 = dma.hbm_to_vmem [thread:$0]  %s3, 4096, %s456, [#allocation10], 512, 512, 32
        $region28: #{encoder_forward.1} parent=11 // pred_fallthru
          _
        // Predicated region
        $region29: #{encoder_forward.1} parent=11 // pred_check
          %p462 = pneg %p138
        $region30: #{encoder_forward.1} parent=11 // pred_check_branch
          %464 = sbr.rel (%p462) target = $region32
        $region31: #{encoder_forward.1} parent=11 // pred_region
          %s466 = ssub.s32 4096, 4096
          %467 = vsyncadd [#allocation10], %s466
          %s468 = sshll.u32 [#allocation11], 4
          %s469 = int_to_ptr.vmem [resolvable:$true] %s468
          %474 = dma.hbm_to_vmem [thread:$0]  %s4, 4096, %s469, [#allocation10], 512, 512, 32
        $region32: #{encoder_forward.1} parent=11 // pred_fallthru
          _
        // Predicated region
        $region33: #{encoder_forward.1} parent=11 // pred_check
          %p475 = pneg %p159
        $region34: #{encoder_forward.1} parent=11 // pred_check_branch
          %477 = sbr.rel (%p475) target = $region36
        $region35: #{encoder_forward.1} parent=11 // pred_region
          %s479 = ssub.s32 4096, 4096
          %480 = vsyncadd [#allocation13], %s479
          %s481 = sshll.u32 [#allocation12], 4
          %s482 = int_to_ptr.vmem [resolvable:$true] %s481
          %487 = dma.hbm_to_vmem [thread:$0]  %s5, 4096, %s482, [#allocation13], 512, 512, 32
        $region36: #{encoder_forward.1} parent=11 // pred_fallthru
          _
        // Predicated region
        $region37: #{encoder_forward.1} parent=11 // pred_check
          %p488 = pneg %p180
        $region38: #{encoder_forward.1} parent=11 // pred_check_branch
          %490 = sbr.rel (%p488) target = $region40
        $region39: #{encoder_forward.1} parent=11 // pred_region
          _
        $region40: #{encoder_forward.1} parent=11 // pred_fallthru
          _
        // Predicated region
        $region41: #{encoder_forward.1} parent=11 // pred_check
          %p491 = pneg %p201
        $region42: #{encoder_forward.1} parent=11 // pred_check_branch
          %493 = sbr.rel (%p491) target = $region44
        $region43: #{encoder_forward.1} parent=11 // pred_region
          _
        $region44: #{encoder_forward.1} parent=11 // pred_fallthru
          _
        // Predicated region
        $region45: #{encoder_forward.1} parent=11 // pred_check
          %p494 = pneg %p222
        $region46: #{encoder_forward.1} parent=11 // pred_check_branch
          %496 = sbr.rel (%p494) target = $region48
        $region47: #{encoder_forward.1} parent=11 // pred_region
          %s498 = ssub.s32 1024, 1024
          %499 = vsyncadd [#allocation13], %s498
          %s500 = sshll.u32 [#allocation14], 4
          %s501 = int_to_ptr.vmem [resolvable:$true] %s500
          %506 = dma.hbm_to_vmem [thread:$0]  %s8, 1024, %s501, [#allocation13], 128, 128, 8
        $region48: #{encoder_forward.1} parent=11 // pred_fallthru
          _
      $region12: #{encoder_forward.1} parent=5 // pred_fallthru
        _
      %p507 = scmp.lt.s32.totalorder %s33, 2
      // Predicated region
      $region49: #{encoder_forward.1} parent=5 // pred_check
        %p508 = pneg %p507
      $region50: #{encoder_forward.1} parent=5 // pred_check_branch
        %510 = sbr.rel (%p508) target = $region52
      $region51: #{encoder_forward.1} parent=5 // pred_region
        // Predicated region
        $region53: #{encoder_forward.1} parent=51 // pred_check
          %p511 = pneg %p242
        $region54: #{encoder_forward.1} parent=51 // pred_check_branch
          %513 = sbr.rel (%p511) target = $region56
        $region55: #{encoder_forward.1} parent=51 // pred_region
          %s514 = sand.u32 %s33, 1
          %s515 = scalar_lea.sflag [#allocation16], %s514
          %s516 = sand.u32 %s232, 1
          %s517 = smul.addr %s516, 128
          %s518 = scalar_lea.vmem [#allocation15], %s517
          %s520 = ssub.s32 2048, 2048
          %521 = vsyncadd %s515, %s520
          %s522 = smul.addr %s33, 16
          %s523 = smul.addr %s522, 128
          %s524 = scalar_lea.hbm %s9, %s523
          %s525 = sshll.u32 %s518, 4
          %s526 = int_to_ptr.vmem [resolvable:$true] %s525
          %531 = dma.hbm_to_vmem [thread:$0]  %s524, 2048, %s526, %s515, 256, 256, 16
        $region56: #{encoder_forward.1} parent=51 // pred_fallthru
          _
        // Predicated region
        $region57: #{encoder_forward.1} parent=51 // pred_check
          %p532 = pneg %p268
        $region58: #{encoder_forward.1} parent=51 // pred_check_branch
          %534 = sbr.rel (%p532) target = $region60
        $region59: #{encoder_forward.1} parent=51 // pred_region
          %s535 = sand.u32 %s33, 1
          %s536 = scalar_lea.sflag [#allocation16], %s535
          %s537 = sand.u32 %s258, 1
          %s538 = smul.addr %s537, 64
          %s539 = scalar_lea.vmem [#allocation17], %s538
          %s541 = ssub.s32 1024, 1024
          %542 = vsyncadd %s536, %s541
          %s543 = smul.addr %s33, 8
          %s544 = smul.addr %s543, 128
          %s545 = scalar_lea.hbm %s10, %s544
          %s546 = sshll.u32 %s539, 4
          %s547 = int_to_ptr.vmem [resolvable:$true] %s546
          %552 = dma.hbm_to_vmem [thread:$0]  %s545, 1024, %s547, %s536, 128, 128, 8
        $region60: #{encoder_forward.1} parent=51 // pred_fallthru
          _
        // Predicated region
        $region61: #{encoder_forward.1} parent=51 // pred_check
          %p553 = pneg %p294
        $region62: #{encoder_forward.1} parent=51 // pred_check_branch
          %555 = sbr.rel (%p553) target = $region64
        $region63: #{encoder_forward.1} parent=51 // pred_region
          %p556 = scmp.lt.s32.totalorder %s33, 1
          %s557 = scalar_select %p556, %s33, 1
          %s558 = smul.addr %s557, 32
          %s559 = smul.addr %s558, 8
          %s560 = scalar_lea.vmem %s11, %s559
        $region64: #{encoder_forward.1} parent=51 // pred_fallthru
          _
        // Predicated region
        $region65: #{encoder_forward.1} parent=51 // pred_check
          %p561 = pneg %p320
        $region66: #{encoder_forward.1} parent=51 // pred_check_branch
          %563 = sbr.rel (%p561) target = $region68
        $region67: #{encoder_forward.1} parent=51 // pred_region
          %p564 = scmp.lt.s32.totalorder %s33, 1
          %s565 = scalar_select %p564, %s33, 1
          %s566 = smul.addr %s565, 64
          %s567 = smul.addr %s566, 8
          %s568 = scalar_lea.vmem %s12, %s567
        $region68: #{encoder_forward.1} parent=51 // pred_fallthru
          _
        // Predicated region
        $region69: #{encoder_forward.1} parent=51 // pred_check
          %p569 = pneg %p346
        $region70: #{encoder_forward.1} parent=51 // pred_check_branch
          %571 = sbr.rel (%p569) target = $region72
        $region71: #{encoder_forward.1} parent=51 // pred_region
          %s572 = sand.u32 %s336, 1
          %s573 = scalar_lea.sflag [#allocation19], %s572
          %s574 = sand.u32 %s336, 1
          %s575 = smul.addr %s574, 32
          %s576 = scalar_lea.vmem [#allocation18], %s575
          %s578 = ssub.s32 512, 512
          %579 = vsyncadd %s573, %s578
          %s580 = smul.addr %s33, 4
          %s581 = smul.addr %s580, 128
          %s582 = scalar_lea.hbm %s13, %s581
          %s584 = sshll.u32 %s576, 4
          %s585 = int_to_ptr.vmem [resolvable:$true] %s584
          %587 = dma.hbm_to_vmem [thread:$0]  %s582, 512, %s585, %s573
        $region72: #{encoder_forward.1} parent=51 // pred_fallthru
          _
      $region52: #{encoder_forward.1} parent=5 // pred_fallthru
        _
      %p588 = scmp.le.s32.totalorder 1, %s33
      %p589 = scmp.lt.s32.totalorder %s33, 3
      %p590 = pnand %p588, %p589
      %p591 = pneg %p590
      // Predicated region
      $region73: #{encoder_forward.1} parent=5 // pred_check
        _
      $region74: #{encoder_forward.1} parent=5 // pred_check_branch
        %593 = sbr.rel (%p590) target = $region76
      $region75: #{encoder_forward.1} parent=5 // pred_region
        %s594 = ssub.s32 %s33, 1
        // Predicated region
        $region77: #{encoder_forward.1} parent=75 // pred_check
          %p595 = pneg %p54
        $region78: #{encoder_forward.1} parent=75 // pred_check_branch
          %597 = sbr.rel (%p595) target = $region80
        $region79: #{encoder_forward.1} parent=75 // pred_region
          %598 = dma.done [#allocation4], 128
        $region80: #{encoder_forward.1} parent=75 // pred_fallthru
          _
        // Predicated region
        $region81: #{encoder_forward.1} parent=75 // pred_check
          %p599 = pneg %p75
        $region82: #{encoder_forward.1} parent=75 // pred_check_branch
          %601 = sbr.rel (%p599) target = $region84
        $region83: #{encoder_forward.1} parent=75 // pred_region
          %602 = dma.done [#allocation7], 256
        $region84: #{encoder_forward.1} parent=75 // pred_fallthru
          _
        // Predicated region
        $region85: #{encoder_forward.1} parent=75 // pred_check
          %p603 = pneg %p96
        $region86: #{encoder_forward.1} parent=75 // pred_check_branch
          %605 = sbr.rel (%p603) target = $region88
        $region87: #{encoder_forward.1} parent=75 // pred_region
          %606 = dma.done [#allocation7], 16
        $region88: #{encoder_forward.1} parent=75 // pred_fallthru
          _
        // Predicated region
        $region89: #{encoder_forward.1} parent=75 // pred_check
          %p607 = pneg %p117
        $region90: #{encoder_forward.1} parent=75 // pred_check_branch
          %609 = sbr.rel (%p607) target = $region92
        $region91: #{encoder_forward.1} parent=75 // pred_region
          %610 = dma.done [#allocation10], 4096
        $region92: #{encoder_forward.1} parent=75 // pred_fallthru
          _
        // Predicated region
        $region93: #{encoder_forward.1} parent=75 // pred_check
          %p611 = pneg %p138
        $region94: #{encoder_forward.1} parent=75 // pred_check_branch
          %613 = sbr.rel (%p611) target = $region96
        $region95: #{encoder_forward.1} parent=75 // pred_region
          %614 = dma.done [#allocation10], 4096
        $region96: #{encoder_forward.1} parent=75 // pred_fallthru
          _
        // Predicated region
        $region97: #{encoder_forward.1} parent=75 // pred_check
          %p615 = pneg %p159
        $region98: #{encoder_forward.1} parent=75 // pred_check_branch
          %617 = sbr.rel (%p615) target = $region100
        $region99: #{encoder_forward.1} parent=75 // pred_region
          %618 = dma.done [#allocation13], 4096
        $region100: #{encoder_forward.1} parent=75 // pred_fallthru
          _
        // Predicated region
        $region101: #{encoder_forward.1} parent=75 // pred_check
          %p619 = pneg %p222
        $region102: #{encoder_forward.1} parent=75 // pred_check_branch
          %621 = sbr.rel (%p619) target = $region104
        $region103: #{encoder_forward.1} parent=75 // pred_region
          %622 = dma.done [#allocation13], 1024
        $region104: #{encoder_forward.1} parent=75 // pred_fallthru
          _
        %s623 = sand.u32 %s38, 1
        %s624 = scalar_lea.sflag [#allocation16], %s623
        %s625 = sand.u32 %s235, 1
        %s626 = smul.addr %s625, 128
        %s627 = scalar_lea.vmem [#allocation15], %s626
        // Predicated region
        $region105: #{encoder_forward.1} parent=75 // pred_check
          %p628 = pneg %p248
        $region106: #{encoder_forward.1} parent=75 // pred_check_branch
          %630 = sbr.rel (%p628) target = $region108
        $region107: #{encoder_forward.1} parent=75 // pred_region
          %631 = dma.done %s624, 2048
        $region108: #{encoder_forward.1} parent=75 // pred_fallthru
          _
        %s632 = sand.u32 %s38, 1
        %s633 = scalar_lea.sflag [#allocation16], %s632
        %s634 = sand.u32 %s261, 1
        %s635 = smul.addr %s634, 64
        %s636 = scalar_lea.vmem [#allocation17], %s635
        // Predicated region
        $region109: #{encoder_forward.1} parent=75 // pred_check
          %p637 = pneg %p274
        $region110: #{encoder_forward.1} parent=75 // pred_check_branch
          %639 = sbr.rel (%p637) target = $region112
        $region111: #{encoder_forward.1} parent=75 // pred_region
          %640 = dma.done %s633, 1024
        $region112: #{encoder_forward.1} parent=75 // pred_fallthru
          _
        %s641 = sand.u32 %s339, 1
        %s642 = scalar_lea.sflag [#allocation19], %s641
        %s643 = sand.u32 %s339, 1
        %s644 = smul.addr %s643, 32
        %s645 = scalar_lea.vmem [#allocation18], %s644
        // Predicated region
        $region113: #{encoder_forward.1} parent=75 // pred_check
          %p646 = pneg %p352
        $region114: #{encoder_forward.1} parent=75 // pred_check_branch
          %648 = sbr.rel (%p646) target = $region116
        $region115: #{encoder_forward.1} parent=75 // pred_region
          %649 = dma.done %s642, 512
        $region116: #{encoder_forward.1} parent=75 // pred_fallthru
          _
        %p650 = pneg %p54
        %p651 = pneg %p51
        %p652 = pneg %p75
        %p653 = pneg %p72
        %p654 = pneg %p96
        %p655 = pneg %p93
        %p656 = pneg %p117
        %p657 = pneg %p114
        %p658 = pneg %p138
        %p659 = pneg %p135
        %p660 = pneg %p159
        %p661 = pneg %p156
        %p662 = pneg %p180
        %p663 = pneg %p177
        %p664 = pneg %p201
        %p665 = pneg %p198
        %p666 = pneg %p222
        %p667 = pneg %p219
        %s668 = sand.u32 %s38, 1
        %s669 = scalar_lea.sflag [#allocation16], %s668
        %s670 = sand.u32 %s235, 1
        %s671 = smul.addr %s670, 128
        %s672 = scalar_lea.vmem [#allocation15], %s671
        %p673 = pneg %p248
        %p674 = pneg %p245
        %s675 = sand.u32 %s38, 1
        %s676 = scalar_lea.sflag [#allocation16], %s675
        %s677 = sand.u32 %s261, 1
        %s678 = smul.addr %s677, 64
        %s679 = scalar_lea.vmem [#allocation17], %s678
        %p680 = pneg %p274
        %p681 = pneg %p271
        %p682 = scmp.lt.s32.totalorder %s38, 1
        %s683 = scalar_select %p682, %s38, 1
        %s684 = smul.addr %s683, 32
        %s685 = smul.addr %s684, 8
        %s686 = scalar_lea.vmem %s11, %s685
        %p687 = pneg %p300
        %p688 = pneg %p297
        %p689 = scmp.lt.s32.totalorder %s38, 1
        %s690 = scalar_select %p689, %s38, 1
        %s691 = smul.addr %s690, 64
        %s692 = smul.addr %s691, 8
        %s693 = scalar_lea.vmem %s12, %s692
        %p694 = pneg %p326
        %p695 = pneg %p323
        %s696 = sand.u32 %s339, 1
        %s697 = scalar_lea.sflag [#allocation19], %s696
        %s698 = sand.u32 %s339, 1
        %s699 = smul.addr %s698, 32
        %s700 = scalar_lea.vmem [#allocation18], %s699
        %p701 = pneg %p352
        %p702 = pneg %p349
        %p703 = pneg %p373
        %p704 = pneg %p370
        %p705 = pneg %p399
        %p706 = pneg %p396
        %p707 = scmp.lt.s32.totalorder %s38, 1
        %s708 = scalar_select %p707, %s38, 1
        %s709 = smul.addr %s708, 8
        %s710 = scalar_lea.vmem %s15, %s709
        %p711 = scmp.lt.s32.totalorder %s38, 1
        %s712 = scalar_select %p711, %s38, 1
        %s713 = smul.addr %s712, 32
        %s714 = smul.addr %s713, 8
        %s715 = scalar_lea.vmem %s11, %s714
        %p716 = scmp.lt.s32.totalorder %s38, 1
        %s717 = scalar_select %p716, %s38, 1
        %s718 = smul.addr %s717, 64
        %s719 = smul.addr %s718, 8
        %s720 = scalar_lea.vmem %s12, %s719
        %p721 = scmp.lt.s32.totalorder %s38, 1
        %s722 = scalar_select %p721, %s38, 1
        %s723 = smul.addr %s722, 8
        %s724 = scalar_lea.vmem %s15, %s723
        %p725 = scmp.eq.s32.totalorder %s38, 0
        // Predicated region
        $region117: #{encoder_forward.1} parent=75 // pred_check
          %p726 = pneg %p725
        $region118: #{encoder_forward.1} parent=75 // pred_check_branch
          %728 = sbr.rel (%p726) target = $region120
        $region119: #{encoder_forward.1} parent=75 // pred_region
          %v729 = vld [vmem:[#allocation3] sm:$0xff]
          %v730 = vld [vmem:[#allocation6] sm:$0xff]
          %v731 = vld [vmem:[#allocation6 + $0x8] sm:$0xff]
          %v732 = vld [vmem:[#allocation8] sm:$0x1]
          %v734 = vlaneseq
          %v735 = vshrl.u32 %v734, 7
          %v736 = vsub.s32 0, %v735
          %v737 = vrot.slane %v732, %v736
          %vm739 = vcmask 130048
          %v741 = vsel %vm739, %v729, 0
          %743 = vmatprep.subr.mxu0 0.0
          %744 = vmatpush1.msra.mxu0 %v730
          %745 = vmatprep.subr.mxu0 0.0
          %746 = vmatpush1.msra.mxu0 %v731
          %747 = vmatprep.subr.mxu0 0.0
          %748 = vmatpush1.msra.mxu0 0.0
          %749 = vmatprep.subr.mxu0 0.0
          %750 = vmatpush1.msra.mxu0 0.0
          %751 = vmatprep.subr.mxu0 0.0
          %752 = vmatpush1.msra.mxu0 0.0
          %753 = vmatprep.subr.mxu0 0.0
          %754 = vmatpush1.msra.mxu0 0.0
          %755 = vmatprep.subr.mxu0 0.0
          %756 = vmatpush1.msra.mxu0 0.0
          %757 = vmatprep.subr.mxu0 0.0
          %758 = vmatpush1.msra.mxu0 0.0
          %759 = vmatprep.subr.mxu0 0.0
          %760 = vmatpush1.msra.mxu0 0.0
          %761 = vmatprep.subr.mxu0 0.0
          %762 = vmatpush1.msra.mxu0 0.0
          %763 = vmatprep.subr.mxu0 0.0
          %764 = vmatpush1.msra.mxu0 0.0
          %765 = vmatprep.subr.mxu0 0.0
          %766 = vmatpush1.msra.mxu0 0.0
          %767 = vmatprep.subr.mxu0 0.0
          %768 = vmatpush1.msra.mxu0 0.0
          %769 = vmatprep.subr.mxu0 0.0
          %770 = vmatpush1.msra.mxu0 0.0
          %771 = vmatprep.subr.mxu0 0.0
          %772 = vmatpush1.msra.mxu0 0.0
          %773 = vmatprep.subr.mxu0 0.0
          %774 = vmatpush1.msra.mxu0 0.0
          %775 = vmatprep.subr.mxu0 0.0
          %776 = vmatpush1.msra.mxu0 0.0
          %777 = vmatprep.subr.mxu0 0.0
          %778 = vmatpush1.msra.mxu0 0.0
          %779 = vmatprep.subr.mxu0 0.0
          %780 = vmatpush1.msra.mxu0 0.0
          %781 = vmatprep.subr.mxu0 0.0
          %782 = vmatpush1.msra.mxu0 0.0
          %783 = vmatprep.subr.mxu0 0.0
          %784 = vmatpush1.msra.mxu0 0.0
          %785 = vmatprep.subr.mxu0 0.0
          %786 = vmatpush1.msra.mxu0 0.0
          %787 = vmatprep.subr.mxu0 0.0
          %788 = vmatpush1.msra.mxu0 0.0
          %789 = vmatprep.subr.mxu0 0.0
          %790 = vmatpush1.msra.mxu0 0.0
          %791 = vmatprep.subr.mxu0 0.0
          %792 = vmatpush1.msra.mxu0 0.0
          %793 = vmatprep.subr.mxu0 0.0
          %794 = vmatpush1.msra.mxu0 0.0
          %795 = vmatprep.subr.mxu0 0.0
          %796 = vmatpush1.msra.mxu0 0.0
          %797 = vmatprep.subr.mxu0 0.0
          %798 = vmatpush1.msra.mxu0 0.0
          %799 = vmatprep.subr.mxu0 0.0
          %800 = vmatpush1.msra.mxu0 0.0
          %801 = vmatprep.subr.mxu0 0.0
          %802 = vmatpush1.msra.mxu0 0.0
          %803 = vmatprep.subr.mxu0 0.0
          %804 = vmatpush1.msra.mxu0 0.0
          %805 = vmatprep.subr.mxu0 0.0
          %806 = vmatpush1.msra.mxu0 0.0
          %807 = vmatprep.mubr.f32.mxu0 0.0
          %808 = vmatmul.mubr.f32.gmra.mrb[0].mxu0 %v741
          %v809 = vpop.f32.mrb[0].mxu0
          %v810 = vadd.f32 %v737, %v809
          %v811 = vpop.f32.mrb[0].mxu0
          %812 = vdwg.mxu0
          %vm813 = vcmask 523264
          %814 = vst.msk [vmem:[#allocation2] sm:$0xff] %vm813, %v810
        $region120: #{encoder_forward.1} parent=75 // pred_fallthru
          _
        %v815 = vld [vmem:[#allocation2] sm:$0xff]
        %v816 = vld [vmem:[%s627] sm:$0xff]
        %v817 = vld [vmem:[%s627 + $0x8] sm:$0xff]
        %v818 = vld [vmem:[%s627 + $0x10] sm:$0xff]
        %v819 = vld [vmem:[%s627 + $0x18] sm:$0xff]
        %v820 = vld [vmem:[%s627 + $0x20] sm:$0xff]
        %v821 = vld [vmem:[%s627 + $0x28] sm:$0xff]
        %v822 = vld [vmem:[%s627 + $0x30] sm:$0xff]
        %v823 = vld [vmem:[%s627 + $0x38] sm:$0xff]
        %v824 = vld [vmem:[%s627 + $0x40] sm:$0xff]
        %v825 = vld [vmem:[%s627 + $0x48] sm:$0xff]
        %v826 = vld [vmem:[%s627 + $0x50] sm:$0xff]
        %v827 = vld [vmem:[%s627 + $0x58] sm:$0xff]
        %v828 = vld [vmem:[%s627 + $0x60] sm:$0xff]
        %v829 = vld [vmem:[%s627 + $0x68] sm:$0xff]
        %v830 = vld [vmem:[%s627 + $0x70] sm:$0xff]
        %v831 = vld [vmem:[%s627 + $0x78] sm:$0xff]
        %v832 = vld [vmem:[%s645] ss:$8 sm:$0x3]
        %v834 = vlaneseq
        %v835 = vshrl.u32 %v834, 7
        %v836 = vsub.s32 0, %v835
        %v837 = vrot.slane %v832, %v836
        %v838 = vlaneseq
        %v839 = vshrl.u32 %v838, 7
        %v840 = vsub.s32 1, %v839
        %v841 = vrot.slane %v832, %v840
        %vm844 = vcmask 523264
        %v846 = vsel %vm844, %v815, 0
        %848 = vmatprep.subr.mxu0 %v817
        %849 = vmatpush1.msra.mxu0 %v816
        %850 = vmatprep.subr.mxu0 %v819
        %851 = vmatpush1.msra.mxu0 %v818
        %852 = vmatprep.subr.mxu0 %v821
        %853 = vmatpush1.msra.mxu0 %v820
        %854 = vmatprep.subr.mxu0 %v823
        %855 = vmatpush1.msra.mxu0 %v822
        %856 = vmatprep.subr.mxu0 %v825
        %857 = vmatpush1.msra.mxu0 %v824
        %858 = vmatprep.subr.mxu0 %v827
        %859 = vmatpush1.msra.mxu0 %v826
        %860 = vmatprep.subr.mxu0 %v829
        %861 = vmatpush1.msra.mxu0 %v828
        %862 = vmatprep.subr.mxu0 %v831
        %863 = vmatpush1.msra.mxu0 %v830
        %864 = vmatprep.subr.mxu0 0.0
        %865 = vmatpush1.msra.mxu0 0.0
        %866 = vmatprep.subr.mxu0 0.0
        %867 = vmatpush1.msra.mxu0 0.0
        %868 = vmatprep.subr.mxu0 0.0
        %869 = vmatpush1.msra.mxu0 0.0
        %870 = vmatprep.subr.mxu0 0.0
        %871 = vmatpush1.msra.mxu0 0.0
        %872 = vmatprep.subr.mxu0 0.0
        %873 = vmatpush1.msra.mxu0 0.0
        %874 = vmatprep.subr.mxu0 0.0
        %875 = vmatpush1.msra.mxu0 0.0
        %876 = vmatprep.subr.mxu0 0.0
        %877 = vmatpush1.msra.mxu0 0.0
        %878 = vmatprep.subr.mxu0 0.0
        %879 = vmatpush1.msra.mxu0 0.0
        %880 = vmatprep.subr.mxu0 0.0
        %881 = vmatpush1.msra.mxu0 0.0
        %882 = vmatprep.subr.mxu0 0.0
        %883 = vmatpush1.msra.mxu0 0.0
        %884 = vmatprep.subr.mxu0 0.0
        %885 = vmatpush1.msra.mxu0 0.0
        %886 = vmatprep.subr.mxu0 0.0
        %887 = vmatpush1.msra.mxu0 0.0
        %888 = vmatprep.subr.mxu0 0.0
        %889 = vmatpush1.msra.mxu0 0.0
        %890 = vmatprep.subr.mxu0 0.0
        %891 = vmatpush1.msra.mxu0 0.0
        %892 = vmatprep.subr.mxu0 0.0
        %893 = vmatpush1.msra.mxu0 0.0
        %894 = vmatprep.subr.mxu0 0.0
        %895 = vmatpush1.msra.mxu0 0.0
        %896 = vmatprep.subr.mxu0 0.0
        %897 = vmatpush1.msra.mxu0 0.0
        %898 = vmatprep.subr.mxu0 0.0
        %899 = vmatpush1.msra.mxu0 0.0
        %900 = vmatprep.subr.mxu0 0.0
        %901 = vmatpush1.msra.mxu0 0.0
        %902 = vmatprep.subr.mxu0 0.0
        %903 = vmatpush1.msra.mxu0 0.0
        %904 = vmatprep.subr.mxu0 0.0
        %905 = vmatpush1.msra.mxu0 0.0
        %906 = vmatprep.subr.mxu0 0.0
        %907 = vmatpush1.msra.mxu0 0.0
        %908 = vmatprep.subr.mxu0 0.0
        %909 = vmatpush1.msra.mxu0 0.0
        %910 = vmatprep.subr.mxu0 0.0
        %911 = vmatpush1.msra.mxu0 0.0
        %912 = vmatprep.mubr.f32.mxu0 0.0
        %913 = vmatmul.mubr.f32.gmra.mrb[0].mxu0 %v846
        %v914 = vpop.f32.mrb[0].mxu0
        %v915 = vadd.f32 %v837, %v914
        %v916 = vpop.f32.mrb[0].mxu0
        %v917 = vadd.f32 %v841, %v916
        %918 = vdwg.mxu0
        %v919 = vld [vmem:[#allocation9] sm:$0xff]
        %v920 = vld [vmem:[#allocation9 + $0x8] sm:$0xff]
        %v921 = vld [vmem:[#allocation9 + $0x10] sm:$0xff]
        %v922 = vld [vmem:[#allocation9 + $0x18] sm:$0xff]
        %v923 = vld [vmem:[#allocation9 + $0x20] sm:$0xff]
        %v924 = vld [vmem:[#allocation9 + $0x28] sm:$0xff]
        %v925 = vld [vmem:[#allocation9 + $0x30] sm:$0xff]
        %v926 = vld [vmem:[#allocation9 + $0x38] sm:$0xff]
        %v927 = vld [vmem:[#allocation9 + $0x40] sm:$0xff]
        %v928 = vld [vmem:[#allocation9 + $0x48] sm:$0xff]
        %v929 = vld [vmem:[#allocation9 + $0x50] sm:$0xff]
        %v930 = vld [vmem:[#allocation9 + $0x58] sm:$0xff]
        %v931 = vld [vmem:[#allocation9 + $0x60] sm:$0xff]
        %v932 = vld [vmem:[#allocation9 + $0x68] sm:$0xff]
        %v933 = vld [vmem:[#allocation9 + $0x70] sm:$0xff]
        %v934 = vld [vmem:[#allocation9 + $0x78] sm:$0xff]
        %v935 = vld [vmem:[#allocation9 + $0x80] sm:$0xff]
        %v936 = vld [vmem:[#allocation9 + $0x88] sm:$0xff]
        %v937 = vld [vmem:[#allocation9 + $0x90] sm:$0xff]
        %v938 = vld [vmem:[#allocation9 + $0x98] sm:$0xff]
        %v939 = vld [vmem:[#allocation9 + $0xa0] sm:$0xff]
        %v940 = vld [vmem:[#allocation9 + $0xa8] sm:$0xff]
        %v941 = vld [vmem:[#allocation9 + $0xb0] sm:$0xff]
        %v942 = vld [vmem:[#allocation9 + $0xb8] sm:$0xff]
        %v943 = vld [vmem:[#allocation9 + $0xc0] sm:$0xff]
        %v944 = vld [vmem:[#allocation9 + $0xc8] sm:$0xff]
        %v945 = vld [vmem:[#allocation9 + $0xd0] sm:$0xff]
        %v946 = vld [vmem:[#allocation9 + $0xd8] sm:$0xff]
        %v947 = vld [vmem:[#allocation9 + $0xe0] sm:$0xff]
        %v948 = vld [vmem:[#allocation9 + $0xe8] sm:$0xff]
        %v949 = vld [vmem:[#allocation9 + $0xf0] sm:$0xff]
        %v950 = vld [vmem:[#allocation9 + $0xf8] sm:$0xff]
        %v952 = vsel %vm844, %v915, 0
        %954 = vmatprep.subr.mxu0 %v920
        %955 = vmatpush1.msra.mxu0 %v919
        %956 = vmatprep.subr.mxu0 %v924
        %957 = vmatpush1.msra.mxu0 %v923
        %958 = vmatprep.subr.mxu0 %v928
        %959 = vmatpush1.msra.mxu0 %v927
        %960 = vmatprep.subr.mxu0 %v932
        %961 = vmatpush1.msra.mxu0 %v931
        %962 = vmatprep.subr.mxu0 %v936
        %963 = vmatpush1.msra.mxu0 %v935
        %964 = vmatprep.subr.mxu0 %v940
        %965 = vmatpush1.msra.mxu0 %v939
        %966 = vmatprep.subr.mxu0 %v944
        %967 = vmatpush1.msra.mxu0 %v943
        %968 = vmatprep.subr.mxu0 %v948
        %969 = vmatpush1.msra.mxu0 %v947
        %970 = vmatprep.subr.mxu0 0.0
        %971 = vmatpush1.msra.mxu0 0.0
        %972 = vmatprep.subr.mxu0 0.0
        %973 = vmatpush1.msra.mxu0 0.0
        %974 = vmatprep.subr.mxu0 0.0
        %975 = vmatpush1.msra.mxu0 0.0
        %976 = vmatprep.subr.mxu0 0.0
        %977 = vmatpush1.msra.mxu0 0.0
        %978 = vmatprep.subr.mxu0 0.0
        %979 = vmatpush1.msra.mxu0 0.0
        %980 = vmatprep.subr.mxu0 0.0
        %981 = vmatpush1.msra.mxu0 0.0
        %982 = vmatprep.subr.mxu0 0.0
        %983 = vmatpush1.msra.mxu0 0.0
        %984 = vmatprep.subr.mxu0 0.0
        %985 = vmatpush1.msra.mxu0 0.0
        %986 = vmatprep.subr.mxu0 0.0
        %987 = vmatpush1.msra.mxu0 0.0
        %988 = vmatprep.subr.mxu0 0.0
        %989 = vmatpush1.msra.mxu0 0.0
        %990 = vmatprep.subr.mxu0 0.0
        %991 = vmatpush1.msra.mxu0 0.0
        %992 = vmatprep.subr.mxu0 0.0
        %993 = vmatpush1.msra.mxu0 0.0
        %994 = vmatprep.subr.mxu0 0.0
        %995 = vmatpush1.msra.mxu0 0.0
        %996 = vmatprep.subr.mxu0 0.0
        %997 = vmatpush1.msra.mxu0 0.0
        %998 = vmatprep.subr.mxu0 0.0
        %999 = vmatpush1.msra.mxu0 0.0
        %1000 = vmatprep.subr.mxu0 0.0
        %1001 = vmatpush1.msra.mxu0 0.0
        %1002 = vmatprep.subr.mxu0 0.0
        %1003 = vmatpush1.msra.mxu0 0.0
        %1004 = vmatprep.subr.mxu0 0.0
        %1005 = vmatpush1.msra.mxu0 0.0
        %1006 = vmatprep.subr.mxu0 0.0
        %1007 = vmatpush1.msra.mxu0 0.0
        %1008 = vmatprep.subr.mxu0 0.0
        %1009 = vmatpush1.msra.mxu0 0.0
        %1010 = vmatprep.subr.mxu0 0.0
        %1011 = vmatpush1.msra.mxu0 0.0
        %1012 = vmatprep.subr.mxu0 0.0
        %1013 = vmatpush1.msra.mxu0 0.0
        %1014 = vmatprep.subr.mxu0 0.0
        %1015 = vmatpush1.msra.mxu0 0.0
        %1016 = vmatprep.subr.mxu0 0.0
        %1017 = vmatpush1.msra.mxu0 0.0
        %1018 = vmatprep.mubr.f32.mxu0 0.0
        %1019 = vmatmul.mubr.f32.gmra.mrb[0].mxu0 %v952
        %v1020 = vpop.f32.mrb[0].mxu0
        %v1021 = vadd.f32 0.0, %v1020
        %v1022 = vpop.f32.mrb[0].mxu0
        %v1023 = vadd.f32 0.0, %v1022
        %1024 = vdwg.mxu0
        %1025 = vmatprep.subr.mxu0 %v922
        %1026 = vmatpush1.msra.mxu0 %v921
        %1027 = vmatprep.subr.mxu0 %v926
        %1028 = vmatpush1.msra.mxu0 %v925
        %1029 = vmatprep.subr.mxu0 %v930
        %1030 = vmatpush1.msra.mxu0 %v929
        %1031 = vmatprep.subr.mxu0 %v934
        %1032 = vmatpush1.msra.mxu0 %v933
        %1033 = vmatprep.subr.mxu0 %v938
        %1034 = vmatpush1.msra.mxu0 %v937
        %1035 = vmatprep.subr.mxu0 %v942
        %1036 = vmatpush1.msra.mxu0 %v941
        %1037 = vmatprep.subr.mxu0 %v946
        %1038 = vmatpush1.msra.mxu0 %v945
        %1039 = vmatprep.subr.mxu0 %v950
        %1040 = vmatpush1.msra.mxu0 %v949
        %1041 = vmatprep.subr.mxu0 0.0
        %1042 = vmatpush1.msra.mxu0 0.0
        %1043 = vmatprep.subr.mxu0 0.0
        %1044 = vmatpush1.msra.mxu0 0.0
        %1045 = vmatprep.subr.mxu0 0.0
        %1046 = vmatpush1.msra.mxu0 0.0
        %1047 = vmatprep.subr.mxu0 0.0
        %1048 = vmatpush1.msra.mxu0 0.0
        %1049 = vmatprep.subr.mxu0 0.0
        %1050 = vmatpush1.msra.mxu0 0.0
        %1051 = vmatprep.subr.mxu0 0.0
        %1052 = vmatpush1.msra.mxu0 0.0
        %1053 = vmatprep.subr.mxu0 0.0
        %1054 = vmatpush1.msra.mxu0 0.0
        %1055 = vmatprep.subr.mxu0 0.0
        %1056 = vmatpush1.msra.mxu0 0.0
        %1057 = vmatprep.subr.mxu0 0.0
        %1058 = vmatpush1.msra.mxu0 0.0
        %1059 = vmatprep.subr.mxu0 0.0
        %1060 = vmatpush1.msra.mxu0 0.0
        %1061 = vmatprep.subr.mxu0 0.0
        %1062 = vmatpush1.msra.mxu0 0.0
        %1063 = vmatprep.subr.mxu0 0.0
        %1064 = vmatpush1.msra.mxu0 0.0
        %1065 = vmatprep.subr.mxu0 0.0
        %1066 = vmatpush1.msra.mxu0 0.0
        %1067 = vmatprep.subr.mxu0 0.0
        %1068 = vmatpush1.msra.mxu0 0.0
        %1069 = vmatprep.subr.mxu0 0.0
        %1070 = vmatpush1.msra.mxu0 0.0
        %1071 = vmatprep.subr.mxu0 0.0
        %1072 = vmatpush1.msra.mxu0 0.0
        %1073 = vmatprep.subr.mxu0 0.0
        %1074 = vmatpush1.msra.mxu0 0.0
        %1075 = vmatprep.subr.mxu0 0.0
        %1076 = vmatpush1.msra.mxu0 0.0
        %1077 = vmatprep.subr.mxu0 0.0
        %1078 = vmatpush1.msra.mxu0 0.0
        %1079 = vmatprep.subr.mxu0 0.0
        %1080 = vmatpush1.msra.mxu0 0.0
        %1081 = vmatprep.subr.mxu0 0.0
        %1082 = vmatpush1.msra.mxu0 0.0
        %1083 = vmatprep.subr.mxu0 0.0
        %1084 = vmatpush1.msra.mxu0 0.0
        %1085 = vmatprep.subr.mxu0 0.0
        %1086 = vmatpush1.msra.mxu0 0.0
        %1087 = vmatprep.subr.mxu0 0.0
        %1088 = vmatpush1.msra.mxu0 0.0
        %1089 = vmatprep.mubr.f32.mxu0 0.0
        %1090 = vmatmul.mubr.f32.gmra.mrb[0].mxu0 %v952
        %v1091 = vpop.f32.mrb[0].mxu0
        %v1092 = vadd.f32 0.0, %v1091
        %v1093 = vpop.f32.mrb[0].mxu0
        %v1094 = vadd.f32 0.0, %v1093
        %1095 = vdwg.mxu0
        %v1096 = vld [vmem:[#allocation11] sm:$0xff]
        %v1097 = vld [vmem:[#allocation11 + $0x8] sm:$0xff]
        %v1098 = vld [vmem:[#allocation11 + $0x10] sm:$0xff]
        %v1099 = vld [vmem:[#allocation11 + $0x18] sm:$0xff]
        %v1100 = vld [vmem:[#allocation11 + $0x20] sm:$0xff]
        %v1101 = vld [vmem:[#allocation11 + $0x28] sm:$0xff]
        %v1102 = vld [vmem:[#allocation11 + $0x30] sm:$0xff]
        %v1103 = vld [vmem:[#allocation11 + $0x38] sm:$0xff]
        %v1104 = vld [vmem:[#allocation11 + $0x40] sm:$0xff]
        %v1105 = vld [vmem:[#allocation11 + $0x48] sm:$0xff]
        %v1106 = vld [vmem:[#allocation11 + $0x50] sm:$0xff]
        %v1107 = vld [vmem:[#allocation11 + $0x58] sm:$0xff]
        %v1108 = vld [vmem:[#allocation11 + $0x60] sm:$0xff]
        %v1109 = vld [vmem:[#allocation11 + $0x68] sm:$0xff]
        %v1110 = vld [vmem:[#allocation11 + $0x70] sm:$0xff]
        %v1111 = vld [vmem:[#allocation11 + $0x78] sm:$0xff]
        %v1112 = vld [vmem:[#allocation11 + $0x80] sm:$0xff]
        %v1113 = vld [vmem:[#allocation11 + $0x88] sm:$0xff]
        %v1114 = vld [vmem:[#allocation11 + $0x90] sm:$0xff]
        %v1115 = vld [vmem:[#allocation11 + $0x98] sm:$0xff]
        %v1116 = vld [vmem:[#allocation11 + $0xa0] sm:$0xff]
        %v1117 = vld [vmem:[#allocation11 + $0xa8] sm:$0xff]
        %v1118 = vld [vmem:[#allocation11 + $0xb0] sm:$0xff]
        %v1119 = vld [vmem:[#allocation11 + $0xb8] sm:$0xff]
        %v1120 = vld [vmem:[#allocation11 + $0xc0] sm:$0xff]
        %v1121 = vld [vmem:[#allocation11 + $0xc8] sm:$0xff]
        %v1122 = vld [vmem:[#allocation11 + $0xd0] sm:$0xff]
        %v1123 = vld [vmem:[#allocation11 + $0xd8] sm:$0xff]
        %v1124 = vld [vmem:[#allocation11 + $0xe0] sm:$0xff]
        %v1125 = vld [vmem:[#allocation11 + $0xe8] sm:$0xff]
        %v1126 = vld [vmem:[#allocation11 + $0xf0] sm:$0xff]
        %v1127 = vld [vmem:[#allocation11 + $0xf8] sm:$0xff]
        %1128 = vrot.lane.b32.xlu0 %v915, 64
        %v1129 = vpop.permute.xlu0 %1128
        %v1130 = vsel %vm844, %v1129, 0
        %1132 = vmatprep.subr.mxu0 %v1097
        %1133 = vmatpush1.msra.mxu0 %v1096
        %1134 = vmatprep.subr.mxu0 %v1101
        %1135 = vmatpush1.msra.mxu0 %v1100
        %1136 = vmatprep.subr.mxu0 %v1105
        %1137 = vmatpush1.msra.mxu0 %v1104
        %1138 = vmatprep.subr.mxu0 %v1109
        %1139 = vmatpush1.msra.mxu0 %v1108
        %1140 = vmatprep.subr.mxu0 %v1113
        %1141 = vmatpush1.msra.mxu0 %v1112
        %1142 = vmatprep.subr.mxu0 %v1117
        %1143 = vmatpush1.msra.mxu0 %v1116
        %1144 = vmatprep.subr.mxu0 %v1121
        %1145 = vmatpush1.msra.mxu0 %v1120
        %1146 = vmatprep.subr.mxu0 %v1125
        %1147 = vmatpush1.msra.mxu0 %v1124
        %1148 = vmatprep.subr.mxu0 0.0
        %1149 = vmatpush1.msra.mxu0 0.0
        %1150 = vmatprep.subr.mxu0 0.0
        %1151 = vmatpush1.msra.mxu0 0.0
        %1152 = vmatprep.subr.mxu0 0.0
        %1153 = vmatpush1.msra.mxu0 0.0
        %1154 = vmatprep.subr.mxu0 0.0
        %1155 = vmatpush1.msra.mxu0 0.0
        %1156 = vmatprep.subr.mxu0 0.0
        %1157 = vmatpush1.msra.mxu0 0.0
        %1158 = vmatprep.subr.mxu0 0.0
        %1159 = vmatpush1.msra.mxu0 0.0
        %1160 = vmatprep.subr.mxu0 0.0
        %1161 = vmatpush1.msra.mxu0 0.0
        %1162 = vmatprep.subr.mxu0 0.0
        %1163 = vmatpush1.msra.mxu0 0.0
        %1164 = vmatprep.subr.mxu0 0.0
        %1165 = vmatpush1.msra.mxu0 0.0
        %1166 = vmatprep.subr.mxu0 0.0
        %1167 = vmatpush1.msra.mxu0 0.0
        %1168 = vmatprep.subr.mxu0 0.0
        %1169 = vmatpush1.msra.mxu0 0.0
        %1170 = vmatprep.subr.mxu0 0.0
        %1171 = vmatpush1.msra.mxu0 0.0
        %1172 = vmatprep.subr.mxu0 0.0
        %1173 = vmatpush1.msra.mxu0 0.0
        %1174 = vmatprep.subr.mxu0 0.0
        %1175 = vmatpush1.msra.mxu0 0.0
        %1176 = vmatprep.subr.mxu0 0.0
        %1177 = vmatpush1.msra.mxu0 0.0
        %1178 = vmatprep.subr.mxu0 0.0
        %1179 = vmatpush1.msra.mxu0 0.0
        %1180 = vmatprep.subr.mxu0 0.0
        %1181 = vmatpush1.msra.mxu0 0.0
        %1182 = vmatprep.subr.mxu0 0.0
        %1183 = vmatpush1.msra.mxu0 0.0
        %1184 = vmatprep.subr.mxu0 0.0
        %1185 = vmatpush1.msra.mxu0 0.0
        %1186 = vmatprep.subr.mxu0 0.0
        %1187 = vmatpush1.msra.mxu0 0.0
        %1188 = vmatprep.subr.mxu0 0.0
        %1189 = vmatpush1.msra.mxu0 0.0
        %1190 = vmatprep.subr.mxu0 0.0
        %1191 = vmatpush1.msra.mxu0 0.0
        %1192 = vmatprep.subr.mxu0 0.0
        %1193 = vmatpush1.msra.mxu0 0.0
        %1194 = vmatprep.subr.mxu0 0.0
        %1195 = vmatpush1.msra.mxu0 0.0
        %1196 = vmatprep.mubr.f32.mxu0 0.0
        %1197 = vmatmul.mubr.f32.gmra.mrb[0].mxu0 %v1130
        %v1198 = vpop.f32.mrb[0].mxu0
        %v1199 = vadd.f32 0.0, %v1198
        %v1200 = vpop.f32.mrb[0].mxu0
        %v1201 = vadd.f32 0.0, %v1200
        %1202 = vdwg.mxu0
        %1203 = vmatprep.subr.mxu0 %v1099
        %1204 = vmatpush1.msra.mxu0 %v1098
        %1205 = vmatprep.subr.mxu0 %v1103
        %1206 = vmatpush1.msra.mxu0 %v1102
        %1207 = vmatprep.subr.mxu0 %v1107
        %1208 = vmatpush1.msra.mxu0 %v1106
        %1209 = vmatprep.subr.mxu0 %v1111
        %1210 = vmatpush1.msra.mxu0 %v1110
        %1211 = vmatprep.subr.mxu0 %v1115
        %1212 = vmatpush1.msra.mxu0 %v1114
        %1213 = vmatprep.subr.mxu0 %v1119
        %1214 = vmatpush1.msra.mxu0 %v1118
        %1215 = vmatprep.subr.mxu0 %v1123
        %1216 = vmatpush1.msra.mxu0 %v1122
        %1217 = vmatprep.subr.mxu0 %v1127
        %1218 = vmatpush1.msra.mxu0 %v1126
        %1219 = vmatprep.subr.mxu0 0.0
        %1220 = vmatpush1.msra.mxu0 0.0
        %1221 = vmatprep.subr.mxu0 0.0
        %1222 = vmatpush1.msra.mxu0 0.0
        %1223 = vmatprep.subr.mxu0 0.0
        %1224 = vmatpush1.msra.mxu0 0.0
        %1225 = vmatprep.subr.mxu0 0.0
        %1226 = vmatpush1.msra.mxu0 0.0
        %1227 = vmatprep.subr.mxu0 0.0
        %1228 = vmatpush1.msra.mxu0 0.0
        %1229 = vmatprep.subr.mxu0 0.0
        %1230 = vmatpush1.msra.mxu0 0.0
        %1231 = vmatprep.subr.mxu0 0.0
        %1232 = vmatpush1.msra.mxu0 0.0
        %1233 = vmatprep.subr.mxu0 0.0
        %1234 = vmatpush1.msra.mxu0 0.0
        %1235 = vmatprep.subr.mxu0 0.0
        %1236 = vmatpush1.msra.mxu0 0.0
        %1237 = vmatprep.subr.mxu0 0.0
        %1238 = vmatpush1.msra.mxu0 0.0
        %1239 = vmatprep.subr.mxu0 0.0
        %1240 = vmatpush1.msra.mxu0 0.0
        %1241 = vmatprep.subr.mxu0 0.0
        %1242 = vmatpush1.msra.mxu0 0.0
        %1243 = vmatprep.subr.mxu0 0.0
        %1244 = vmatpush1.msra.mxu0 0.0
        %1245 = vmatprep.subr.mxu0 0.0
        %1246 = vmatpush1.msra.mxu0 0.0
        %1247 = vmatprep.subr.mxu0 0.0
        %1248 = vmatpush1.msra.mxu0 0.0
        %1249 = vmatprep.subr.mxu0 0.0
        %1250 = vmatpush1.msra.mxu0 0.0
        %1251 = vmatprep.subr.mxu0 0.0
        %1252 = vmatpush1.msra.mxu0 0.0
        %1253 = vmatprep.subr.mxu0 0.0
        %1254 = vmatpush1.msra.mxu0 0.0
        %1255 = vmatprep.subr.mxu0 0.0
        %1256 = vmatpush1.msra.mxu0 0.0
        %1257 = vmatprep.subr.mxu0 0.0
        %1258 = vmatpush1.msra.mxu0 0.0
        %1259 = vmatprep.subr.mxu0 0.0
        %1260 = vmatpush1.msra.mxu0 0.0
        %1261 = vmatprep.subr.mxu0 0.0
        %1262 = vmatpush1.msra.mxu0 0.0
        %1263 = vmatprep.subr.mxu0 0.0
        %1264 = vmatpush1.msra.mxu0 0.0
        %1265 = vmatprep.subr.mxu0 0.0
        %1266 = vmatpush1.msra.mxu0 0.0
        %1267 = vmatprep.mubr.f32.mxu0 0.0
        %1268 = vmatmul.mubr.f32.gmra.mrb[0].mxu0 %v1130
        %v1269 = vpop.f32.mrb[0].mxu0
        %v1270 = vadd.f32 0.0, %v1269
        %v1271 = vpop.f32.mrb[0].mxu0
        %v1272 = vadd.f32 0.0, %v1271
        %1273 = vdwg.mxu0
        %v1274 = vmul.f32 %v1021, %v1199
        %v1275 = vmul.f32 %v1023, %v1201
        %v1276 = vmul.f32 %v1092, %v1270
        %v1277 = vmul.f32 %v1094, %v1272
        %v1278 = vld [vmem:[%s6] sm:$0xff]
        %v1279 = vld [vmem:[%s6 + $0x8] sm:$0xff]
        %v1280 = vld [vmem:[%s6 + $0x10] sm:$0xff]
        %v1281 = vld [vmem:[%s6 + $0x18] sm:$0xff]
        %v1282 = vld [vmem:[%s6 + $0x20] sm:$0xff]
        %v1283 = vld [vmem:[%s6 + $0x28] sm:$0xff]
        %v1284 = vld [vmem:[%s6 + $0x30] sm:$0xff]
        %v1285 = vld [vmem:[%s6 + $0x38] sm:$0xff]
        %v1286 = vld [vmem:[%s6 + $0x40] sm:$0xff]
        %v1287 = vld [vmem:[%s6 + $0x48] sm:$0xff]
        %v1288 = vld [vmem:[%s6 + $0x50] sm:$0xff]
        %v1289 = vld [vmem:[%s6 + $0x58] sm:$0xff]
        %v1290 = vld [vmem:[%s6 + $0x60] sm:$0xff]
        %v1291 = vld [vmem:[%s6 + $0x68] sm:$0xff]
        %v1292 = vld [vmem:[%s6 + $0x70] sm:$0xff]
        %v1293 = vld [vmem:[%s6 + $0x78] sm:$0xff]
        %v1294 = vld [vmem:[%s6 + $0x80] sm:$0xff]
        %v1295 = vld [vmem:[%s6 + $0x88] sm:$0xff]
        %v1296 = vld [vmem:[%s6 + $0x90] sm:$0xff]
        %v1297 = vld [vmem:[%s6 + $0x98] sm:$0xff]
        %v1298 = vld [vmem:[%s6 + $0xa0] sm:$0xff]
        %v1299 = vld [vmem:[%s6 + $0xa8] sm:$0xff]
        %v1300 = vld [vmem:[%s6 + $0xb0] sm:$0xff]
        %v1301 = vld [vmem:[%s6 + $0xb8] sm:$0xff]
        %v1302 = vld [vmem:[%s6 + $0xc0] sm:$0xff]
        %v1303 = vld [vmem:[%s6 + $0xc8] sm:$0xff]
        %v1304 = vld [vmem:[%s6 + $0xd0] sm:$0xff]
        %v1305 = vld [vmem:[%s6 + $0xd8] sm:$0xff]
        %v1306 = vld [vmem:[%s6 + $0xe0] sm:$0xff]
        %v1307 = vld [vmem:[%s6 + $0xe8] sm:$0xff]
        %v1308 = vld [vmem:[%s6 + $0xf0] sm:$0xff]
        %v1309 = vld [vmem:[%s6 + $0xf8] sm:$0xff]
        %v1310 = vld [vmem:[%s6 + $0x100] sm:$0xff]
        %v1311 = vld [vmem:[%s6 + $0x108] sm:$0xff]
        %v1312 = vld [vmem:[%s6 + $0x110] sm:$0xff]
        %v1313 = vld [vmem:[%s6 + $0x118] sm:$0xff]
        %v1314 = vld [vmem:[%s6 + $0x120] sm:$0xff]
        %v1315 = vld [vmem:[%s6 + $0x128] sm:$0xff]
        %v1316 = vld [vmem:[%s6 + $0x130] sm:$0xff]
        %v1317 = vld [vmem:[%s6 + $0x138] sm:$0xff]
        %v1318 = vld [vmem:[%s6 + $0x140] sm:$0xff]
        %v1319 = vld [vmem:[%s6 + $0x148] sm:$0xff]
        %v1320 = vld [vmem:[%s6 + $0x150] sm:$0xff]
        %v1321 = vld [vmem:[%s6 + $0x158] sm:$0xff]
        %v1322 = vld [vmem:[%s6 + $0x160] sm:$0xff]
        %v1323 = vld [vmem:[%s6 + $0x168] sm:$0xff]
        %v1324 = vld [vmem:[%s6 + $0x170] sm:$0xff]
        %v1325 = vld [vmem:[%s6 + $0x178] sm:$0xff]
        %v1326 = vld [vmem:[%s6 + $0x180] sm:$0xff]
        %v1327 = vld [vmem:[%s6 + $0x188] sm:$0xff]
        %v1328 = vld [vmem:[%s6 + $0x190] sm:$0xff]
        %v1329 = vld [vmem:[%s6 + $0x198] sm:$0xff]
        %v1330 = vld [vmem:[%s6 + $0x1a0] sm:$0xff]
        %v1331 = vld [vmem:[%s6 + $0x1a8] sm:$0xff]
        %v1332 = vld [vmem:[%s6 + $0x1b0] sm:$0xff]
        %v1333 = vld [vmem:[%s6 + $0x1b8] sm:$0xff]
        %v1334 = vld [vmem:[%s6 + $0x1c0] sm:$0xff]
        %v1335 = vld [vmem:[%s6 + $0x1c8] sm:$0xff]
        %v1336 = vld [vmem:[%s6 + $0x1d0] sm:$0xff]
        %v1337 = vld [vmem:[%s6 + $0x1d8] sm:$0xff]
        %v1338 = vld [vmem:[%s6 + $0x1e0] sm:$0xff]
        %v1339 = vld [vmem:[%s6 + $0x1e8] sm:$0xff]
        %v1340 = vld [vmem:[%s6 + $0x1f0] sm:$0xff]
        %v1341 = vld [vmem:[%s6 + $0x1f8] sm:$0xff]
        %1342 = vmatprep.subr.mxu0 0.0
        %1343 = vmatpush1.msra.mxu0 %v1278
        %1344 = vmatprep.subr.mxu0 0.0
        %1345 = vmatpush1.msra.mxu0 %v1279
        %1346 = vmatprep.subr.mxu0 0.0
        %1347 = vmatpush1.msra.mxu0 %v1280
        %1348 = vmatprep.subr.mxu0 0.0
        %1349 = vmatpush1.msra.mxu0 %v1281
        %1350 = vmatprep.subr.mxu0 0.0
        %1351 = vmatpush1.msra.mxu0 %v1282
        %1352 = vmatprep.subr.mxu0 0.0
        %1353 = vmatpush1.msra.mxu0 %v1283
        %1354 = vmatprep.subr.mxu0 0.0
        %1355 = vmatpush1.msra.mxu0 %v1284
        %1356 = vmatprep.subr.mxu0 0.0
        %1357 = vmatpush1.msra.mxu0 %v1285
        %1358 = vmatprep.subr.mxu0 0.0
        %1359 = vmatpush1.msra.mxu0 %v1286
        %1360 = vmatprep.subr.mxu0 0.0
        %1361 = vmatpush1.msra.mxu0 %v1287
        %1362 = vmatprep.subr.mxu0 0.0
        %1363 = vmatpush1.msra.mxu0 %v1288
        %1364 = vmatprep.subr.mxu0 0.0
        %1365 = vmatpush1.msra.mxu0 %v1289
        %1366 = vmatprep.subr.mxu0 0.0
        %1367 = vmatpush1.msra.mxu0 %v1290
        %1368 = vmatprep.subr.mxu0 0.0
        %1369 = vmatpush1.msra.mxu0 %v1291
        %1370 = vmatprep.subr.mxu0 0.0
        %1371 = vmatpush1.msra.mxu0 %v1292
        %1372 = vmatprep.subr.mxu0 0.0
        %1373 = vmatpush1.msra.mxu0 %v1293
        %1374 = vmatprep.subr.mxu0 0.0
        %1375 = vmatpush1.msra.mxu0 %v1294
        %1376 = vmatprep.subr.mxu0 0.0
        %1377 = vmatpush1.msra.mxu0 %v1295
        %1378 = vmatprep.subr.mxu0 0.0
        %1379 = vmatpush1.msra.mxu0 %v1296
        %1380 = vmatprep.subr.mxu0 0.0
        %1381 = vmatpush1.msra.mxu0 %v1297
        %1382 = vmatprep.subr.mxu0 0.0
        %1383 = vmatpush1.msra.mxu0 %v1298
        %1384 = vmatprep.subr.mxu0 0.0
        %1385 = vmatpush1.msra.mxu0 %v1299
        %1386 = vmatprep.subr.mxu0 0.0
        %1387 = vmatpush1.msra.mxu0 %v1300
        %1388 = vmatprep.subr.mxu0 0.0
        %1389 = vmatpush1.msra.mxu0 %v1301
        %1390 = vmatprep.subr.mxu0 0.0
        %1391 = vmatpush1.msra.mxu0 %v1302
        %1392 = vmatprep.subr.mxu0 0.0
        %1393 = vmatpush1.msra.mxu0 %v1303
        %1394 = vmatprep.subr.mxu0 0.0
        %1395 = vmatpush1.msra.mxu0 %v1304
        %1396 = vmatprep.subr.mxu0 0.0
        %1397 = vmatpush1.msra.mxu0 %v1305
        %1398 = vmatprep.subr.mxu0 0.0
        %1399 = vmatpush1.msra.mxu0 %v1306
        %1400 = vmatprep.subr.mxu0 0.0
        %1401 = vmatpush1.msra.mxu0 %v1307
        %1402 = vmatprep.subr.mxu0 0.0
        %1403 = vmatpush1.msra.mxu0 %v1308
        %1404 = vmatprep.subr.mxu0 0.0
        %1405 = vmatpush1.msra.mxu0 %v1309
        %1406 = vmatprep.mubr.f32.mxu0 %v1275
        %1407 = vmatmul.mubr.f32.gmra.mrb[0].mxu0 %v1274
        %v1408 = vpop.f32.mrb[0].mxu0
        %v1409 = vadd.f32 0.0, %v1408
        %v1410 = vpop.f32.mrb[0].mxu0
        %1411 = vdwg.mxu0
        %1412 = vmatprep.subr.mxu0 0.0
        %1413 = vmatpush1.msra.mxu0 %v1310
        %1414 = vmatprep.subr.mxu0 0.0
        %1415 = vmatpush1.msra.mxu0 %v1311
        %1416 = vmatprep.subr.mxu0 0.0
        %1417 = vmatpush1.msra.mxu0 %v1312
        %1418 = vmatprep.subr.mxu0 0.0
        %1419 = vmatpush1.msra.mxu0 %v1313
        %1420 = vmatprep.subr.mxu0 0.0
        %1421 = vmatpush1.msra.mxu0 %v1314
        %1422 = vmatprep.subr.mxu0 0.0
        %1423 = vmatpush1.msra.mxu0 %v1315
        %1424 = vmatprep.subr.mxu0 0.0
        %1425 = vmatpush1.msra.mxu0 %v1316
        %1426 = vmatprep.subr.mxu0 0.0
        %1427 = vmatpush1.msra.mxu0 %v1317
        %1428 = vmatprep.subr.mxu0 0.0
        %1429 = vmatpush1.msra.mxu0 %v1318
        %1430 = vmatprep.subr.mxu0 0.0
        %1431 = vmatpush1.msra.mxu0 %v1319
        %1432 = vmatprep.subr.mxu0 0.0
        %1433 = vmatpush1.msra.mxu0 %v1320
        %1434 = vmatprep.subr.mxu0 0.0
        %1435 = vmatpush1.msra.mxu0 %v1321
        %1436 = vmatprep.subr.mxu0 0.0
        %1437 = vmatpush1.msra.mxu0 %v1322
        %1438 = vmatprep.subr.mxu0 0.0
        %1439 = vmatpush1.msra.mxu0 %v1323
        %1440 = vmatprep.subr.mxu0 0.0
        %1441 = vmatpush1.msra.mxu0 %v1324
        %1442 = vmatprep.subr.mxu0 0.0
        %1443 = vmatpush1.msra.mxu0 %v1325
        %1444 = vmatprep.subr.mxu0 0.0
        %1445 = vmatpush1.msra.mxu0 %v1326
        %1446 = vmatprep.subr.mxu0 0.0
        %1447 = vmatpush1.msra.mxu0 %v1327
        %1448 = vmatprep.subr.mxu0 0.0
        %1449 = vmatpush1.msra.mxu0 %v1328
        %1450 = vmatprep.subr.mxu0 0.0
        %1451 = vmatpush1.msra.mxu0 %v1329
        %1452 = vmatprep.subr.mxu0 0.0
        %1453 = vmatpush1.msra.mxu0 %v1330
        %1454 = vmatprep.subr.mxu0 0.0
        %1455 = vmatpush1.msra.mxu0 %v1331
        %1456 = vmatprep.subr.mxu0 0.0
        %1457 = vmatpush1.msra.mxu0 %v1332
        %1458 = vmatprep.subr.mxu0 0.0
        %1459 = vmatpush1.msra.mxu0 %v1333
        %1460 = vmatprep.subr.mxu0 0.0
        %1461 = vmatpush1.msra.mxu0 %v1334
        %1462 = vmatprep.subr.mxu0 0.0
        %1463 = vmatpush1.msra.mxu0 %v1335
        %1464 = vmatprep.subr.mxu0 0.0
        %1465 = vmatpush1.msra.mxu0 %v1336
        %1466 = vmatprep.subr.mxu0 0.0
        %1467 = vmatpush1.msra.mxu0 %v1337
        %1468 = vmatprep.subr.mxu0 0.0
        %1469 = vmatpush1.msra.mxu0 %v1338
        %1470 = vmatprep.subr.mxu0 0.0
        %1471 = vmatpush1.msra.mxu0 %v1339
        %1472 = vmatprep.subr.mxu0 0.0
        %1473 = vmatpush1.msra.mxu0 %v1340
        %1474 = vmatprep.subr.mxu0 0.0
        %1475 = vmatpush1.msra.mxu0 %v1341
        %1476 = vmatprep.mubr.f32.mxu0 %v1277
        %1477 = vmatmul.mubr.f32.gmra.mrb[0].mxu0 %v1276
        %v1478 = vpop.f32.mrb[0].mxu0
        %v1479 = vadd.f32 %v1409, %v1478
        %v1480 = vpop.f32.mrb[0].mxu0
        %1481 = vdwg.mxu0
        %v1482 = vsel %vm844, %v1479, -inf
        %1483 = vmax.xlane.f32.xlu0 %v1482
        %v1484 = vpop.xlane.xlu0 %1483
        %v1485 = vsub.f32 %v1479, %v1484
        %v1486 = vmul.f32 %v1485, 1.442695
        %v1487 = vpow.pop %v1486
        %v1488 = vld [vmem:[#allocation14] sm:$0xff]
        %v1489 = vld [vmem:[#allocation14 + $0x8] sm:$0xff]
        %v1490 = vld [vmem:[#allocation14 + $0x10] sm:$0xff]
        %v1491 = vld [vmem:[#allocation14 + $0x18] sm:$0xff]
        %v1492 = vld [vmem:[#allocation14 + $0x20] sm:$0xff]
        %v1493 = vld [vmem:[#allocation14 + $0x28] sm:$0xff]
        %v1494 = vld [vmem:[#allocation14 + $0x30] sm:$0xff]
        %v1495 = vld [vmem:[#allocation14 + $0x38] sm:$0xff]
        %v1497 = vsel %vm844, %v1487, 0
        %1499 = vmatprep.subr.mxu0 0.0
        %1500 = vmatpush1.msra.mxu0 %v1488
        %1501 = vmatprep.subr.mxu0 0.0
        %1502 = vmatpush1.msra.mxu0 %v1489
        %1503 = vmatprep.subr.mxu0 0.0
        %1504 = vmatpush1.msra.mxu0 %v1490
        %1505 = vmatprep.subr.mxu0 0.0
        %1506 = vmatpush1.msra.mxu0 %v1491
        %1507 = vmatprep.subr.mxu0 0.0
        %1508 = vmatpush1.msra.mxu0 %v1492
        %1509 = vmatprep.subr.mxu0 0.0
        %1510 = vmatpush1.msra.mxu0 %v1493
        %1511 = vmatprep.subr.mxu0 0.0
        %1512 = vmatpush1.msra.mxu0 %v1494
        %1513 = vmatprep.subr.mxu0 0.0
        %1514 = vmatpush1.msra.mxu0 %v1495
        %1515 = vmatprep.subr.mxu0 0.0
        %1516 = vmatpush1.msra.mxu0 0.0
        %1517 = vmatprep.subr.mxu0 0.0
        %1518 = vmatpush1.msra.mxu0 0.0
        %1519 = vmatprep.subr.mxu0 0.0
        %1520 = vmatpush1.msra.mxu0 0.0
        %1521 = vmatprep.subr.mxu0 0.0
        %1522 = vmatpush1.msra.mxu0 0.0
        %1523 = vmatprep.subr.mxu0 0.0
        %1524 = vmatpush1.msra.mxu0 0.0
        %1525 = vmatprep.subr.mxu0 0.0
        %1526 = vmatpush1.msra.mxu0 0.0
        %1527 = vmatprep.subr.mxu0 0.0
        %1528 = vmatpush1.msra.mxu0 0.0
        %1529 = vmatprep.subr.mxu0 0.0
        %1530 = vmatpush1.msra.mxu0 0.0
        %1531 = vmatprep.subr.mxu0 0.0
        %1532 = vmatpush1.msra.mxu0 0.0
        %1533 = vmatprep.subr.mxu0 0.0
        %1534 = vmatpush1.msra.mxu0 0.0
        %1535 = vmatprep.subr.mxu0 0.0
        %1536 = vmatpush1.msra.mxu0 0.0
        %1537 = vmatprep.subr.mxu0 0.0
        %1538 = vmatpush1.msra.mxu0 0.0
        %1539 = vmatprep.subr.mxu0 0.0
        %1540 = vmatpush1.msra.mxu0 0.0
        %1541 = vmatprep.subr.mxu0 0.0
        %1542 = vmatpush1.msra.mxu0 0.0
        %1543 = vmatprep.subr.mxu0 0.0
        %1544 = vmatpush1.msra.mxu0 0.0
        %1545 = vmatprep.subr.mxu0 0.0
        %1546 = vmatpush1.msra.mxu0 0.0
        %1547 = vmatprep.subr.mxu0 0.0
        %1548 = vmatpush1.msra.mxu0 0.0
        %1549 = vmatprep.subr.mxu0 0.0
        %1550 = vmatpush1.msra.mxu0 0.0
        %1551 = vmatprep.subr.mxu0 0.0
        %1552 = vmatpush1.msra.mxu0 0.0
        %1553 = vmatprep.subr.mxu0 0.0
        %1554 = vmatpush1.msra.mxu0 0.0
        %1555 = vmatprep.subr.mxu0 0.0
        %1556 = vmatpush1.msra.mxu0 0.0
        %1557 = vmatprep.subr.mxu0 0.0
        %1558 = vmatpush1.msra.mxu0 0.0
        %1559 = vmatprep.subr.mxu0 0.0
        %1560 = vmatpush1.msra.mxu0 0.0
        %1561 = vmatprep.subr.mxu0 0.0
        %1562 = vmatpush1.msra.mxu0 0.0
        %1563 = vmatprep.mubr.f32.mxu0 0.0
        %1564 = vmatmul.mubr.f32.gmra.mrb[0].mxu0 %v1497
        %v1565 = vpop.f32.mrb[0].mxu0
        %v1566 = vadd.f32 0.0, %v1565
        %v1567 = vpop.f32.mrb[0].mxu0
        %1568 = vdwg.mxu0
        %v1569 = vrcp.pop %v1566
        %v1570 = vmul.f32 %v1487, %v1569
        %1571 = vst.msk [vmem:[%s724] sm:$0xff] %vm844, %v1570
        %v1572 = vld [vmem:[#allocation12] sm:$0xff]
        %v1573 = vld [vmem:[#allocation12 + $0x8] sm:$0xff]
        %v1574 = vld [vmem:[#allocation12 + $0x10] sm:$0xff]
        %v1575 = vld [vmem:[#allocation12 + $0x18] sm:$0xff]
        %v1576 = vld [vmem:[#allocation12 + $0x20] sm:$0xff]
        %v1577 = vld [vmem:[#allocation12 + $0x28] sm:$0xff]
        %v1578 = vld [vmem:[#allocation12 + $0x30] sm:$0xff]
        %v1579 = vld [vmem:[#allocation12 + $0x38] sm:$0xff]
        %v1580 = vld [vmem:[#allocation12 + $0x40] sm:$0xff]
        %v1581 = vld [vmem:[#allocation12 + $0x48] sm:$0xff]
        %v1582 = vld [vmem:[#allocation12 + $0x50] sm:$0xff]
        %v1583 = vld [vmem:[#allocation12 + $0x58] sm:$0xff]
        %v1584 = vld [vmem:[#allocation12 + $0x60] sm:$0xff]
        %v1585 = vld [vmem:[#allocation12 + $0x68] sm:$0xff]
        %v1586 = vld [vmem:[#allocation12 + $0x70] sm:$0xff]
        %v1587 = vld [vmem:[#allocation12 + $0x78] sm:$0xff]
        %v1588 = vld [vmem:[#allocation12 + $0x80] sm:$0xff]
        %v1589 = vld [vmem:[#allocation12 + $0x88] sm:$0xff]
        %v1590 = vld [vmem:[#allocation12 + $0x90] sm:$0xff]
        %v1591 = vld [vmem:[#allocation12 + $0x98] sm:$0xff]
        %v1592 = vld [vmem:[#allocation12 + $0xa0] sm:$0xff]
        %v1593 = vld [vmem:[#allocation12 + $0xa8] sm:$0xff]
        %v1594 = vld [vmem:[#allocation12 + $0xb0] sm:$0xff]
        %v1595 = vld [vmem:[#allocation12 + $0xb8] sm:$0xff]
        %v1596 = vld [vmem:[#allocation12 + $0xc0] sm:$0xff]
        %v1597 = vld [vmem:[#allocation12 + $0xc8] sm:$0xff]
        %v1598 = vld [vmem:[#allocation12 + $0xd0] sm:$0xff]
        %v1599 = vld [vmem:[#allocation12 + $0xd8] sm:$0xff]
        %v1600 = vld [vmem:[#allocation12 + $0xe0] sm:$0xff]
        %v1601 = vld [vmem:[#allocation12 + $0xe8] sm:$0xff]
        %v1602 = vld [vmem:[#allocation12 + $0xf0] sm:$0xff]
        %v1603 = vld [vmem:[#allocation12 + $0xf8] sm:$0xff]
        %v1605 = vsel %vm844, %v1570, 0
        %1607 = vmatprep.subr.mxu0 %v1573
        %1608 = vmatpush1.msra.mxu0 %v1572
        %1609 = vmatprep.subr.mxu0 %v1577
        %1610 = vmatpush1.msra.mxu0 %v1576
        %1611 = vmatprep.subr.mxu0 %v1581
        %1612 = vmatpush1.msra.mxu0 %v1580
        %1613 = vmatprep.subr.mxu0 %v1585
        %1614 = vmatpush1.msra.mxu0 %v1584
        %1615 = vmatprep.subr.mxu0 %v1589
        %1616 = vmatpush1.msra.mxu0 %v1588
        %1617 = vmatprep.subr.mxu0 %v1593
        %1618 = vmatpush1.msra.mxu0 %v1592
        %1619 = vmatprep.subr.mxu0 %v1597
        %1620 = vmatpush1.msra.mxu0 %v1596
        %1621 = vmatprep.subr.mxu0 %v1601
        %1622 = vmatpush1.msra.mxu0 %v1600
        %1623 = vmatprep.subr.mxu0 0.0
        %1624 = vmatpush1.msra.mxu0 0.0
        %1625 = vmatprep.subr.mxu0 0.0
        %1626 = vmatpush1.msra.mxu0 0.0
        %1627 = vmatprep.subr.mxu0 0.0
        %1628 = vmatpush1.msra.mxu0 0.0
        %1629 = vmatprep.subr.mxu0 0.0
        %1630 = vmatpush1.msra.mxu0 0.0
        %1631 = vmatprep.subr.mxu0 0.0
        %1632 = vmatpush1.msra.mxu0 0.0
        %1633 = vmatprep.subr.mxu0 0.0
        %1634 = vmatpush1.msra.mxu0 0.0
        %1635 = vmatprep.subr.mxu0 0.0
        %1636 = vmatpush1.msra.mxu0 0.0
        %1637 = vmatprep.subr.mxu0 0.0
        %1638 = vmatpush1.msra.mxu0 0.0
        %1639 = vmatprep.subr.mxu0 0.0
        %1640 = vmatpush1.msra.mxu0 0.0
        %1641 = vmatprep.subr.mxu0 0.0
        %1642 = vmatpush1.msra.mxu0 0.0
        %1643 = vmatprep.subr.mxu0 0.0
        %1644 = vmatpush1.msra.mxu0 0.0
        %1645 = vmatprep.subr.mxu0 0.0
        %1646 = vmatpush1.msra.mxu0 0.0
        %1647 = vmatprep.subr.mxu0 0.0
        %1648 = vmatpush1.msra.mxu0 0.0
        %1649 = vmatprep.subr.mxu0 0.0
        %1650 = vmatpush1.msra.mxu0 0.0
        %1651 = vmatprep.subr.mxu0 0.0
        %1652 = vmatpush1.msra.mxu0 0.0
        %1653 = vmatprep.subr.mxu0 0.0
        %1654 = vmatpush1.msra.mxu0 0.0
        %1655 = vmatprep.subr.mxu0 0.0
        %1656 = vmatpush1.msra.mxu0 0.0
        %1657 = vmatprep.subr.mxu0 0.0
        %1658 = vmatpush1.msra.mxu0 0.0
        %1659 = vmatprep.subr.mxu0 0.0
        %1660 = vmatpush1.msra.mxu0 0.0
        %1661 = vmatprep.subr.mxu0 0.0
        %1662 = vmatpush1.msra.mxu0 0.0
        %1663 = vmatprep.subr.mxu0 0.0
        %1664 = vmatpush1.msra.mxu0 0.0
        %1665 = vmatprep.subr.mxu0 0.0
        %1666 = vmatpush1.msra.mxu0 0.0
        %1667 = vmatprep.subr.mxu0 0.0
        %1668 = vmatpush1.msra.mxu0 0.0
        %1669 = vmatprep.subr.mxu0 0.0
        %1670 = vmatpush1.msra.mxu0 0.0
        %1671 = vmatprep.mubr.f32.mxu0 0.0
        %1672 = vmatmul.mubr.f32.gmra.mrb[0].mxu0 %v1605
        %v1673 = vpop.f32.mrb[0].mxu0
        %v1674 = vadd.f32 0.0, %v1673
        %v1675 = vpop.f32.mrb[0].mxu0
        %v1676 = vadd.f32 0.0, %v1675
        %1677 = vdwg.mxu0
        %1678 = vmatprep.subr.mxu0 %v1575
        %1679 = vmatpush1.msra.mxu0 %v1574
        %1680 = vmatprep.subr.mxu0 %v1579
        %1681 = vmatpush1.msra.mxu0 %v1578
        %1682 = vmatprep.subr.mxu0 %v1583
        %1683 = vmatpush1.msra.mxu0 %v1582
        %1684 = vmatprep.subr.mxu0 %v1587
        %1685 = vmatpush1.msra.mxu0 %v1586
        %1686 = vmatprep.subr.mxu0 %v1591
        %1687 = vmatpush1.msra.mxu0 %v1590
        %1688 = vmatprep.subr.mxu0 %v1595
        %1689 = vmatpush1.msra.mxu0 %v1594
        %1690 = vmatprep.subr.mxu0 %v1599
        %1691 = vmatpush1.msra.mxu0 %v1598
        %1692 = vmatprep.subr.mxu0 %v1603
        %1693 = vmatpush1.msra.mxu0 %v1602
        %1694 = vmatprep.subr.mxu0 0.0
        %1695 = vmatpush1.msra.mxu0 0.0
        %1696 = vmatprep.subr.mxu0 0.0
        %1697 = vmatpush1.msra.mxu0 0.0
        %1698 = vmatprep.subr.mxu0 0.0
        %1699 = vmatpush1.msra.mxu0 0.0
        %1700 = vmatprep.subr.mxu0 0.0
        %1701 = vmatpush1.msra.mxu0 0.0
        %1702 = vmatprep.subr.mxu0 0.0
        %1703 = vmatpush1.msra.mxu0 0.0
        %1704 = vmatprep.subr.mxu0 0.0
        %1705 = vmatpush1.msra.mxu0 0.0
        %1706 = vmatprep.subr.mxu0 0.0
        %1707 = vmatpush1.msra.mxu0 0.0
        %1708 = vmatprep.subr.mxu0 0.0
        %1709 = vmatpush1.msra.mxu0 0.0
        %1710 = vmatprep.subr.mxu0 0.0
        %1711 = vmatpush1.msra.mxu0 0.0
        %1712 = vmatprep.subr.mxu0 0.0
        %1713 = vmatpush1.msra.mxu0 0.0
        %1714 = vmatprep.subr.mxu0 0.0
        %1715 = vmatpush1.msra.mxu0 0.0
        %1716 = vmatprep.subr.mxu0 0.0
        %1717 = vmatpush1.msra.mxu0 0.0
        %1718 = vmatprep.subr.mxu0 0.0
        %1719 = vmatpush1.msra.mxu0 0.0
        %1720 = vmatprep.subr.mxu0 0.0
        %1721 = vmatpush1.msra.mxu0 0.0
        %1722 = vmatprep.subr.mxu0 0.0
        %1723 = vmatpush1.msra.mxu0 0.0
        %1724 = vmatprep.subr.mxu0 0.0
        %1725 = vmatpush1.msra.mxu0 0.0
        %1726 = vmatprep.subr.mxu0 0.0
        %1727 = vmatpush1.msra.mxu0 0.0
        %1728 = vmatprep.subr.mxu0 0.0
        %1729 = vmatpush1.msra.mxu0 0.0
        %1730 = vmatprep.subr.mxu0 0.0
        %1731 = vmatpush1.msra.mxu0 0.0
        %1732 = vmatprep.subr.mxu0 0.0
        %1733 = vmatpush1.msra.mxu0 0.0
        %1734 = vmatprep.subr.mxu0 0.0
        %1735 = vmatpush1.msra.mxu0 0.0
        %1736 = vmatprep.subr.mxu0 0.0
        %1737 = vmatpush1.msra.mxu0 0.0
        %1738 = vmatprep.subr.mxu0 0.0
        %1739 = vmatpush1.msra.mxu0 0.0
        %1740 = vmatprep.subr.mxu0 0.0
        %1741 = vmatpush1.msra.mxu0 0.0
        %1742 = vmatprep.mubr.f32.mxu0 0.0
        %1743 = vmatmul.mubr.f32.gmra.mrb[0].mxu0 %v1605
        %v1744 = vpop.f32.mrb[0].mxu0
        %v1745 = vadd.f32 0.0, %v1744
        %v1746 = vpop.f32.mrb[0].mxu0
        %v1747 = vadd.f32 0.0, %v1746
        %1748 = vdwg.mxu0
        %v1749 = vld [vmem:[#allocation11] sm:$0xff]
        %v1750 = vld [vmem:[#allocation11 + $0x8] sm:$0xff]
        %v1751 = vld [vmem:[#allocation11 + $0x10] sm:$0xff]
        %v1752 = vld [vmem:[#allocation11 + $0x18] sm:$0xff]
        %v1753 = vld [vmem:[#allocation11 + $0x20] sm:$0xff]
        %v1754 = vld [vmem:[#allocation11 + $0x28] sm:$0xff]
        %v1755 = vld [vmem:[#allocation11 + $0x30] sm:$0xff]
        %v1756 = vld [vmem:[#allocation11 + $0x38] sm:$0xff]
        %v1757 = vld [vmem:[#allocation11 + $0x40] sm:$0xff]
        %v1758 = vld [vmem:[#allocation11 + $0x48] sm:$0xff]
        %v1759 = vld [vmem:[#allocation11 + $0x50] sm:$0xff]
        %v1760 = vld [vmem:[#allocation11 + $0x58] sm:$0xff]
        %v1761 = vld [vmem:[#allocation11 + $0x60] sm:$0xff]
        %v1762 = vld [vmem:[#allocation11 + $0x68] sm:$0xff]
        %v1763 = vld [vmem:[#allocation11 + $0x70] sm:$0xff]
        %v1764 = vld [vmem:[#allocation11 + $0x78] sm:$0xff]
        %v1765 = vld [vmem:[#allocation11 + $0x80] sm:$0xff]
        %v1766 = vld [vmem:[#allocation11 + $0x88] sm:$0xff]
        %v1767 = vld [vmem:[#allocation11 + $0x90] sm:$0xff]
        %v1768 = vld [vmem:[#allocation11 + $0x98] sm:$0xff]
        %v1769 = vld [vmem:[#allocation11 + $0xa0] sm:$0xff]
        %v1770 = vld [vmem:[#allocation11 + $0xa8] sm:$0xff]
        %v1771 = vld [vmem:[#allocation11 + $0xb0] sm:$0xff]
        %v1772 = vld [vmem:[#allocation11 + $0xb8] sm:$0xff]
        %v1773 = vld [vmem:[#allocation11 + $0xc0] sm:$0xff]
        %v1774 = vld [vmem:[#allocation11 + $0xc8] sm:$0xff]
        %v1775 = vld [vmem:[#allocation11 + $0xd0] sm:$0xff]
        %v1776 = vld [vmem:[#allocation11 + $0xd8] sm:$0xff]
        %v1777 = vld [vmem:[#allocation11 + $0xe0] sm:$0xff]
        %v1778 = vld [vmem:[#allocation11 + $0xe8] sm:$0xff]
        %v1779 = vld [vmem:[#allocation11 + $0xf0] sm:$0xff]
        %v1780 = vld [vmem:[#allocation11 + $0xf8] sm:$0xff]
        %v1782 = vsel %vm844, %v917, 0
        %1784 = vmatprep.subr.mxu0 %v1750
        %1785 = vmatpush1.msra.mxu0 %v1749
        %1786 = vmatprep.subr.mxu0 %v1754
        %1787 = vmatpush1.msra.mxu0 %v1753
        %1788 = vmatprep.subr.mxu0 %v1758
        %1789 = vmatpush1.msra.mxu0 %v1757
        %1790 = vmatprep.subr.mxu0 %v1762
        %1791 = vmatpush1.msra.mxu0 %v1761
        %1792 = vmatprep.subr.mxu0 %v1766
        %1793 = vmatpush1.msra.mxu0 %v1765
        %1794 = vmatprep.subr.mxu0 %v1770
        %1795 = vmatpush1.msra.mxu0 %v1769
        %1796 = vmatprep.subr.mxu0 %v1774
        %1797 = vmatpush1.msra.mxu0 %v1773
        %1798 = vmatprep.subr.mxu0 %v1778
        %1799 = vmatpush1.msra.mxu0 %v1777
        %1800 = vmatprep.subr.mxu0 0.0
        %1801 = vmatpush1.msra.mxu0 0.0
        %1802 = vmatprep.subr.mxu0 0.0
        %1803 = vmatpush1.msra.mxu0 0.0
        %1804 = vmatprep.subr.mxu0 0.0
        %1805 = vmatpush1.msra.mxu0 0.0
        %1806 = vmatprep.subr.mxu0 0.0
        %1807 = vmatpush1.msra.mxu0 0.0
        %1808 = vmatprep.subr.mxu0 0.0
        %1809 = vmatpush1.msra.mxu0 0.0
        %1810 = vmatprep.subr.mxu0 0.0
        %1811 = vmatpush1.msra.mxu0 0.0
        %1812 = vmatprep.subr.mxu0 0.0
        %1813 = vmatpush1.msra.mxu0 0.0
        %1814 = vmatprep.subr.mxu0 0.0
        %1815 = vmatpush1.msra.mxu0 0.0
        %1816 = vmatprep.subr.mxu0 0.0
        %1817 = vmatpush1.msra.mxu0 0.0
        %1818 = vmatprep.subr.mxu0 0.0
        %1819 = vmatpush1.msra.mxu0 0.0
        %1820 = vmatprep.subr.mxu0 0.0
        %1821 = vmatpush1.msra.mxu0 0.0
        %1822 = vmatprep.subr.mxu0 0.0
        %1823 = vmatpush1.msra.mxu0 0.0
        %1824 = vmatprep.subr.mxu0 0.0
        %1825 = vmatpush1.msra.mxu0 0.0
        %1826 = vmatprep.subr.mxu0 0.0
        %1827 = vmatpush1.msra.mxu0 0.0
        %1828 = vmatprep.subr.mxu0 0.0
        %1829 = vmatpush1.msra.mxu0 0.0
        %1830 = vmatprep.subr.mxu0 0.0
        %1831 = vmatpush1.msra.mxu0 0.0
        %1832 = vmatprep.subr.mxu0 0.0
        %1833 = vmatpush1.msra.mxu0 0.0
        %1834 = vmatprep.subr.mxu0 0.0
        %1835 = vmatpush1.msra.mxu0 0.0
        %1836 = vmatprep.subr.mxu0 0.0
        %1837 = vmatpush1.msra.mxu0 0.0
        %1838 = vmatprep.subr.mxu0 0.0
        %1839 = vmatpush1.msra.mxu0 0.0
        %1840 = vmatprep.subr.mxu0 0.0
        %1841 = vmatpush1.msra.mxu0 0.0
        %1842 = vmatprep.subr.mxu0 0.0
        %1843 = vmatpush1.msra.mxu0 0.0
        %1844 = vmatprep.subr.mxu0 0.0
        %1845 = vmatpush1.msra.mxu0 0.0
        %1846 = vmatprep.subr.mxu0 0.0
        %1847 = vmatpush1.msra.mxu0 0.0
        %1848 = vmatprep.mubr.f32.mxu0 0.0
        %1849 = vmatmul.mubr.f32.gmra.mrb[0].mxu0 %v1782
        %v1850 = vpop.f32.mrb[0].mxu0
        %v1851 = vadd.f32 0.0, %v1850
        %v1852 = vpop.f32.mrb[0].mxu0
        %v1853 = vadd.f32 0.0, %v1852
        %1854 = vdwg.mxu0
        %1855 = vmatprep.subr.mxu0 %v1752
        %1856 = vmatpush1.msra.mxu0 %v1751
        %1857 = vmatprep.subr.mxu0 %v1756
        %1858 = vmatpush1.msra.mxu0 %v1755
        %1859 = vmatprep.subr.mxu0 %v1760
        %1860 = vmatpush1.msra.mxu0 %v1759
        %1861 = vmatprep.subr.mxu0 %v1764
        %1862 = vmatpush1.msra.mxu0 %v1763
        %1863 = vmatprep.subr.mxu0 %v1768
        %1864 = vmatpush1.msra.mxu0 %v1767
        %1865 = vmatprep.subr.mxu0 %v1772
        %1866 = vmatpush1.msra.mxu0 %v1771
        %1867 = vmatprep.subr.mxu0 %v1776
        %1868 = vmatpush1.msra.mxu0 %v1775
        %1869 = vmatprep.subr.mxu0 %v1780
        %1870 = vmatpush1.msra.mxu0 %v1779
        %1871 = vmatprep.subr.mxu0 0.0
        %1872 = vmatpush1.msra.mxu0 0.0
        %1873 = vmatprep.subr.mxu0 0.0
        %1874 = vmatpush1.msra.mxu0 0.0
        %1875 = vmatprep.subr.mxu0 0.0
        %1876 = vmatpush1.msra.mxu0 0.0
        %1877 = vmatprep.subr.mxu0 0.0
        %1878 = vmatpush1.msra.mxu0 0.0
        %1879 = vmatprep.subr.mxu0 0.0
        %1880 = vmatpush1.msra.mxu0 0.0
        %1881 = vmatprep.subr.mxu0 0.0
        %1882 = vmatpush1.msra.mxu0 0.0
        %1883 = vmatprep.subr.mxu0 0.0
        %1884 = vmatpush1.msra.mxu0 0.0
        %1885 = vmatprep.subr.mxu0 0.0
        %1886 = vmatpush1.msra.mxu0 0.0
        %1887 = vmatprep.subr.mxu0 0.0
        %1888 = vmatpush1.msra.mxu0 0.0
        %1889 = vmatprep.subr.mxu0 0.0
        %1890 = vmatpush1.msra.mxu0 0.0
        %1891 = vmatprep.subr.mxu0 0.0
        %1892 = vmatpush1.msra.mxu0 0.0
        %1893 = vmatprep.subr.mxu0 0.0
        %1894 = vmatpush1.msra.mxu0 0.0
        %1895 = vmatprep.subr.mxu0 0.0
        %1896 = vmatpush1.msra.mxu0 0.0
        %1897 = vmatprep.subr.mxu0 0.0
        %1898 = vmatpush1.msra.mxu0 0.0
        %1899 = vmatprep.subr.mxu0 0.0
        %1900 = vmatpush1.msra.mxu0 0.0
        %1901 = vmatprep.subr.mxu0 0.0
        %1902 = vmatpush1.msra.mxu0 0.0
        %1903 = vmatprep.subr.mxu0 0.0
        %1904 = vmatpush1.msra.mxu0 0.0
        %1905 = vmatprep.subr.mxu0 0.0
        %1906 = vmatpush1.msra.mxu0 0.0
        %1907 = vmatprep.subr.mxu0 0.0
        %1908 = vmatpush1.msra.mxu0 0.0
        %1909 = vmatprep.subr.mxu0 0.0
        %1910 = vmatpush1.msra.mxu0 0.0
        %1911 = vmatprep.subr.mxu0 0.0
        %1912 = vmatpush1.msra.mxu0 0.0
        %1913 = vmatprep.subr.mxu0 0.0
        %1914 = vmatpush1.msra.mxu0 0.0
        %1915 = vmatprep.subr.mxu0 0.0
        %1916 = vmatpush1.msra.mxu0 0.0
        %1917 = vmatprep.subr.mxu0 0.0
        %1918 = vmatpush1.msra.mxu0 0.0
        %1919 = vmatprep.mubr.f32.mxu0 0.0
        %1920 = vmatmul.mubr.f32.gmra.mrb[0].mxu0 %v1782
        %v1921 = vpop.f32.mrb[0].mxu0
        %v1922 = vadd.f32 0.0, %v1921
        %v1923 = vpop.f32.mrb[0].mxu0
        %v1924 = vadd.f32 0.0, %v1923
        %1925 = vdwg.mxu0
        %v1926 = vmul.f32 %v1674, %v1851
        %v1927 = vmul.f32 %v1676, %v1853
        %v1928 = vmul.f32 %v1745, %v1922
        %v1929 = vmul.f32 %v1747, %v1924
        %v1930 = vld [vmem:[%s7] sm:$0xff]
        %v1931 = vld [vmem:[%s7 + $0x8] sm:$0xff]
        %v1932 = vld [vmem:[%s7 + $0x10] sm:$0xff]
        %v1933 = vld [vmem:[%s7 + $0x18] sm:$0xff]
        %v1934 = vld [vmem:[%s7 + $0x20] sm:$0xff]
        %v1935 = vld [vmem:[%s7 + $0x28] sm:$0xff]
        %v1936 = vld [vmem:[%s7 + $0x30] sm:$0xff]
        %v1937 = vld [vmem:[%s7 + $0x38] sm:$0xff]
        %v1938 = vld [vmem:[%s7 + $0x40] sm:$0xff]
        %v1939 = vld [vmem:[%s7 + $0x48] sm:$0xff]
        %v1940 = vld [vmem:[%s7 + $0x50] sm:$0xff]
        %v1941 = vld [vmem:[%s7 + $0x58] sm:$0xff]
        %v1942 = vld [vmem:[%s7 + $0x60] sm:$0xff]
        %v1943 = vld [vmem:[%s7 + $0x68] sm:$0xff]
        %v1944 = vld [vmem:[%s7 + $0x70] sm:$0xff]
        %v1945 = vld [vmem:[%s7 + $0x78] sm:$0xff]
        %v1946 = vld [vmem:[%s7 + $0x80] sm:$0xff]
        %v1947 = vld [vmem:[%s7 + $0x88] sm:$0xff]
        %v1948 = vld [vmem:[%s7 + $0x90] sm:$0xff]
        %v1949 = vld [vmem:[%s7 + $0x98] sm:$0xff]
        %v1950 = vld [vmem:[%s7 + $0xa0] sm:$0xff]
        %v1951 = vld [vmem:[%s7 + $0xa8] sm:$0xff]
        %v1952 = vld [vmem:[%s7 + $0xb0] sm:$0xff]
        %v1953 = vld [vmem:[%s7 + $0xb8] sm:$0xff]
        %v1954 = vld [vmem:[%s7 + $0xc0] sm:$0xff]
        %v1955 = vld [vmem:[%s7 + $0xc8] sm:$0xff]
        %v1956 = vld [vmem:[%s7 + $0xd0] sm:$0xff]
        %v1957 = vld [vmem:[%s7 + $0xd8] sm:$0xff]
        %v1958 = vld [vmem:[%s7 + $0xe0] sm:$0xff]
        %v1959 = vld [vmem:[%s7 + $0xe8] sm:$0xff]
        %v1960 = vld [vmem:[%s7 + $0xf0] sm:$0xff]
        %v1961 = vld [vmem:[%s7 + $0xf8] sm:$0xff]
        %v1962 = vld [vmem:[%s7 + $0x100] sm:$0xff]
        %v1963 = vld [vmem:[%s7 + $0x108] sm:$0xff]
        %v1964 = vld [vmem:[%s7 + $0x110] sm:$0xff]
        %v1965 = vld [vmem:[%s7 + $0x118] sm:$0xff]
        %v1966 = vld [vmem:[%s7 + $0x120] sm:$0xff]
        %v1967 = vld [vmem:[%s7 + $0x128] sm:$0xff]
        %v1968 = vld [vmem:[%s7 + $0x130] sm:$0xff]
        %v1969 = vld [vmem:[%s7 + $0x138] sm:$0xff]
        %v1970 = vld [vmem:[%s7 + $0x140] sm:$0xff]
        %v1971 = vld [vmem:[%s7 + $0x148] sm:$0xff]
        %v1972 = vld [vmem:[%s7 + $0x150] sm:$0xff]
        %v1973 = vld [vmem:[%s7 + $0x158] sm:$0xff]
        %v1974 = vld [vmem:[%s7 + $0x160] sm:$0xff]
        %v1975 = vld [vmem:[%s7 + $0x168] sm:$0xff]
        %v1976 = vld [vmem:[%s7 + $0x170] sm:$0xff]
        %v1977 = vld [vmem:[%s7 + $0x178] sm:$0xff]
        %v1978 = vld [vmem:[%s7 + $0x180] sm:$0xff]
        %v1979 = vld [vmem:[%s7 + $0x188] sm:$0xff]
        %v1980 = vld [vmem:[%s7 + $0x190] sm:$0xff]
        %v1981 = vld [vmem:[%s7 + $0x198] sm:$0xff]
        %v1982 = vld [vmem:[%s7 + $0x1a0] sm:$0xff]
        %v1983 = vld [vmem:[%s7 + $0x1a8] sm:$0xff]
        %v1984 = vld [vmem:[%s7 + $0x1b0] sm:$0xff]
        %v1985 = vld [vmem:[%s7 + $0x1b8] sm:$0xff]
        %v1986 = vld [vmem:[%s7 + $0x1c0] sm:$0xff]
        %v1987 = vld [vmem:[%s7 + $0x1c8] sm:$0xff]
        %v1988 = vld [vmem:[%s7 + $0x1d0] sm:$0xff]
        %v1989 = vld [vmem:[%s7 + $0x1d8] sm:$0xff]
        %v1990 = vld [vmem:[%s7 + $0x1e0] sm:$0xff]
        %v1991 = vld [vmem:[%s7 + $0x1e8] sm:$0xff]
        %v1992 = vld [vmem:[%s7 + $0x1f0] sm:$0xff]
        %v1993 = vld [vmem:[%s7 + $0x1f8] sm:$0xff]
        %1994 = vmatprep.subr.mxu0 0.0
        %1995 = vmatpush1.msra.mxu0 %v1930
        %1996 = vmatprep.subr.mxu0 0.0
        %1997 = vmatpush1.msra.mxu0 %v1931
        %1998 = vmatprep.subr.mxu0 0.0
        %1999 = vmatpush1.msra.mxu0 %v1932
        %2000 = vmatprep.subr.mxu0 0.0
        %2001 = vmatpush1.msra.mxu0 %v1933
        %2002 = vmatprep.subr.mxu0 0.0
        %2003 = vmatpush1.msra.mxu0 %v1934
        %2004 = vmatprep.subr.mxu0 0.0
        %2005 = vmatpush1.msra.mxu0 %v1935
        %2006 = vmatprep.subr.mxu0 0.0
        %2007 = vmatpush1.msra.mxu0 %v1936
        %2008 = vmatprep.subr.mxu0 0.0
        %2009 = vmatpush1.msra.mxu0 %v1937
        %2010 = vmatprep.subr.mxu0 0.0
        %2011 = vmatpush1.msra.mxu0 %v1938
        %2012 = vmatprep.subr.mxu0 0.0
        %2013 = vmatpush1.msra.mxu0 %v1939
        %2014 = vmatprep.subr.mxu0 0.0
        %2015 = vmatpush1.msra.mxu0 %v1940
        %2016 = vmatprep.subr.mxu0 0.0
        %2017 = vmatpush1.msra.mxu0 %v1941
        %2018 = vmatprep.subr.mxu0 0.0
        %2019 = vmatpush1.msra.mxu0 %v1942
        %2020 = vmatprep.subr.mxu0 0.0
        %2021 = vmatpush1.msra.mxu0 %v1943
        %2022 = vmatprep.subr.mxu0 0.0
        %2023 = vmatpush1.msra.mxu0 %v1944
        %2024 = vmatprep.subr.mxu0 0.0
        %2025 = vmatpush1.msra.mxu0 %v1945
        %2026 = vmatprep.subr.mxu0 0.0
        %2027 = vmatpush1.msra.mxu0 %v1946
        %2028 = vmatprep.subr.mxu0 0.0
        %2029 = vmatpush1.msra.mxu0 %v1947
        %2030 = vmatprep.subr.mxu0 0.0
        %2031 = vmatpush1.msra.mxu0 %v1948
        %2032 = vmatprep.subr.mxu0 0.0
        %2033 = vmatpush1.msra.mxu0 %v1949
        %2034 = vmatprep.subr.mxu0 0.0
        %2035 = vmatpush1.msra.mxu0 %v1950
        %2036 = vmatprep.subr.mxu0 0.0
        %2037 = vmatpush1.msra.mxu0 %v1951
        %2038 = vmatprep.subr.mxu0 0.0
        %2039 = vmatpush1.msra.mxu0 %v1952
        %2040 = vmatprep.subr.mxu0 0.0
        %2041 = vmatpush1.msra.mxu0 %v1953
        %2042 = vmatprep.subr.mxu0 0.0
        %2043 = vmatpush1.msra.mxu0 %v1954
        %2044 = vmatprep.subr.mxu0 0.0
        %2045 = vmatpush1.msra.mxu0 %v1955
        %2046 = vmatprep.subr.mxu0 0.0
        %2047 = vmatpush1.msra.mxu0 %v1956
        %2048 = vmatprep.subr.mxu0 0.0
        %2049 = vmatpush1.msra.mxu0 %v1957
        %2050 = vmatprep.subr.mxu0 0.0
        %2051 = vmatpush1.msra.mxu0 %v1958
        %2052 = vmatprep.subr.mxu0 0.0
        %2053 = vmatpush1.msra.mxu0 %v1959
        %2054 = vmatprep.subr.mxu0 0.0
        %2055 = vmatpush1.msra.mxu0 %v1960
        %2056 = vmatprep.subr.mxu0 0.0
        %2057 = vmatpush1.msra.mxu0 %v1961
        %2058 = vmatprep.mubr.f32.mxu0 %v1927
        %2059 = vmatmul.mubr.f32.gmra.mrb[0].mxu0 %v1926
        %v2060 = vpop.f32.mrb[0].mxu0
        %v2061 = vadd.f32 0.0, %v2060
        %v2062 = vpop.f32.mrb[0].mxu0
        %2063 = vdwg.mxu0
        %2064 = vmatprep.subr.mxu0 0.0
        %2065 = vmatpush1.msra.mxu0 %v1962
        %2066 = vmatprep.subr.mxu0 0.0
        %2067 = vmatpush1.msra.mxu0 %v1963
        %2068 = vmatprep.subr.mxu0 0.0
        %2069 = vmatpush1.msra.mxu0 %v1964
        %2070 = vmatprep.subr.mxu0 0.0
        %2071 = vmatpush1.msra.mxu0 %v1965
        %2072 = vmatprep.subr.mxu0 0.0
        %2073 = vmatpush1.msra.mxu0 %v1966
        %2074 = vmatprep.subr.mxu0 0.0
        %2075 = vmatpush1.msra.mxu0 %v1967
        %2076 = vmatprep.subr.mxu0 0.0
        %2077 = vmatpush1.msra.mxu0 %v1968
        %2078 = vmatprep.subr.mxu0 0.0
        %2079 = vmatpush1.msra.mxu0 %v1969
        %2080 = vmatprep.subr.mxu0 0.0
        %2081 = vmatpush1.msra.mxu0 %v1970
        %2082 = vmatprep.subr.mxu0 0.0
        %2083 = vmatpush1.msra.mxu0 %v1971
        %2084 = vmatprep.subr.mxu0 0.0
        %2085 = vmatpush1.msra.mxu0 %v1972
        %2086 = vmatprep.subr.mxu0 0.0
        %2087 = vmatpush1.msra.mxu0 %v1973
        %2088 = vmatprep.subr.mxu0 0.0
        %2089 = vmatpush1.msra.mxu0 %v1974
        %2090 = vmatprep.subr.mxu0 0.0
        %2091 = vmatpush1.msra.mxu0 %v1975
        %2092 = vmatprep.subr.mxu0 0.0
        %2093 = vmatpush1.msra.mxu0 %v1976
        %2094 = vmatprep.subr.mxu0 0.0
        %2095 = vmatpush1.msra.mxu0 %v1977
        %2096 = vmatprep.subr.mxu0 0.0
        %2097 = vmatpush1.msra.mxu0 %v1978
        %2098 = vmatprep.subr.mxu0 0.0
        %2099 = vmatpush1.msra.mxu0 %v1979
        %2100 = vmatprep.subr.mxu0 0.0
        %2101 = vmatpush1.msra.mxu0 %v1980
        %2102 = vmatprep.subr.mxu0 0.0
        %2103 = vmatpush1.msra.mxu0 %v1981
        %2104 = vmatprep.subr.mxu0 0.0
        %2105 = vmatpush1.msra.mxu0 %v1982
        %2106 = vmatprep.subr.mxu0 0.0
        %2107 = vmatpush1.msra.mxu0 %v1983
        %2108 = vmatprep.subr.mxu0 0.0
        %2109 = vmatpush1.msra.mxu0 %v1984
        %2110 = vmatprep.subr.mxu0 0.0
        %2111 = vmatpush1.msra.mxu0 %v1985
        %2112 = vmatprep.subr.mxu0 0.0
        %2113 = vmatpush1.msra.mxu0 %v1986
        %2114 = vmatprep.subr.mxu0 0.0
        %2115 = vmatpush1.msra.mxu0 %v1987
        %2116 = vmatprep.subr.mxu0 0.0
        %2117 = vmatpush1.msra.mxu0 %v1988
        %2118 = vmatprep.subr.mxu0 0.0
        %2119 = vmatpush1.msra.mxu0 %v1989
        %2120 = vmatprep.subr.mxu0 0.0
        %2121 = vmatpush1.msra.mxu0 %v1990
        %2122 = vmatprep.subr.mxu0 0.0
        %2123 = vmatpush1.msra.mxu0 %v1991
        %2124 = vmatprep.subr.mxu0 0.0
        %2125 = vmatpush1.msra.mxu0 %v1992
        %2126 = vmatprep.subr.mxu0 0.0
        %2127 = vmatpush1.msra.mxu0 %v1993
        %2128 = vmatprep.mubr.f32.mxu0 %v1929
        %2129 = vmatmul.mubr.f32.gmra.mrb[0].mxu0 %v1928
        %v2130 = vpop.f32.mrb[0].mxu0
        %v2131 = vadd.f32 %v2061, %v2130
        %v2132 = vpop.f32.mrb[0].mxu0
        %2133 = vdwg.mxu0
        %v2134 = vld [vmem:[%s636] sm:$0xff]
        %v2135 = vld [vmem:[%s636 + $0x8] sm:$0xff]
        %v2136 = vld [vmem:[%s636 + $0x10] sm:$0xff]
        %v2137 = vld [vmem:[%s636 + $0x18] sm:$0xff]
        %v2138 = vld [vmem:[%s636 + $0x20] sm:$0xff]
        %v2139 = vld [vmem:[%s636 + $0x28] sm:$0xff]
        %v2140 = vld [vmem:[%s636 + $0x30] sm:$0xff]
        %v2141 = vld [vmem:[%s636 + $0x38] sm:$0xff]
        %v2142 = vld [vmem:[%s645 + $0x1] ss:$0 sm:$0xff]
        %v2144 = vsel %vm844, %v2131, 0
        %2146 = vmatprep.subr.mxu0 0.0
        %2147 = vmatpush1.msra.mxu0 %v2134
        %2148 = vmatprep.subr.mxu0 0.0
        %2149 = vmatpush1.msra.mxu0 %v2135
        %2150 = vmatprep.subr.mxu0 0.0
        %2151 = vmatpush1.msra.mxu0 %v2136
        %2152 = vmatprep.subr.mxu0 0.0
        %2153 = vmatpush1.msra.mxu0 %v2137
        %2154 = vmatprep.subr.mxu0 0.0
        %2155 = vmatpush1.msra.mxu0 %v2138
        %2156 = vmatprep.subr.mxu0 0.0
        %2157 = vmatpush1.msra.mxu0 %v2139
        %2158 = vmatprep.subr.mxu0 0.0
        %2159 = vmatpush1.msra.mxu0 %v2140
        %2160 = vmatprep.subr.mxu0 0.0
        %2161 = vmatpush1.msra.mxu0 %v2141
        %2162 = vmatprep.subr.mxu0 0.0
        %2163 = vmatpush1.msra.mxu0 0.0
        %2164 = vmatprep.subr.mxu0 0.0
        %2165 = vmatpush1.msra.mxu0 0.0
        %2166 = vmatprep.subr.mxu0 0.0
        %2167 = vmatpush1.msra.mxu0 0.0
        %2168 = vmatprep.subr.mxu0 0.0
        %2169 = vmatpush1.msra.mxu0 0.0
        %2170 = vmatprep.subr.mxu0 0.0
        %2171 = vmatpush1.msra.mxu0 0.0
        %2172 = vmatprep.subr.mxu0 0.0
        %2173 = vmatpush1.msra.mxu0 0.0
        %2174 = vmatprep.subr.mxu0 0.0
        %2175 = vmatpush1.msra.mxu0 0.0
        %2176 = vmatprep.subr.mxu0 0.0
        %2177 = vmatpush1.msra.mxu0 0.0
        %2178 = vmatprep.subr.mxu0 0.0
        %2179 = vmatpush1.msra.mxu0 0.0
        %2180 = vmatprep.subr.mxu0 0.0
        %2181 = vmatpush1.msra.mxu0 0.0
        %2182 = vmatprep.subr.mxu0 0.0
        %2183 = vmatpush1.msra.mxu0 0.0
        %2184 = vmatprep.subr.mxu0 0.0
        %2185 = vmatpush1.msra.mxu0 0.0
        %2186 = vmatprep.subr.mxu0 0.0
        %2187 = vmatpush1.msra.mxu0 0.0
        %2188 = vmatprep.subr.mxu0 0.0
        %2189 = vmatpush1.msra.mxu0 0.0
        %2190 = vmatprep.subr.mxu0 0.0
        %2191 = vmatpush1.msra.mxu0 0.0
        %2192 = vmatprep.subr.mxu0 0.0
        %2193 = vmatpush1.msra.mxu0 0.0
        %2194 = vmatprep.subr.mxu0 0.0
        %2195 = vmatpush1.msra.mxu0 0.0
        %2196 = vmatprep.subr.mxu0 0.0
        %2197 = vmatpush1.msra.mxu0 0.0
        %2198 = vmatprep.subr.mxu0 0.0
        %2199 = vmatpush1.msra.mxu0 0.0
        %2200 = vmatprep.subr.mxu0 0.0
        %2201 = vmatpush1.msra.mxu0 0.0
        %2202 = vmatprep.subr.mxu0 0.0
        %2203 = vmatpush1.msra.mxu0 0.0
        %2204 = vmatprep.subr.mxu0 0.0
        %2205 = vmatpush1.msra.mxu0 0.0
        %2206 = vmatprep.subr.mxu0 0.0
        %2207 = vmatpush1.msra.mxu0 0.0
        %2208 = vmatprep.subr.mxu0 0.0
        %2209 = vmatpush1.msra.mxu0 0.0
        %2210 = vmatprep.mubr.f32.mxu0 0.0
        %2211 = vmatmul.mubr.f32.gmra.mrb[0].mxu0 %v2144
        %v2212 = vpop.f32.mrb[0].mxu0
        %v2213 = vadd.f32 %v2142, %v2212
        %v2214 = vpop.f32.mrb[0].mxu0
        %2215 = vdwg.mxu0
        %v2216 = vadd.f32 %v815, %v2213
        %v2217 = vld [vmem:[%s645 + $0x2] ss:$0 sm:$0xff]
        %v2218 = vld [vmem:[%s645 + $0x3] ss:$0 sm:$0xff]
        %v2219 = vsel %vm844, %v2216, 0.0
        %2220 = vadd.xlane.f32.xlu0 %v2219
        %v2221 = vpop.xlane.xlu0 %2220
        %v2222 = vrcp.pop 64.0
        %v2223 = vmul.f32 %v2221, %v2222
        %v2224 = vsub.f32 %v2216, %v2223
        %v2225 = vmul.f32 %v2224, %v2224
        %v2226 = vsel %vm844, %v2225, 0.0
        %2227 = vadd.xlane.f32.xlu0 %v2226
        %v2228 = vpop.xlane.xlu0 %2227
        %v2229 = vmul.f32 %v2228, %v2222
        %v2230 = vadd.f32 %v2229, 1e-05
        %v2231 = vrsqrt.pop %v2230
        %v2232 = vmul.f32 %v2224, %v2231
        %v2233 = vmul.f32 %v2232, %v2217
        %v2234 = vadd.f32 %v2233, %v2218
        %v2235 = vld [vmem:[%s715] sm:$0xff]
        %v2236 = vld [vmem:[%s715 + $0x8] sm:$0xff]
        %v2237 = vld [vmem:[%s715 + $0x10] sm:$0xff]
        %v2238 = vld [vmem:[%s715 + $0x18] sm:$0xff]
        %v2239 = vld [vmem:[%s715 + $0x20] sm:$0xff]
        %v2240 = vld [vmem:[%s715 + $0x28] sm:$0xff]
        %v2241 = vld [vmem:[%s715 + $0x30] sm:$0xff]
        %v2242 = vld [vmem:[%s715 + $0x38] sm:$0xff]
        %v2243 = vld [vmem:[%s715 + $0x40] sm:$0xff]
        %v2244 = vld [vmem:[%s715 + $0x48] sm:$0xff]
        %v2245 = vld [vmem:[%s715 + $0x50] sm:$0xff]
        %v2246 = vld [vmem:[%s715 + $0x58] sm:$0xff]
        %v2247 = vld [vmem:[%s715 + $0x60] sm:$0xff]
        %v2248 = vld [vmem:[%s715 + $0x68] sm:$0xff]
        %v2249 = vld [vmem:[%s715 + $0x70] sm:$0xff]
        %v2250 = vld [vmem:[%s715 + $0x78] sm:$0xff]
        %v2251 = vld [vmem:[%s715 + $0x80] sm:$0xff]
        %v2252 = vld [vmem:[%s715 + $0x88] sm:$0xff]
        %v2253 = vld [vmem:[%s715 + $0x90] sm:$0xff]
        %v2254 = vld [vmem:[%s715 + $0x98] sm:$0xff]
        %v2255 = vld [vmem:[%s715 + $0xa0] sm:$0xff]
        %v2256 = vld [vmem:[%s715 + $0xa8] sm:$0xff]
        %v2257 = vld [vmem:[%s715 + $0xb0] sm:$0xff]
        %v2258 = vld [vmem:[%s715 + $0xb8] sm:$0xff]
        %v2259 = vld [vmem:[%s715 + $0xc0] sm:$0xff]
        %v2260 = vld [vmem:[%s715 + $0xc8] sm:$0xff]
        %v2261 = vld [vmem:[%s715 + $0xd0] sm:$0xff]
        %v2262 = vld [vmem:[%s715 + $0xd8] sm:$0xff]
        %v2263 = vld [vmem:[%s715 + $0xe0] sm:$0xff]
        %v2264 = vld [vmem:[%s715 + $0xe8] sm:$0xff]
        %v2265 = vld [vmem:[%s715 + $0xf0] sm:$0xff]
        %v2266 = vld [vmem:[%s715 + $0xf8] sm:$0xff]
        %s2267 = scalar_lea.vmem %s645, 4 [#allocation18]
        %v2268 = vld [vmem:[%s2267] ss:$8 sm:$0xf]
        %v2270 = vlaneseq
        %v2271 = vshrl.u32 %v2270, 7
        %v2272 = vsub.s32 0, %v2271
        %v2273 = vrot.slane %v2268, %v2272
        %v2274 = vlaneseq
        %v2275 = vshrl.u32 %v2274, 7
        %v2276 = vsub.s32 1, %v2275
        %v2277 = vrot.slane %v2268, %v2276
        %v2278 = vlaneseq
        %v2279 = vshrl.u32 %v2278, 7
        %v2280 = vsub.s32 2, %v2279
        %v2281 = vrot.slane %v2268, %v2280
        %v2282 = vlaneseq
        %v2283 = vshrl.u32 %v2282, 7
        %v2284 = vsub.s32 3, %v2283
        %v2285 = vrot.slane %v2268, %v2284
        %v2291 = vsel %vm844, %v2234, 0
        %2293 = vmatprep.subr.mxu0 %v2236
        %2294 = vmatpush1.msra.mxu0 %v2235
        %2295 = vmatprep.subr.mxu0 %v2240
        %2296 = vmatpush1.msra.mxu0 %v2239
        %2297 = vmatprep.subr.mxu0 %v2244
        %2298 = vmatpush1.msra.mxu0 %v2243
        %2299 = vmatprep.subr.mxu0 %v2248
        %2300 = vmatpush1.msra.mxu0 %v2247
        %2301 = vmatprep.subr.mxu0 %v2252
        %2302 = vmatpush1.msra.mxu0 %v2251
        %2303 = vmatprep.subr.mxu0 %v2256
        %2304 = vmatpush1.msra.mxu0 %v2255
        %2305 = vmatprep.subr.mxu0 %v2260
        %2306 = vmatpush1.msra.mxu0 %v2259
        %2307 = vmatprep.subr.mxu0 %v2264
        %2308 = vmatpush1.msra.mxu0 %v2263
        %2309 = vmatprep.subr.mxu0 0.0
        %2310 = vmatpush1.msra.mxu0 0.0
        %2311 = vmatprep.subr.mxu0 0.0
        %2312 = vmatpush1.msra.mxu0 0.0
        %2313 = vmatprep.subr.mxu0 0.0
        %2314 = vmatpush1.msra.mxu0 0.0
        %2315 = vmatprep.subr.mxu0 0.0
        %2316 = vmatpush1.msra.mxu0 0.0
        %2317 = vmatprep.subr.mxu0 0.0
        %2318 = vmatpush1.msra.mxu0 0.0
        %2319 = vmatprep.subr.mxu0 0.0
        %2320 = vmatpush1.msra.mxu0 0.0
        %2321 = vmatprep.subr.mxu0 0.0
        %2322 = vmatpush1.msra.mxu0 0.0
        %2323 = vmatprep.subr.mxu0 0.0
        %2324 = vmatpush1.msra.mxu0 0.0
        %2325 = vmatprep.subr.mxu0 0.0
        %2326 = vmatpush1.msra.mxu0 0.0
        %2327 = vmatprep.subr.mxu0 0.0
        %2328 = vmatpush1.msra.mxu0 0.0
        %2329 = vmatprep.subr.mxu0 0.0
        %2330 = vmatpush1.msra.mxu0 0.0
        %2331 = vmatprep.subr.mxu0 0.0
        %2332 = vmatpush1.msra.mxu0 0.0
        %2333 = vmatprep.subr.mxu0 0.0
        %2334 = vmatpush1.msra.mxu0 0.0
        %2335 = vmatprep.subr.mxu0 0.0
        %2336 = vmatpush1.msra.mxu0 0.0
        %2337 = vmatprep.subr.mxu0 0.0
        %2338 = vmatpush1.msra.mxu0 0.0
        %2339 = vmatprep.subr.mxu0 0.0
        %2340 = vmatpush1.msra.mxu0 0.0
        %2341 = vmatprep.subr.mxu0 0.0
        %2342 = vmatpush1.msra.mxu0 0.0
        %2343 = vmatprep.subr.mxu0 0.0
        %2344 = vmatpush1.msra.mxu0 0.0
        %2345 = vmatprep.subr.mxu0 0.0
        %2346 = vmatpush1.msra.mxu0 0.0
        %2347 = vmatprep.subr.mxu0 0.0
        %2348 = vmatpush1.msra.mxu0 0.0
        %2349 = vmatprep.subr.mxu0 0.0
        %2350 = vmatpush1.msra.mxu0 0.0
        %2351 = vmatprep.subr.mxu0 0.0
        %2352 = vmatpush1.msra.mxu0 0.0
        %2353 = vmatprep.subr.mxu0 0.0
        %2354 = vmatpush1.msra.mxu0 0.0
        %2355 = vmatprep.subr.mxu0 0.0
        %2356 = vmatpush1.msra.mxu0 0.0
        %2357 = vmatprep.mubr.f32.mxu0 0.0
        %2358 = vmatmul.mubr.f32.gmra.mrb[0].mxu0 %v2291
        %v2359 = vpop.f32.mrb[0].mxu0
        %v2360 = vadd.f32 %v2273, %v2359
        %v2361 = vpop.f32.mrb[0].mxu0
        %v2362 = vadd.f32 %v2277, %v2361
        %2363 = vdwg.mxu0
        %2364 = vmatprep.subr.mxu0 %v2238
        %2365 = vmatpush1.msra.mxu0 %v2237
        %2366 = vmatprep.subr.mxu0 %v2242
        %2367 = vmatpush1.msra.mxu0 %v2241
        %2368 = vmatprep.subr.mxu0 %v2246
        %2369 = vmatpush1.msra.mxu0 %v2245
        %2370 = vmatprep.subr.mxu0 %v2250
        %2371 = vmatpush1.msra.mxu0 %v2249
        %2372 = vmatprep.subr.mxu0 %v2254
        %2373 = vmatpush1.msra.mxu0 %v2253
        %2374 = vmatprep.subr.mxu0 %v2258
        %2375 = vmatpush1.msra.mxu0 %v2257
        %2376 = vmatprep.subr.mxu0 %v2262
        %2377 = vmatpush1.msra.mxu0 %v2261
        %2378 = vmatprep.subr.mxu0 %v2266
        %2379 = vmatpush1.msra.mxu0 %v2265
        %2380 = vmatprep.subr.mxu0 0.0
        %2381 = vmatpush1.msra.mxu0 0.0
        %2382 = vmatprep.subr.mxu0 0.0
        %2383 = vmatpush1.msra.mxu0 0.0
        %2384 = vmatprep.subr.mxu0 0.0
        %2385 = vmatpush1.msra.mxu0 0.0
        %2386 = vmatprep.subr.mxu0 0.0
        %2387 = vmatpush1.msra.mxu0 0.0
        %2388 = vmatprep.subr.mxu0 0.0
        %2389 = vmatpush1.msra.mxu0 0.0
        %2390 = vmatprep.subr.mxu0 0.0
        %2391 = vmatpush1.msra.mxu0 0.0
        %2392 = vmatprep.subr.mxu0 0.0
        %2393 = vmatpush1.msra.mxu0 0.0
        %2394 = vmatprep.subr.mxu0 0.0
        %2395 = vmatpush1.msra.mxu0 0.0
        %2396 = vmatprep.subr.mxu0 0.0
        %2397 = vmatpush1.msra.mxu0 0.0
        %2398 = vmatprep.subr.mxu0 0.0
        %2399 = vmatpush1.msra.mxu0 0.0
        %2400 = vmatprep.subr.mxu0 0.0
        %2401 = vmatpush1.msra.mxu0 0.0
        %2402 = vmatprep.subr.mxu0 0.0
        %2403 = vmatpush1.msra.mxu0 0.0
        %2404 = vmatprep.subr.mxu0 0.0
        %2405 = vmatpush1.msra.mxu0 0.0
        %2406 = vmatprep.subr.mxu0 0.0
        %2407 = vmatpush1.msra.mxu0 0.0
        %2408 = vmatprep.subr.mxu0 0.0
        %2409 = vmatpush1.msra.mxu0 0.0
        %2410 = vmatprep.subr.mxu0 0.0
        %2411 = vmatpush1.msra.mxu0 0.0
        %2412 = vmatprep.subr.mxu0 0.0
        %2413 = vmatpush1.msra.mxu0 0.0
        %2414 = vmatprep.subr.mxu0 0.0
        %2415 = vmatpush1.msra.mxu0 0.0
        %2416 = vmatprep.subr.mxu0 0.0
        %2417 = vmatpush1.msra.mxu0 0.0
        %2418 = vmatprep.subr.mxu0 0.0
        %2419 = vmatpush1.msra.mxu0 0.0
        %2420 = vmatprep.subr.mxu0 0.0
        %2421 = vmatpush1.msra.mxu0 0.0
        %2422 = vmatprep.subr.mxu0 0.0
        %2423 = vmatpush1.msra.mxu0 0.0
        %2424 = vmatprep.subr.mxu0 0.0
        %2425 = vmatpush1.msra.mxu0 0.0
        %2426 = vmatprep.subr.mxu0 0.0
        %2427 = vmatpush1.msra.mxu0 0.0
        %2428 = vmatprep.mubr.f32.mxu0 0.0
        %2429 = vmatmul.mubr.f32.gmra.mrb[0].mxu0 %v2291
        %v2430 = vpop.f32.mrb[0].mxu0
        %v2431 = vadd.f32 %v2281, %v2430
        %v2432 = vpop.f32.mrb[0].mxu0
        %v2433 = vadd.f32 %v2285, %v2432
        %2434 = vdwg.mxu0
        %v2435 = vmax.f32 %v2360, 0.0
        %v2436 = vmax.f32 %v2362, 0.0
        %v2437 = vmax.f32 %v2431, 0.0
        %v2438 = vmax.f32 %v2433, 0.0
        %v2439 = vld [vmem:[%s720] sm:$0xff]
        %v2440 = vld [vmem:[%s720 + $0x8] sm:$0xff]
        %v2441 = vld [vmem:[%s720 + $0x10] sm:$0xff]
        %v2442 = vld [vmem:[%s720 + $0x18] sm:$0xff]
        %v2443 = vld [vmem:[%s720 + $0x20] sm:$0xff]
        %v2444 = vld [vmem:[%s720 + $0x28] sm:$0xff]
        %v2445 = vld [vmem:[%s720 + $0x30] sm:$0xff]
        %v2446 = vld [vmem:[%s720 + $0x38] sm:$0xff]
        %v2447 = vld [vmem:[%s720 + $0x40] sm:$0xff]
        %v2448 = vld [vmem:[%s720 + $0x48] sm:$0xff]
        %v2449 = vld [vmem:[%s720 + $0x50] sm:$0xff]
        %v2450 = vld [vmem:[%s720 + $0x58] sm:$0xff]
        %v2451 = vld [vmem:[%s720 + $0x60] sm:$0xff]
        %v2452 = vld [vmem:[%s720 + $0x68] sm:$0xff]
        %v2453 = vld [vmem:[%s720 + $0x70] sm:$0xff]
        %v2454 = vld [vmem:[%s720 + $0x78] sm:$0xff]
        %v2455 = vld [vmem:[%s720 + $0x80] sm:$0xff]
        %v2456 = vld [vmem:[%s720 + $0x88] sm:$0xff]
        %v2457 = vld [vmem:[%s720 + $0x90] sm:$0xff]
        %v2458 = vld [vmem:[%s720 + $0x98] sm:$0xff]
        %v2459 = vld [vmem:[%s720 + $0xa0] sm:$0xff]
        %v2460 = vld [vmem:[%s720 + $0xa8] sm:$0xff]
        %v2461 = vld [vmem:[%s720 + $0xb0] sm:$0xff]
        %v2462 = vld [vmem:[%s720 + $0xb8] sm:$0xff]
        %v2463 = vld [vmem:[%s720 + $0xc0] sm:$0xff]
        %v2464 = vld [vmem:[%s720 + $0xc8] sm:$0xff]
        %v2465 = vld [vmem:[%s720 + $0xd0] sm:$0xff]
        %v2466 = vld [vmem:[%s720 + $0xd8] sm:$0xff]
        %v2467 = vld [vmem:[%s720 + $0xe0] sm:$0xff]
        %v2468 = vld [vmem:[%s720 + $0xe8] sm:$0xff]
        %v2469 = vld [vmem:[%s720 + $0xf0] sm:$0xff]
        %v2470 = vld [vmem:[%s720 + $0xf8] sm:$0xff]
        %v2471 = vld [vmem:[%s720 + $0x100] sm:$0xff]
        %v2472 = vld [vmem:[%s720 + $0x108] sm:$0xff]
        %v2473 = vld [vmem:[%s720 + $0x110] sm:$0xff]
        %v2474 = vld [vmem:[%s720 + $0x118] sm:$0xff]
        %v2475 = vld [vmem:[%s720 + $0x120] sm:$0xff]
        %v2476 = vld [vmem:[%s720 + $0x128] sm:$0xff]
        %v2477 = vld [vmem:[%s720 + $0x130] sm:$0xff]
        %v2478 = vld [vmem:[%s720 + $0x138] sm:$0xff]
        %v2479 = vld [vmem:[%s720 + $0x140] sm:$0xff]
        %v2480 = vld [vmem:[%s720 + $0x148] sm:$0xff]
        %v2481 = vld [vmem:[%s720 + $0x150] sm:$0xff]
        %v2482 = vld [vmem:[%s720 + $0x158] sm:$0xff]
        %v2483 = vld [vmem:[%s720 + $0x160] sm:$0xff]
        %v2484 = vld [vmem:[%s720 + $0x168] sm:$0xff]
        %v2485 = vld [vmem:[%s720 + $0x170] sm:$0xff]
        %v2486 = vld [vmem:[%s720 + $0x178] sm:$0xff]
        %v2487 = vld [vmem:[%s720 + $0x180] sm:$0xff]
        %v2488 = vld [vmem:[%s720 + $0x188] sm:$0xff]
        %v2489 = vld [vmem:[%s720 + $0x190] sm:$0xff]
        %v2490 = vld [vmem:[%s720 + $0x198] sm:$0xff]
        %v2491 = vld [vmem:[%s720 + $0x1a0] sm:$0xff]
        %v2492 = vld [vmem:[%s720 + $0x1a8] sm:$0xff]
        %v2493 = vld [vmem:[%s720 + $0x1b0] sm:$0xff]
        %v2494 = vld [vmem:[%s720 + $0x1b8] sm:$0xff]
        %v2495 = vld [vmem:[%s720 + $0x1c0] sm:$0xff]
        %v2496 = vld [vmem:[%s720 + $0x1c8] sm:$0xff]
        %v2497 = vld [vmem:[%s720 + $0x1d0] sm:$0xff]
        %v2498 = vld [vmem:[%s720 + $0x1d8] sm:$0xff]
        %v2499 = vld [vmem:[%s720 + $0x1e0] sm:$0xff]
        %v2500 = vld [vmem:[%s720 + $0x1e8] sm:$0xff]
        %v2501 = vld [vmem:[%s720 + $0x1f0] sm:$0xff]
        %v2502 = vld [vmem:[%s720 + $0x1f8] sm:$0xff]
        %v2503 = vld [vmem:[%s645 + $0x5] ss:$0 sm:$0xff]
        %2504 = vmatprep.subr.mxu0 0.0
        %2505 = vmatpush1.msra.mxu0 %v2439
        %2506 = vmatprep.subr.mxu0 0.0
        %2507 = vmatpush1.msra.mxu0 %v2440
        %2508 = vmatprep.subr.mxu0 0.0
        %2509 = vmatpush1.msra.mxu0 %v2441
        %2510 = vmatprep.subr.mxu0 0.0
        %2511 = vmatpush1.msra.mxu0 %v2442
        %2512 = vmatprep.subr.mxu0 0.0
        %2513 = vmatpush1.msra.mxu0 %v2443
        %2514 = vmatprep.subr.mxu0 0.0
        %2515 = vmatpush1.msra.mxu0 %v2444
        %2516 = vmatprep.subr.mxu0 0.0
        %2517 = vmatpush1.msra.mxu0 %v2445
        %2518 = vmatprep.subr.mxu0 0.0
        %2519 = vmatpush1.msra.mxu0 %v2446
        %2520 = vmatprep.subr.mxu0 0.0
        %2521 = vmatpush1.msra.mxu0 %v2447
        %2522 = vmatprep.subr.mxu0 0.0
        %2523 = vmatpush1.msra.mxu0 %v2448
        %2524 = vmatprep.subr.mxu0 0.0
        %2525 = vmatpush1.msra.mxu0 %v2449
        %2526 = vmatprep.subr.mxu0 0.0
        %2527 = vmatpush1.msra.mxu0 %v2450
        %2528 = vmatprep.subr.mxu0 0.0
        %2529 = vmatpush1.msra.mxu0 %v2451
        %2530 = vmatprep.subr.mxu0 0.0
        %2531 = vmatpush1.msra.mxu0 %v2452
        %2532 = vmatprep.subr.mxu0 0.0
        %2533 = vmatpush1.msra.mxu0 %v2453
        %2534 = vmatprep.subr.mxu0 0.0
        %2535 = vmatpush1.msra.mxu0 %v2454
        %2536 = vmatprep.subr.mxu0 0.0
        %2537 = vmatpush1.msra.mxu0 %v2455
        %2538 = vmatprep.subr.mxu0 0.0
        %2539 = vmatpush1.msra.mxu0 %v2456
        %2540 = vmatprep.subr.mxu0 0.0
        %2541 = vmatpush1.msra.mxu0 %v2457
        %2542 = vmatprep.subr.mxu0 0.0
        %2543 = vmatpush1.msra.mxu0 %v2458
        %2544 = vmatprep.subr.mxu0 0.0
        %2545 = vmatpush1.msra.mxu0 %v2459
        %2546 = vmatprep.subr.mxu0 0.0
        %2547 = vmatpush1.msra.mxu0 %v2460
        %2548 = vmatprep.subr.mxu0 0.0
        %2549 = vmatpush1.msra.mxu0 %v2461
        %2550 = vmatprep.subr.mxu0 0.0
        %2551 = vmatpush1.msra.mxu0 %v2462
        %2552 = vmatprep.subr.mxu0 0.0
        %2553 = vmatpush1.msra.mxu0 %v2463
        %2554 = vmatprep.subr.mxu0 0.0
        %2555 = vmatpush1.msra.mxu0 %v2464
        %2556 = vmatprep.subr.mxu0 0.0
        %2557 = vmatpush1.msra.mxu0 %v2465
        %2558 = vmatprep.subr.mxu0 0.0
        %2559 = vmatpush1.msra.mxu0 %v2466
        %2560 = vmatprep.subr.mxu0 0.0
        %2561 = vmatpush1.msra.mxu0 %v2467
        %2562 = vmatprep.subr.mxu0 0.0
        %2563 = vmatpush1.msra.mxu0 %v2468
        %2564 = vmatprep.subr.mxu0 0.0
        %2565 = vmatpush1.msra.mxu0 %v2469
        %2566 = vmatprep.subr.mxu0 0.0
        %2567 = vmatpush1.msra.mxu0 %v2470
        %2568 = vmatprep.mubr.f32.mxu0 %v2436
        %2569 = vmatmul.mubr.f32.gmra.mrb[0].mxu0 %v2435
        %v2570 = vpop.f32.mrb[0].mxu0
        %v2571 = vadd.f32 %v2503, %v2570
        %v2572 = vpop.f32.mrb[0].mxu0
        %2573 = vdwg.mxu0
        %2574 = vmatprep.subr.mxu0 0.0
        %2575 = vmatpush1.msra.mxu0 %v2471
        %2576 = vmatprep.subr.mxu0 0.0
        %2577 = vmatpush1.msra.mxu0 %v2472
        %2578 = vmatprep.subr.mxu0 0.0
        %2579 = vmatpush1.msra.mxu0 %v2473
        %2580 = vmatprep.subr.mxu0 0.0
        %2581 = vmatpush1.msra.mxu0 %v2474
        %2582 = vmatprep.subr.mxu0 0.0
        %2583 = vmatpush1.msra.mxu0 %v2475
        %2584 = vmatprep.subr.mxu0 0.0
        %2585 = vmatpush1.msra.mxu0 %v2476
        %2586 = vmatprep.subr.mxu0 0.0
        %2587 = vmatpush1.msra.mxu0 %v2477
        %2588 = vmatprep.subr.mxu0 0.0
        %2589 = vmatpush1.msra.mxu0 %v2478
        %2590 = vmatprep.subr.mxu0 0.0
        %2591 = vmatpush1.msra.mxu0 %v2479
        %2592 = vmatprep.subr.mxu0 0.0
        %2593 = vmatpush1.msra.mxu0 %v2480
        %2594 = vmatprep.subr.mxu0 0.0
        %2595 = vmatpush1.msra.mxu0 %v2481
        %2596 = vmatprep.subr.mxu0 0.0
        %2597 = vmatpush1.msra.mxu0 %v2482
        %2598 = vmatprep.subr.mxu0 0.0
        %2599 = vmatpush1.msra.mxu0 %v2483
        %2600 = vmatprep.subr.mxu0 0.0
        %2601 = vmatpush1.msra.mxu0 %v2484
        %2602 = vmatprep.subr.mxu0 0.0
        %2603 = vmatpush1.msra.mxu0 %v2485
        %2604 = vmatprep.subr.mxu0 0.0
        %2605 = vmatpush1.msra.mxu0 %v2486
        %2606 = vmatprep.subr.mxu0 0.0
        %2607 = vmatpush1.msra.mxu0 %v2487
        %2608 = vmatprep.subr.mxu0 0.0
        %2609 = vmatpush1.msra.mxu0 %v2488
        %2610 = vmatprep.subr.mxu0 0.0
        %2611 = vmatpush1.msra.mxu0 %v2489
        %2612 = vmatprep.subr.mxu0 0.0
        %2613 = vmatpush1.msra.mxu0 %v2490
        %2614 = vmatprep.subr.mxu0 0.0
        %2615 = vmatpush1.msra.mxu0 %v2491
        %2616 = vmatprep.subr.mxu0 0.0
        %2617 = vmatpush1.msra.mxu0 %v2492
        %2618 = vmatprep.subr.mxu0 0.0
        %2619 = vmatpush1.msra.mxu0 %v2493
        %2620 = vmatprep.subr.mxu0 0.0
        %2621 = vmatpush1.msra.mxu0 %v2494
        %2622 = vmatprep.subr.mxu0 0.0
        %2623 = vmatpush1.msra.mxu0 %v2495
        %2624 = vmatprep.subr.mxu0 0.0
        %2625 = vmatpush1.msra.mxu0 %v2496
        %2626 = vmatprep.subr.mxu0 0.0
        %2627 = vmatpush1.msra.mxu0 %v2497
        %2628 = vmatprep.subr.mxu0 0.0
        %2629 = vmatpush1.msra.mxu0 %v2498
        %2630 = vmatprep.subr.mxu0 0.0
        %2631 = vmatpush1.msra.mxu0 %v2499
        %2632 = vmatprep.subr.mxu0 0.0
        %2633 = vmatpush1.msra.mxu0 %v2500
        %2634 = vmatprep.subr.mxu0 0.0
        %2635 = vmatpush1.msra.mxu0 %v2501
        %2636 = vmatprep.subr.mxu0 0.0
        %2637 = vmatpush1.msra.mxu0 %v2502
        %2638 = vmatprep.mubr.f32.mxu0 %v2438
        %2639 = vmatmul.mubr.f32.gmra.mrb[0].mxu0 %v2437
        %v2640 = vpop.f32.mrb[0].mxu0
        %v2641 = vadd.f32 %v2571, %v2640
        %v2642 = vpop.f32.mrb[0].mxu0
        %2643 = vdwg.mxu0
        %v2644 = vadd.f32 %v2234, %v2641
        %v2645 = vld [vmem:[%s645 + $0x6] ss:$0 sm:$0xff]
        %v2646 = vld [vmem:[%s645 + $0x7] ss:$0 sm:$0xff]
        %v2647 = vsel %vm844, %v2644, 0.0
        %2648 = vadd.xlane.f32.xlu0 %v2647
        %v2649 = vpop.xlane.xlu0 %2648
        %v2650 = vmul.f32 %v2649, %v2222
        %v2651 = vsub.f32 %v2644, %v2650
        %v2652 = vmul.f32 %v2651, %v2651
        %v2653 = vsel %vm844, %v2652, 0.0
        %2654 = vadd.xlane.f32.xlu0 %v2653
        %v2655 = vpop.xlane.xlu0 %2654
        %v2656 = vmul.f32 %v2655, %v2222
        %v2657 = vadd.f32 %v2656, 1e-05
        %v2658 = vrsqrt.pop %v2657
        %v2659 = vmul.f32 %v2651, %v2658
        %v2660 = vmul.f32 %v2659, %v2645
        %v2661 = vadd.f32 %v2660, %v2646
        %2662 = vst.msk [vmem:[#allocation2] sm:$0xff] %vm844, %v2661
        %2663 = vst.msk [vmem:[#allocation20] sm:$0xff] %vm844, %v2661
        %p2664 = scmp.lt.s32.totalorder %s38, 1
        %s2665 = scalar_select %p2664, %s38, 1
        %s2666 = smul.addr %s2665, 8
        %s2667 = scalar_lea.vmem %s15, %s2666
        // Predicated region
        $region121: #{encoder_forward.1} parent=75 // pred_check
          %p2668 = pneg %p370
        $region122: #{encoder_forward.1} parent=75 // pred_check_branch
          %2670 = sbr.rel (%p2668) target = $region124
        $region123: #{encoder_forward.1} parent=75 // pred_region
          %s2672 = ssub.s32 128, 128
          %2673 = vsyncadd [#allocation5], %s2672
          %s2675 = sshll.u32 [#allocation20], 4
          %s2676 = int_to_ptr.vmem [resolvable:$true] %s2675
          %2678 = dma.vmem_to_hbm [thread:$0]  %s2676, 128, %s14, [#allocation5]
        $region124: #{encoder_forward.1} parent=75 // pred_fallthru
          _
        // Predicated region
        $region125: #{encoder_forward.1} parent=75 // pred_check
          %p2679 = pneg %p396
        $region126: #{encoder_forward.1} parent=75 // pred_check_branch
          %2681 = sbr.rel (%p2679) target = $region128
        $region127: #{encoder_forward.1} parent=75 // pred_region
          _
        $region128: #{encoder_forward.1} parent=75 // pred_fallthru
          _
        // Predicated region
        $region129: #{encoder_forward.1} parent=75 // pred_check
          %p2682 = pneg %p370
        $region130: #{encoder_forward.1} parent=75 // pred_check_branch
          %2684 = sbr.rel (%p2682) target = $region132
        $region131: #{encoder_forward.1} parent=75 // pred_region
          %2685 = dma.done [#allocation5], 128
        $region132: #{encoder_forward.1} parent=75 // pred_fallthru
          _
      $region76: #{encoder_forward.1} parent=5 // pred_fallthru
        _
      %p2686 = scmp.le.s32.totalorder 2, %s33
      // Predicated region
      $region133: #{encoder_forward.1} parent=5 // pred_check
        %p2687 = pneg %p2686
      $region134: #{encoder_forward.1} parent=5 // pred_check_branch
        %2689 = sbr.rel (%p2687) target = $region136
      $region135: #{encoder_forward.1} parent=5 // pred_region
        %s2690 = ssub.s32 %s33, 2
        // Predicated region
        $region137: #{encoder_forward.1} parent=135 // pred_check
          %p2691 = pneg %p402
        $region138: #{encoder_forward.1} parent=135 // pred_check_branch
          %2693 = sbr.rel (%p2691) target = $region140
        $region139: #{encoder_forward.1} parent=135 // pred_region
          %p2694 = scmp.lt.s32.totalorder %s39, 1
          %s2695 = scalar_select %p2694, %s39, 1
          %s2696 = smul.addr %s2695, 8
          %s2697 = scalar_lea.vmem %s15, %s2696
        $region140: #{encoder_forward.1} parent=135 // pred_fallthru
          _
      $region136: #{encoder_forward.1} parent=5 // pred_fallthru
        _
    $region6: #{encoder_forward.1} parent=1 // loop_footer
      %s37 = sadd.s32 1, %s33
    $region7: #{encoder_forward.1} parent=1 // loop_footer_branch
      %32 = sbr.rel target = $region3
    $region8: #{encoder_forward.1} parent=1 // loop_exit
      _
    %2698 = vsyncpa [#allocation4], 1
    %s2699 = scalar_lea.sflag [#allocation4], 1
    %2700 = vsyncpa %s2699, 1
    %2701 = vsyncpa [#allocation7], 1
    %2702 = vsyncpa [#allocation10], 1
    %2703 = vsyncpa [#allocation13], 1
    %2704 = vsyncpa [#allocation16], 1
    %s2705 = scalar_lea.sflag [#allocation16], 1
    %2706 = vsyncpa %s2705, 1
    %2707 = vsyncpa [#allocation19], 1
    %s2708 = scalar_lea.sflag [#allocation19], 1
    %2709 = vsyncpa %s2708, 1
    %2710 = vsyncpa [#allocation5], 1
    %s2711 = scalar_lea.sflag [#allocation5], 1
    %2712 = vsyncpa %s2711, 1

</llo_original>
